<compile_context>
chip_gen: v7x
topology: tpu7x:2x2x1
jax: 0.10.0
libtpu: 0.0.40
codegen_flags: <defaults>
</compile_context>

<pallas_src>
import math

import jax
import jax.numpy as jnp
from jax.experimental import pallas as pl
from jax.experimental.pallas import tpu as pltpu


def _round_up(x, m):
    return (x + m - 1) // m * m


# ---------------------------------------------------------------------------
# Kernels
# ---------------------------------------------------------------------------
def _mlp_fused_kernel(x_ref, w1_ref, b1_ref, w2_ref, b2_ref, o_ref):
    # fc1 (+bias, ReLU) -> fc2. BatchNorm already folded into W2/b2 at init time.
    h = jnp.dot(x_ref[...], w1_ref[...], preferred_element_type=jnp.float32)
    h = jnp.maximum(h + b1_ref[...], 0.0)                    # f32 epilogue (v5e-safe)
    out = jnp.dot(h.astype(w2_ref.dtype), w2_ref[...],
                  preferred_element_type=jnp.float32)
    o_ref[...] = (out + b2_ref[...]).astype(o_ref.dtype)


def _mlp_ktiled_kernel(x_ref, w1_ref, b1_ref, w2_ref, b2_ref, o_ref, acc_ref):
    # Grid = (batch tiles [parallel], K tiles [arbitrary]).
    k = pl.program_id(1)

    @pl.when(k == 0)
    def _():
        acc_ref[...] = jnp.zeros_like(acc_ref)

    acc_ref[...] += jnp.dot(x_ref[...], w1_ref[...],
                            preferred_element_type=jnp.float32)

    # Bias/ReLU/fc2 applied ONCE per output tile, not per K step.
    @pl.when(k == pl.num_programs(1) - 1)
    def _():
        h = jnp.maximum(acc_ref[...] + b1_ref[...], 0.0)
        out = jnp.dot(h.astype(w2_ref.dtype), w2_ref[...],
                      preferred_element_type=jnp.float32)
        o_ref[...] = (out + b2_ref[...]).astype(o_ref.dtype)


# ---------------------------------------------------------------------------
# Wrapper
# ---------------------------------------------------------------------------
def net_mlp_forward(x, params, *, compute_dtype=jnp.float32,
                    batch_tile=256, k_tile=512, k_tile_threshold=2048):
    """Pallas implementation of NetMLP.forward (eval mode, no x1 argument)."""
    if x.ndim == 4:                                  # x.view(x.shape[0], -1)
        x = x.reshape(x.shape[0], -1)
    B, D_in = x.shape

    w1 = params["w1"].astype(compute_dtype)          # (D_in, H)
    b1 = params["b1"]                                # (1, H)   f32
    w2 = params["w2_folded"].astype(compute_dtype)   # (H, Dout_pad)  BN folded, lane padded
    b2 = params["b2_folded"]                         # (1, Dout_pad)  f32
    d_out = params["d_out"]
    H = w1.shape[1]
    dout_pad = w2.shape[1]

    x = x.astype(compute_dtype)

    # ---- batch tiling (tile multiple of 8 sublanes; pad ragged batch) ----
    tb = batch_tile if B >= batch_tile else _round_up(max(B, 1), 8)
    bp = _round_up(B, tb)
    if bp != B:
        x = jnp.pad(x, ((0, bp - B), (0, 0)))
    n_b = bp // tb

    use_k_tiling = D_in > k_tile_threshold
    w_bytes = jnp.dtype(compute_dtype).itemsize

    # ---- explicit scoped-VMEM budget with headroom (clamped for v7x's 64 MiB) ----
    if use_k_tiling:
        per_step_in = tb * k_tile * w_bytes + k_tile * H * w_bytes
        scratch_bytes = 2 * tb * H * 4                       # acc + h intermediate
    else:
        per_step_in = tb * D_in * w_bytes + D_in * H * w_bytes
        scratch_bytes = tb * H * 4                           # h intermediate
    resident = H * 4 + H * dout_pad * w_bytes + dout_pad * 4  # b1, w2, b2
    per_step_out = tb * dout_pad * 4
    est = 2 * (per_step_in + resident + per_step_out) + scratch_bytes
    vmem_limit = int(min(max(est * 1.3, 32 * 1024 * 1024), 64 * 1024 * 1024))

    if not use_k_tiling:
        # Weights resident (constant block index); x / out double-buffered over batch.
        logits_p = pl.pallas_call(
            _mlp_fused_kernel,
            out_shape=jax.ShapeDtypeStruct((bp, dout_pad), jnp.float32),
            grid=(n_b,),
            in_specs=[
                pl.BlockSpec((tb, D_in), lambda i: (i, 0)),
                pl.BlockSpec((D_in, H), lambda i: (0, 0)),
                pl.BlockSpec((1, H), lambda i: (0, 0)),
                pl.BlockSpec((H, dout_pad), lambda i: (0, 0)),
                pl.BlockSpec((1, dout_pad), lambda i: (0, 0)),
            ],
            out_specs=pl.BlockSpec((tb, dout_pad), lambda i: (i, 0)),
            compiler_params=pltpu.CompilerParams(
                dimension_semantics=("parallel",),
                vmem_limit_bytes=vmem_limit),
        )(x, w1, b1, w2, b2)
    else:
        # Large flattened D_in: tile K with an f32 accumulator; epilogue in finalize.
        dk = _round_up(D_in, k_tile)
        if dk != D_in:
            x = jnp.pad(x, ((0, 0), (0, dk - D_in)))
            w1 = jnp.pad(w1, ((0, dk - D_in), (0, 0)))
        n_k = dk // k_tile
        logits_p = pl.pallas_call(
            _mlp_ktiled_kernel,
            out_shape=jax.ShapeDtypeStruct((bp, dout_pad), jnp.float32),
            grid=(n_b, n_k),
            in_specs=[
                pl.BlockSpec((tb, k_tile), lambda i, k: (i, k)),
                pl.BlockSpec((k_tile, H), lambda i, k: (k, 0)),
                pl.BlockSpec((1, H), lambda i, k: (0, 0)),
                pl.BlockSpec((H, dout_pad), lambda i, k: (0, 0)),
                pl.BlockSpec((1, dout_pad), lambda i, k: (0, 0)),
            ],
            out_specs=pl.BlockSpec((tb, dout_pad), lambda i, k: (i, 0)),
            scratch_shapes=[pltpu.VMEM((tb, H), jnp.float32)],
            compiler_params=pltpu.CompilerParams(
                dimension_semantics=("parallel", "arbitrary"),
                vmem_limit_bytes=vmem_limit),
        )(x, w1, b1, w2, b2)

    logits = logits_p[:B, :d_out]
    # output_activation is None -> (x_logits, output) with output == x_logits
    return logits, logits


# ---------------------------------------------------------------------------
# Parameter construction (PyTorch-default init, eval-mode BN folded into fc2)
# ---------------------------------------------------------------------------
def init_net_mlp_params(key, input_dim, output_dim, hidden=1024):
    """nn.Linear default init U(-1/sqrt(fan_in), 1/sqrt(fan_in)); BatchNorm1d
    eval stats (gamma=1, beta=0, mean=0, var=1, eps=1e-5) folded into fc2."""
    k1, k2, k3, k4 = jax.random.split(key, 4)
    bound1 = 1.0 / math.sqrt(input_dim)
    bound2 = 1.0 / math.sqrt(hidden)
    w1 = jax.random.uniform(k1, (input_dim, hidden), jnp.float32, -bound1, bound1)
    b1 = jax.random.uniform(k2, (1, hidden), jnp.float32, -bound1, bound1)
    w2 = jax.random.uniform(k3, (hidden, output_dim), jnp.float32, -bound2, bound2)
    b2 = jax.random.uniform(k4, (1, output_dim), jnp.float32, -bound2, bound2)
    eps = 1e-5
    gamma = jnp.ones((1, hidden), jnp.float32)
    beta = jnp.zeros((1, hidden), jnp.float32)
    running_mean = jnp.zeros((1, hidden), jnp.float32)
    running_var = jnp.ones((1, hidden), jnp.float32)
    bn_scale = gamma / jnp.sqrt(running_var + eps)
    bn_bias = beta - running_mean * bn_scale

    # Exact fold of the eval-mode BN affine (which follows the ReLU) into fc2.
    w2_folded = bn_scale.reshape(hidden, 1) * w2           # (H, D_out)
    b2_folded = bn_bias @ w2 + b2                          # (1, D_out)

    # Lane-pad fc2 outputs to a multiple of 128 so the kernel's store is unmasked.
    dout_pad = _round_up(output_dim, 128)
    if dout_pad != output_dim:
        w2_folded = jnp.pad(w2_folded, ((0, 0), (0, dout_pad - output_dim)))
        b2_folded = jnp.pad(b2_folded, ((0, 0), (0, dout_pad - output_dim)))

    # TODO(synk): training-mode BatchNorm (batch statistics) and dropout masking are
    # not reproduced; this implements the deterministic eval-mode forward only.
    return {
        "w1": w1, "b1": b1,
        "w2_folded": w2_folded, "b2_folded": b2_folded, "d_out": output_dim,
        # raw (unfolded) params kept only for the pure-JAX reference check
        "w2": w2, "b2": b2, "bn_scale": bn_scale, "bn_bias": bn_bias,
    }


def _reference_forward(x, params):
    if x.ndim == 4:
        x = x.reshape(x.shape[0], -1)
    hp = jax.lax.Precision.HIGHEST
    h = jnp.maximum(jnp.dot(x, params["w1"], precision=hp) + params["b1"], 0.0)
    h = h * params["bn_scale"] + params["bn_bias"]
    return jnp.dot(h, params["w2"], precision=hp) + params["b2"]


if __name__ == "__main__":
    key = jax.random.PRNGKey(0)
    kx1, kx2, kp1, kp2 = jax.random.split(key, 4)

    batch, out_dim = 8, 10

    # Case 1: 4-D input (flattened like x.view(B, -1)), f32 matmuls, fused path.
    x4 = jax.random.normal(kx1, (batch, 4, 16, 16), jnp.float32)     # D_in = 1024
    params1 = init_net_mlp_params(kp1, 4 * 16 * 16, out_dim)
    logits, output = net_mlp_forward(x4, params1)
    logits = jax.block_until_ready(logits)
    output = jax.block_until_ready(output)
    ref = _reference_forward(x4, params1)
    assert logits.shape == (batch, out_dim)
    assert jnp.allclose(logits, ref, atol=1e-3, rtol=1e-3)
    assert jnp.allclose(output, logits)

    # Case 2: same problem with bf16 matmuls (f32 accumulation / f32 epilogue).
    logits_bf16, _ = net_mlp_forward(x4, params1, compute_dtype=jnp.bfloat16)
    logits_bf16 = jax.block_until_ready(logits_bf16)
    assert jnp.allclose(logits_bf16, ref, atol=5e-2, rtol=5e-2)

    # Case 3: large flattened D_in exercises the K-tiled accumulator path.
    big_in = 4096
    x2 = jax.random.normal(kx2, (batch, big_in), jnp.float32)
    params2 = init_net_mlp_params(kp2, big_in, out_dim)
    logits_big, _ = net_mlp_forward(x2, params2)
    logits_big = jax.block_until_ready(logits_big)
    ref_big = _reference_forward(x2, params2)
    assert logits_big.shape == (batch, out_dim)
    assert jnp.allclose(logits_big, ref_big, atol=2e-3, rtol=2e-3)

    print("KERNEL_OK")
</pallas_src>

<mosaic_0001>
module attributes {stable_mosaic.version = 11 : i64} {
  func.func @_mlp_fused_kernel(%arg0: i32, %arg1: memref<8x1024xf32, #tpu.memory_space<vmem>>, %arg2: memref<1024x1024xf32, #tpu.memory_space<vmem>>, %arg3: memref<1x1024xf32, #tpu.memory_space<vmem>>, %arg4: memref<1024x128xf32, #tpu.memory_space<vmem>>, %arg5: memref<1x128xf32, #tpu.memory_space<vmem>>, %arg6: memref<8x128xf32, #tpu.memory_space<vmem>>) attributes {dimension_semantics = [#tpu.dimension_semantics<parallel>], iteration_bounds = array<i64: 1>, scalar_prefetch = 0 : i64, scratch_operands = 0 : i64, tpu.core_type = #tpu.core_type<tc>, window_params = [{transform_indices = @transform_0, window_bounds = array<i64: 8, 1024>}, {pipeline_mode = #tpu.pipeline_mode<synchronous>, transform_indices = @transform_1, window_bounds = array<i64: 1024, 1024>}, {pipeline_mode = #tpu.pipeline_mode<synchronous>, transform_indices = @transform_2, window_bounds = array<i64: 1, 1024>}, {pipeline_mode = #tpu.pipeline_mode<synchronous>, transform_indices = @transform_3, window_bounds = array<i64: 1024, 128>}, {pipeline_mode = #tpu.pipeline_mode<synchronous>, transform_indices = @transform_4, window_bounds = array<i64: 1, 128>}, {transform_indices = @transform_5, window_bounds = array<i64: 8, 128>}]} {
    %c0 = arith.constant 0 : index
    %c0_0 = arith.constant 0 : index
    %0 = vector.load %arg1[%c0, %c0_0] : memref<8x1024xf32, #tpu.memory_space<vmem>>, vector<8x1024xf32>
    %c0_1 = arith.constant 0 : index
    %c0_2 = arith.constant 0 : index
    %1 = vector.load %arg2[%c0_1, %c0_2] : memref<1024x1024xf32, #tpu.memory_space<vmem>>, vector<1024x1024xf32>
    %cst = arith.constant dense<0.000000e+00> : vector<8x1024xf32>
    %2 = tpu.matmul %0, %1, %cst {dimension_numbers = #tpu.dot_dimension_numbers<[1], [0], [0], [1], [0, 0, 1, 1], [], []>} : vector<8x1024xf32>, vector<1024x1024xf32>, vector<8x1024xf32> -> vector<8x1024xf32>
    %c0_3 = arith.constant 0 : index
    %c0_4 = arith.constant 0 : index
    %3 = vector.load %arg3[%c0_3, %c0_4] : memref<1x1024xf32, #tpu.memory_space<vmem>>, vector<1x1024xf32>
    %4 = vector.broadcast %3 : vector<1x1024xf32> to vector<8x1024xf32>
    %5 = arith.addf %2, %4 : vector<8x1024xf32>
    %cst_5 = arith.constant 0.000000e+00 : f32
    %6 = vector.broadcast %cst_5 : f32 to vector<8x1024xf32>
    %7 = arith.maximumf %5, %6 : vector<8x1024xf32>
    %c0_6 = arith.constant 0 : index
    %c0_7 = arith.constant 0 : index
    %8 = vector.load %arg4[%c0_6, %c0_7] : memref<1024x128xf32, #tpu.memory_space<vmem>>, vector<1024x128xf32>
    %cst_8 = arith.constant dense<0.000000e+00> : vector<8x128xf32>
    %9 = tpu.matmul %7, %8, %cst_8 {dimension_numbers = #tpu.dot_dimension_numbers<[1], [0], [0], [1], [0, 0, 1, 1], [], []>} : vector<8x1024xf32>, vector<1024x128xf32>, vector<8x128xf32> -> vector<8x128xf32>
    %c0_9 = arith.constant 0 : index
    %c0_10 = arith.constant 0 : index
    %10 = vector.load %arg5[%c0_9, %c0_10] : memref<1x128xf32, #tpu.memory_space<vmem>>, vector<1x128xf32>
    %11 = vector.broadcast %10 : vector<1x128xf32> to vector<8x128xf32>
    %12 = arith.addf %9, %11 : vector<8x128xf32>
    %c0_11 = arith.constant 0 : index
    %c0_12 = arith.constant 0 : index
    %13 = vector.load %arg6[%c0_11, %c0_12] : memref<8x128xf32, #tpu.memory_space<vmem>>, vector<8x128xf32>
    tpu.vector_store %arg6[%c0_11, %c0_12], %12 {strides = array<i32>} : memref<8x128xf32, #tpu.memory_space<vmem>>, vector<8x128xf32>,
    return
  }
  func.func @transform_0(%arg0: i32) -> (i32, i32) {
    %c0_i32 = arith.constant 0 : i32
    %c0_i32_0 = arith.constant 0 : i32
    return %arg0, %c0_i32 : i32, i32
  }
  func.func @transform_1(%arg0: i32) -> (i32, i32) {
    %c0_i32 = arith.constant 0 : i32
    %c0_i32_0 = arith.constant 0 : i32
    %c0_i32_1 = arith.constant 0 : i32
    return %c0_i32, %c0_i32_0 : i32, i32
  }
  func.func @transform_2(%arg0: i32) -> (i32, i32) {
    %c0_i32 = arith.constant 0 : i32
    %c0_i32_0 = arith.constant 0 : i32
    %c0_i32_1 = arith.constant 0 : i32
    return %c0_i32, %c0_i32_0 : i32, i32
  }
  func.func @transform_3(%arg0: i32) -> (i32, i32) {
    %c0_i32 = arith.constant 0 : i32
    %c0_i32_0 = arith.constant 0 : i32
    %c0_i32_1 = arith.constant 0 : i32
    return %c0_i32, %c0_i32_0 : i32, i32
  }
  func.func @transform_4(%arg0: i32) -> (i32, i32) {
    %c0_i32 = arith.constant 0 : i32
    %c0_i32_0 = arith.constant 0 : i32
    %c0_i32_1 = arith.constant 0 : i32
    return %c0_i32, %c0_i32_0 : i32, i32
  }
  func.func @transform_5(%arg0: i32) -> (i32, i32) {
    %c0_i32 = arith.constant 0 : i32
    %c0_i32_0 = arith.constant 0 : i32
    return %arg0, %c0_i32 : i32, i32
  }
}

</mosaic_0001>

<llo_original>
// kernel: tpu_custom_call.1
$region0: #{tpu_custom_call.1}
  #allocation0 [shape = 'u32[]', space=smem, size = 0x4, offset = 0x4, fixed_abs, tag = 'smem constant byte address 0x4 - core index']
  #allocation1 [shape = 'u32[144,128]{1,0:T(1,128)}', space=vmem, size = 0x12000, scoped, tag = 'internal scratch']
  %s0 = inlined_call_operand.hbm [shape: f32[8,1024], index: 0, kind: input, shape index: {}]
  %s1 = inlined_call_operand.hbm [shape: f32[1024,1024], index: 1, kind: input, shape index: {}]
  %s2 = inlined_call_operand.hbm [shape: f32[1,1024], index: 2, kind: input, shape index: {}]
  %s3 = inlined_call_operand.hbm [shape: f32[1024,128], index: 3, kind: input, shape index: {}]
  %s4 = inlined_call_operand.hbm [shape: f32[1,128], index: 4, kind: input, shape index: {}]
  %s5 = inlined_call_operand.hbm [shape: f32[8,128], index: 5, kind: output, shape index: {}]
  %s6 = sld [smem:[#allocation0]]
  $region50: #{tpu_custom_call.1} parent=0
    _
  %s8 = ssub.s32 1, %s6
  %s9 = scalar_select 0, %s8, %s6
  $region1: #{tpu_custom_call.1} parent=0
    #allocation2 [shape = 'u8[32768]{0}', space=vmem, size = 0x8000, scoped, tag = 'input window, operand 0, single buffered']
    #allocation3 [shape = 's32[1]{0}', space=sflag, size = 0x4, scoped, tag = 'scoped memory for tpu_custom_call.1']
    #allocation4 [shape = 's32[1]{0}', space=sflag, size = 0x4, scoped, tag = 'scoped memory for tpu_custom_call.1']
    #allocation5 [shape = 'u8[4194304]{0}', space=vmem, size = 0x400000, scoped, tag = 'input window, operand 1, single buffered']
    #allocation6 [shape = 's32[1]{0}', space=sflag, size = 0x4, scoped, tag = 'scoped memory for tpu_custom_call.1']
    #allocation7 [shape = 'u8[4096]{0}', space=vmem, size = 0x1000, scoped, tag = 'input window, operand 2, single buffered']
    #allocation8 [shape = 'u8[524288]{0}', space=vmem, size = 0x80000, scoped, tag = 'input window, operand 3, single buffered']
    #allocation9 [shape = 's32[1]{0}', space=sflag, size = 0x4, scoped, tag = 'scoped memory for tpu_custom_call.1']
    #allocation10 [shape = 'u8[512]{0}', space=vmem, size = 0x400, scoped, tag = 'input window, operand 4, single buffered']
    #allocation11 [shape = 'u8[4096]{0}', space=vmem, size = 0x1000, scoped, tag = 'output window, operand 0, single buffered']
    %10 = vsyncpa [#allocation3], 0
    %11 = vsyncpa [#allocation6], 0
    %12 = vsyncpa [#allocation9], 0
    %13 = vsyncpa [#allocation4], 0
    // Predicated region
    $region2: #{tpu_custom_call.1} parent=1 // pred_check
      _
    $region3: #{tpu_custom_call.1} parent=1 // pred_check_branch
      %15 = sbr.rel (0) target = $region5
    $region4: #{tpu_custom_call.1} parent=1 // pred_region
      %s17 = ssub.s32 1024, 1024
      %18 = vsyncadd [#allocation3], %s17
      %s20 = sshll.u32 [#allocation2], 4
      %s21 = int_to_ptr.vmem [resolvable:$true] %s20
      %23 = dma.hbm_to_vmem [thread:$0]  %s0, 1024, %s21, [#allocation3]
    $region5: #{tpu_custom_call.1} parent=1 // pred_fallthru
      _
    // Predicated region
    $region6: #{tpu_custom_call.1} parent=1 // pred_check
      _
    $region7: #{tpu_custom_call.1} parent=1 // pred_check_branch
      %25 = sbr.rel (0) target = $region9
    $region8: #{tpu_custom_call.1} parent=1 // pred_region
      %s27 = ssub.s32 131072, 131072
      %28 = vsyncadd [#allocation6], %s27
      %s29 = sshll.u32 [#allocation5], 4
      %s30 = int_to_ptr.vmem [resolvable:$true] %s29
      %35 = dma.hbm_to_vmem [thread:$0]  %s1, 131072, %s30, [#allocation6], 1024, 1024, 64
    $region9: #{tpu_custom_call.1} parent=1 // pred_fallthru
      _
    // Predicated region
    $region10: #{tpu_custom_call.1} parent=1 // pred_check
      _
    $region11: #{tpu_custom_call.1} parent=1 // pred_check_branch
      %37 = sbr.rel (0) target = $region13
    $region12: #{tpu_custom_call.1} parent=1 // pred_region
      %s39 = ssub.s32 128, 128
      %40 = vsyncadd [#allocation6], %s39
      %s42 = sshll.u32 [#allocation7], 4
      %s43 = int_to_ptr.vmem [resolvable:$true] %s42
      %45 = dma.hbm_to_vmem [thread:$0]  %s2, 128, %s43, [#allocation6]
    $region13: #{tpu_custom_call.1} parent=1 // pred_fallthru
      _
    // Predicated region
    $region14: #{tpu_custom_call.1} parent=1 // pred_check
      _
    $region15: #{tpu_custom_call.1} parent=1 // pred_check_branch
      %47 = sbr.rel (0) target = $region17
    $region16: #{tpu_custom_call.1} parent=1 // pred_region
      %s49 = ssub.s32 16384, 16384
      %50 = vsyncadd [#allocation9], %s49
      %s51 = sshll.u32 [#allocation8], 4
      %s52 = int_to_ptr.vmem [resolvable:$true] %s51
      %57 = dma.hbm_to_vmem [thread:$0]  %s3, 16384, %s52, [#allocation9], 128, 128, 8
    $region17: #{tpu_custom_call.1} parent=1 // pred_fallthru
      _
    // Predicated region
    $region18: #{tpu_custom_call.1} parent=1 // pred_check
      _
    $region19: #{tpu_custom_call.1} parent=1 // pred_check_branch
      %59 = sbr.rel (0) target = $region21
    $region20: #{tpu_custom_call.1} parent=1 // pred_region
      %s61 = ssub.s32 16, 16
      %62 = vsyncadd [#allocation9], %s61
      %s64 = sshll.u32 [#allocation10], 4
      %s65 = int_to_ptr.vmem [resolvable:$true] %s64
      %67 = dma.hbm_to_vmem [thread:$0]  %s4, 16, %s65, [#allocation9]
    $region21: #{tpu_custom_call.1} parent=1 // pred_fallthru
      _
    // Predicated region
    $region22: #{tpu_custom_call.1} parent=1 // pred_check
      _
    $region23: #{tpu_custom_call.1} parent=1 // pred_check_branch
      %69 = sbr.rel (0) target = $region25
    $region24: #{tpu_custom_call.1} parent=1 // pred_region
      %70 = dma.done [#allocation3], 1024
    $region25: #{tpu_custom_call.1} parent=1 // pred_fallthru
      _
    // Predicated region
    $region26: #{tpu_custom_call.1} parent=1 // pred_check
      _
    $region27: #{tpu_custom_call.1} parent=1 // pred_check_branch
      %72 = sbr.rel (0) target = $region29
    $region28: #{tpu_custom_call.1} parent=1 // pred_region
      %73 = dma.done [#allocation6], 131072
    $region29: #{tpu_custom_call.1} parent=1 // pred_fallthru
      _
    // Predicated region
    $region30: #{tpu_custom_call.1} parent=1 // pred_check
      _
    $region31: #{tpu_custom_call.1} parent=1 // pred_check_branch
      %75 = sbr.rel (0) target = $region33
    $region32: #{tpu_custom_call.1} parent=1 // pred_region
      %76 = dma.done [#allocation6], 128
    $region33: #{tpu_custom_call.1} parent=1 // pred_fallthru
      _
    // Predicated region
    $region34: #{tpu_custom_call.1} parent=1 // pred_check
      _
    $region35: #{tpu_custom_call.1} parent=1 // pred_check_branch
      %78 = sbr.rel (0) target = $region37
    $region36: #{tpu_custom_call.1} parent=1 // pred_region
      %79 = dma.done [#allocation9], 16384
    $region37: #{tpu_custom_call.1} parent=1 // pred_fallthru
      _
    // Predicated region
    $region38: #{tpu_custom_call.1} parent=1 // pred_check
      _
    $region39: #{tpu_custom_call.1} parent=1 // pred_check_branch
      %81 = sbr.rel (0) target = $region41
    $region40: #{tpu_custom_call.1} parent=1 // pred_region
      %82 = dma.done [#allocation9], 16
    $region41: #{tpu_custom_call.1} parent=1 // pred_fallthru
      _
    %v83 = vld [vmem:[#allocation2] sm:$0xff]
    %v84 = vld [vmem:[#allocation2 + $0x8] sm:$0xff]
    %v85 = vld [vmem:[#allocation2 + $0x10] sm:$0xff]
    %v86 = vld [vmem:[#allocation2 + $0x18] sm:$0xff]
    %v87 = vld [vmem:[#allocation2 + $0x20] sm:$0xff]
    %v88 = vld [vmem:[#allocation2 + $0x28] sm:$0xff]
    %v89 = vld [vmem:[#allocation2 + $0x30] sm:$0xff]
    %v90 = vld [vmem:[#allocation2 + $0x38] sm:$0xff]
    %v91 = vld [vmem:[#allocation5] sm:$0xff]
    %v92 = vld [vmem:[#allocation5 + $0x8] sm:$0xff]
    %v93 = vld [vmem:[#allocation5 + $0x10] sm:$0xff]
    %v94 = vld [vmem:[#allocation5 + $0x18] sm:$0xff]
    %v95 = vld [vmem:[#allocation5 + $0x20] sm:$0xff]
    %v96 = vld [vmem:[#allocation5 + $0x28] sm:$0xff]
    %v97 = vld [vmem:[#allocation5 + $0x30] sm:$0xff]
    %v98 = vld [vmem:[#allocation5 + $0x38] sm:$0xff]
    %v99 = vld [vmem:[#allocation5 + $0x40] sm:$0xff]
    %v100 = vld [vmem:[#allocation5 + $0x48] sm:$0xff]
    %v101 = vld [vmem:[#allocation5 + $0x50] sm:$0xff]
    %v102 = vld [vmem:[#allocation5 + $0x58] sm:$0xff]
    %v103 = vld [vmem:[#allocation5 + $0x60] sm:$0xff]
    %v104 = vld [vmem:[#allocation5 + $0x68] sm:$0xff]
    %v105 = vld [vmem:[#allocation5 + $0x70] sm:$0xff]
    %v106 = vld [vmem:[#allocation5 + $0x78] sm:$0xff]
    %v107 = vld [vmem:[#allocation5 + $0x80] sm:$0xff]
    %v108 = vld [vmem:[#allocation5 + $0x88] sm:$0xff]
    %v109 = vld [vmem:[#allocation5 + $0x90] sm:$0xff]
    %v110 = vld [vmem:[#allocation5 + $0x98] sm:$0xff]
    %v111 = vld [vmem:[#allocation5 + $0xa0] sm:$0xff]
    %v112 = vld [vmem:[#allocation5 + $0xa8] sm:$0xff]
    %v113 = vld [vmem:[#allocation5 + $0xb0] sm:$0xff]
    %v114 = vld [vmem:[#allocation5 + $0xb8] sm:$0xff]
    %v115 = vld [vmem:[#allocation5 + $0xc0] sm:$0xff]
    %v116 = vld [vmem:[#allocation5 + $0xc8] sm:$0xff]
    %v117 = vld [vmem:[#allocation5 + $0xd0] sm:$0xff]
    %v118 = vld [vmem:[#allocation5 + $0xd8] sm:$0xff]
    %v119 = vld [vmem:[#allocation5 + $0xe0] sm:$0xff]
    %v120 = vld [vmem:[#allocation5 + $0xe8] sm:$0xff]
    %v121 = vld [vmem:[#allocation5 + $0xf0] sm:$0xff]
    %v122 = vld [vmem:[#allocation5 + $0xf8] sm:$0xff]
    %v123 = vld [vmem:[#allocation5 + $0x100] sm:$0xff]
    %v124 = vld [vmem:[#allocation5 + $0x108] sm:$0xff]
    %v125 = vld [vmem:[#allocation5 + $0x110] sm:$0xff]
    %v126 = vld [vmem:[#allocation5 + $0x118] sm:$0xff]
    %v127 = vld [vmem:[#allocation5 + $0x120] sm:$0xff]
    %v128 = vld [vmem:[#allocation5 + $0x128] sm:$0xff]
    %v129 = vld [vmem:[#allocation5 + $0x130] sm:$0xff]
    %v130 = vld [vmem:[#allocation5 + $0x138] sm:$0xff]
    %v131 = vld [vmem:[#allocation5 + $0x140] sm:$0xff]
    %v132 = vld [vmem:[#allocation5 + $0x148] sm:$0xff]
    %v133 = vld [vmem:[#allocation5 + $0x150] sm:$0xff]
    %v134 = vld [vmem:[#allocation5 + $0x158] sm:$0xff]
    %v135 = vld [vmem:[#allocation5 + $0x160] sm:$0xff]
    %v136 = vld [vmem:[#allocation5 + $0x168] sm:$0xff]
    %v137 = vld [vmem:[#allocation5 + $0x170] sm:$0xff]
    %v138 = vld [vmem:[#allocation5 + $0x178] sm:$0xff]
    %v139 = vld [vmem:[#allocation5 + $0x180] sm:$0xff]
    %v140 = vld [vmem:[#allocation5 + $0x188] sm:$0xff]
    %v141 = vld [vmem:[#allocation5 + $0x190] sm:$0xff]
    %v142 = vld [vmem:[#allocation5 + $0x198] sm:$0xff]
    %v143 = vld [vmem:[#allocation5 + $0x1a0] sm:$0xff]
    %v144 = vld [vmem:[#allocation5 + $0x1a8] sm:$0xff]
    %v145 = vld [vmem:[#allocation5 + $0x1b0] sm:$0xff]
    %v146 = vld [vmem:[#allocation5 + $0x1b8] sm:$0xff]
    %v147 = vld [vmem:[#allocation5 + $0x1c0] sm:$0xff]
    %v148 = vld [vmem:[#allocation5 + $0x1c8] sm:$0xff]
    %v149 = vld [vmem:[#allocation5 + $0x1d0] sm:$0xff]
    %v150 = vld [vmem:[#allocation5 + $0x1d8] sm:$0xff]
    %v151 = vld [vmem:[#allocation5 + $0x1e0] sm:$0xff]
    %v152 = vld [vmem:[#allocation5 + $0x1e8] sm:$0xff]
    %v153 = vld [vmem:[#allocation5 + $0x1f0] sm:$0xff]
    %v154 = vld [vmem:[#allocation5 + $0x1f8] sm:$0xff]
    %v155 = vld [vmem:[#allocation5 + $0x200] sm:$0xff]
    %v156 = vld [vmem:[#allocation5 + $0x208] sm:$0xff]
    %v157 = vld [vmem:[#allocation5 + $0x210] sm:$0xff]
    %v158 = vld [vmem:[#allocation5 + $0x218] sm:$0xff]
    %v159 = vld [vmem:[#allocation5 + $0x220] sm:$0xff]
    %v160 = vld [vmem:[#allocation5 + $0x228] sm:$0xff]
    %v161 = vld [vmem:[#allocation5 + $0x230] sm:$0xff]
    %v162 = vld [vmem:[#allocation5 + $0x238] sm:$0xff]
    %v163 = vld [vmem:[#allocation5 + $0x240] sm:$0xff]
    %v164 = vld [vmem:[#allocation5 + $0x248] sm:$0xff]
    %v165 = vld [vmem:[#allocation5 + $0x250] sm:$0xff]
    %v166 = vld [vmem:[#allocation5 + $0x258] sm:$0xff]
    %v167 = vld [vmem:[#allocation5 + $0x260] sm:$0xff]
    %v168 = vld [vmem:[#allocation5 + $0x268] sm:$0xff]
    %v169 = vld [vmem:[#allocation5 + $0x270] sm:$0xff]
    %v170 = vld [vmem:[#allocation5 + $0x278] sm:$0xff]
    %v171 = vld [vmem:[#allocation5 + $0x280] sm:$0xff]
    %v172 = vld [vmem:[#allocation5 + $0x288] sm:$0xff]
    %v173 = vld [vmem:[#allocation5 + $0x290] sm:$0xff]
    %v174 = vld [vmem:[#allocation5 + $0x298] sm:$0xff]
    %v175 = vld [vmem:[#allocation5 + $0x2a0] sm:$0xff]
    %v176 = vld [vmem:[#allocation5 + $0x2a8] sm:$0xff]
    %v177 = vld [vmem:[#allocation5 + $0x2b0] sm:$0xff]
    %v178 = vld [vmem:[#allocation5 + $0x2b8] sm:$0xff]
    %v179 = vld [vmem:[#allocation5 + $0x2c0] sm:$0xff]
    %v180 = vld [vmem:[#allocation5 + $0x2c8] sm:$0xff]
    %v181 = vld [vmem:[#allocation5 + $0x2d0] sm:$0xff]
    %v182 = vld [vmem:[#allocation5 + $0x2d8] sm:$0xff]
    %v183 = vld [vmem:[#allocation5 + $0x2e0] sm:$0xff]
    %v184 = vld [vmem:[#allocation5 + $0x2e8] sm:$0xff]
    %v185 = vld [vmem:[#allocation5 + $0x2f0] sm:$0xff]
    %v186 = vld [vmem:[#allocation5 + $0x2f8] sm:$0xff]
    %v187 = vld [vmem:[#allocation5 + $0x300] sm:$0xff]
    %v188 = vld [vmem:[#allocation5 + $0x308] sm:$0xff]
    %v189 = vld [vmem:[#allocation5 + $0x310] sm:$0xff]
    %v190 = vld [vmem:[#allocation5 + $0x318] sm:$0xff]
    %v191 = vld [vmem:[#allocation5 + $0x320] sm:$0xff]
    %v192 = vld [vmem:[#allocation5 + $0x328] sm:$0xff]
    %v193 = vld [vmem:[#allocation5 + $0x330] sm:$0xff]
    %v194 = vld [vmem:[#allocation5 + $0x338] sm:$0xff]
    %v195 = vld [vmem:[#allocation5 + $0x340] sm:$0xff]
    %v196 = vld [vmem:[#allocation5 + $0x348] sm:$0xff]
    %v197 = vld [vmem:[#allocation5 + $0x350] sm:$0xff]
    %v198 = vld [vmem:[#allocation5 + $0x358] sm:$0xff]
    %v199 = vld [vmem:[#allocation5 + $0x360] sm:$0xff]
    %v200 = vld [vmem:[#allocation5 + $0x368] sm:$0xff]
    %v201 = vld [vmem:[#allocation5 + $0x370] sm:$0xff]
    %v202 = vld [vmem:[#allocation5 + $0x378] sm:$0xff]
    %v203 = vld [vmem:[#allocation5 + $0x380] sm:$0xff]
    %v204 = vld [vmem:[#allocation5 + $0x388] sm:$0xff]
    %v205 = vld [vmem:[#allocation5 + $0x390] sm:$0xff]
    %v206 = vld [vmem:[#allocation5 + $0x398] sm:$0xff]
    %v207 = vld [vmem:[#allocation5 + $0x3a0] sm:$0xff]
    %v208 = vld [vmem:[#allocation5 + $0x3a8] sm:$0xff]
    %v209 = vld [vmem:[#allocation5 + $0x3b0] sm:$0xff]
    %v210 = vld [vmem:[#allocation5 + $0x3b8] sm:$0xff]
    %v211 = vld [vmem:[#allocation5 + $0x3c0] sm:$0xff]
    %v212 = vld [vmem:[#allocation5 + $0x3c8] sm:$0xff]
    %v213 = vld [vmem:[#allocation5 + $0x3d0] sm:$0xff]
    %v214 = vld [vmem:[#allocation5 + $0x3d8] sm:$0xff]
    %v215 = vld [vmem:[#allocation5 + $0x3e0] sm:$0xff]
    %v216 = vld [vmem:[#allocation5 + $0x3e8] sm:$0xff]
    %v217 = vld [vmem:[#allocation5 + $0x3f0] sm:$0xff]
    %v218 = vld [vmem:[#allocation5 + $0x3f8] sm:$0xff]
    %v219 = vld [vmem:[#allocation5 + $0x400] sm:$0xff]
    %v220 = vld [vmem:[#allocation5 + $0x408] sm:$0xff]
    %v221 = vld [vmem:[#allocation5 + $0x410] sm:$0xff]
    %v222 = vld [vmem:[#allocation5 + $0x418] sm:$0xff]
    %v223 = vld [vmem:[#allocation5 + $0x420] sm:$0xff]
    %v224 = vld [vmem:[#allocation5 + $0x428] sm:$0xff]
    %v225 = vld [vmem:[#allocation5 + $0x430] sm:$0xff]
    %v226 = vld [vmem:[#allocation5 + $0x438] sm:$0xff]
    %v227 = vld [vmem:[#allocation5 + $0x440] sm:$0xff]
    %v228 = vld [vmem:[#allocation5 + $0x448] sm:$0xff]
    %v229 = vld [vmem:[#allocation5 + $0x450] sm:$0xff]
    %v230 = vld [vmem:[#allocation5 + $0x458] sm:$0xff]
    %v231 = vld [vmem:[#allocation5 + $0x460] sm:$0xff]
    %v232 = vld [vmem:[#allocation5 + $0x468] sm:$0xff]
    %v233 = vld [vmem:[#allocation5 + $0x470] sm:$0xff]
    %v234 = vld [vmem:[#allocation5 + $0x478] sm:$0xff]
    %v235 = vld [vmem:[#allocation5 + $0x480] sm:$0xff]
    %v236 = vld [vmem:[#allocation5 + $0x488] sm:$0xff]
    %v237 = vld [vmem:[#allocation5 + $0x490] sm:$0xff]
    %v238 = vld [vmem:[#allocation5 + $0x498] sm:$0xff]
    %v239 = vld [vmem:[#allocation5 + $0x4a0] sm:$0xff]
    %v240 = vld [vmem:[#allocation5 + $0x4a8] sm:$0xff]
    %v241 = vld [vmem:[#allocation5 + $0x4b0] sm:$0xff]
    %v242 = vld [vmem:[#allocation5 + $0x4b8] sm:$0xff]
    %v243 = vld [vmem:[#allocation5 + $0x4c0] sm:$0xff]
    %v244 = vld [vmem:[#allocation5 + $0x4c8] sm:$0xff]
    %v245 = vld [vmem:[#allocation5 + $0x4d0] sm:$0xff]
    %v246 = vld [vmem:[#allocation5 + $0x4d8] sm:$0xff]
    %v247 = vld [vmem:[#allocation5 + $0x4e0] sm:$0xff]
    %v248 = vld [vmem:[#allocation5 + $0x4e8] sm:$0xff]
    %v249 = vld [vmem:[#allocation5 + $0x4f0] sm:$0xff]
    %v250 = vld [vmem:[#allocation5 + $0x4f8] sm:$0xff]
    %v251 = vld [vmem:[#allocation5 + $0x500] sm:$0xff]
    %v252 = vld [vmem:[#allocation5 + $0x508] sm:$0xff]
    %v253 = vld [vmem:[#allocation5 + $0x510] sm:$0xff]
    %v254 = vld [vmem:[#allocation5 + $0x518] sm:$0xff]
    %v255 = vld [vmem:[#allocation5 + $0x520] sm:$0xff]
    %v256 = vld [vmem:[#allocation5 + $0x528] sm:$0xff]
    %v257 = vld [vmem:[#allocation5 + $0x530] sm:$0xff]
    %v258 = vld [vmem:[#allocation5 + $0x538] sm:$0xff]
    %v259 = vld [vmem:[#allocation5 + $0x540] sm:$0xff]
    %v260 = vld [vmem:[#allocation5 + $0x548] sm:$0xff]
    %v261 = vld [vmem:[#allocation5 + $0x550] sm:$0xff]
    %v262 = vld [vmem:[#allocation5 + $0x558] sm:$0xff]
    %v263 = vld [vmem:[#allocation5 + $0x560] sm:$0xff]
    %v264 = vld [vmem:[#allocation5 + $0x568] sm:$0xff]
    %v265 = vld [vmem:[#allocation5 + $0x570] sm:$0xff]
    %v266 = vld [vmem:[#allocation5 + $0x578] sm:$0xff]
    %v267 = vld [vmem:[#allocation5 + $0x580] sm:$0xff]
    %v268 = vld [vmem:[#allocation5 + $0x588] sm:$0xff]
    %v269 = vld [vmem:[#allocation5 + $0x590] sm:$0xff]
    %v270 = vld [vmem:[#allocation5 + $0x598] sm:$0xff]
    %v271 = vld [vmem:[#allocation5 + $0x5a0] sm:$0xff]
    %v272 = vld [vmem:[#allocation5 + $0x5a8] sm:$0xff]
    %v273 = vld [vmem:[#allocation5 + $0x5b0] sm:$0xff]
    %v274 = vld [vmem:[#allocation5 + $0x5b8] sm:$0xff]
    %v275 = vld [vmem:[#allocation5 + $0x5c0] sm:$0xff]
    %v276 = vld [vmem:[#allocation5 + $0x5c8] sm:$0xff]
    %v277 = vld [vmem:[#allocation5 + $0x5d0] sm:$0xff]
    %v278 = vld [vmem:[#allocation5 + $0x5d8] sm:$0xff]
    %v279 = vld [vmem:[#allocation5 + $0x5e0] sm:$0xff]
    %v280 = vld [vmem:[#allocation5 + $0x5e8] sm:$0xff]
    %v281 = vld [vmem:[#allocation5 + $0x5f0] sm:$0xff]
    %v282 = vld [vmem:[#allocation5 + $0x5f8] sm:$0xff]
    %v283 = vld [vmem:[#allocation5 + $0x600] sm:$0xff]
    %v284 = vld [vmem:[#allocation5 + $0x608] sm:$0xff]
    %v285 = vld [vmem:[#allocation5 + $0x610] sm:$0xff]
    %v286 = vld [vmem:[#allocation5 + $0x618] sm:$0xff]
    %v287 = vld [vmem:[#allocation5 + $0x620] sm:$0xff]
    %v288 = vld [vmem:[#allocation5 + $0x628] sm:$0xff]
    %v289 = vld [vmem:[#allocation5 + $0x630] sm:$0xff]
    %v290 = vld [vmem:[#allocation5 + $0x638] sm:$0xff]
    %v291 = vld [vmem:[#allocation5 + $0x640] sm:$0xff]
    %v292 = vld [vmem:[#allocation5 + $0x648] sm:$0xff]
    %v293 = vld [vmem:[#allocation5 + $0x650] sm:$0xff]
    %v294 = vld [vmem:[#allocation5 + $0x658] sm:$0xff]
    %v295 = vld [vmem:[#allocation5 + $0x660] sm:$0xff]
    %v296 = vld [vmem:[#allocation5 + $0x668] sm:$0xff]
    %v297 = vld [vmem:[#allocation5 + $0x670] sm:$0xff]
    %v298 = vld [vmem:[#allocation5 + $0x678] sm:$0xff]
    %v299 = vld [vmem:[#allocation5 + $0x680] sm:$0xff]
    %v300 = vld [vmem:[#allocation5 + $0x688] sm:$0xff]
    %v301 = vld [vmem:[#allocation5 + $0x690] sm:$0xff]
    %v302 = vld [vmem:[#allocation5 + $0x698] sm:$0xff]
    %v303 = vld [vmem:[#allocation5 + $0x6a0] sm:$0xff]
    %v304 = vld [vmem:[#allocation5 + $0x6a8] sm:$0xff]
    %v305 = vld [vmem:[#allocation5 + $0x6b0] sm:$0xff]
    %v306 = vld [vmem:[#allocation5 + $0x6b8] sm:$0xff]
    %v307 = vld [vmem:[#allocation5 + $0x6c0] sm:$0xff]
    %v308 = vld [vmem:[#allocation5 + $0x6c8] sm:$0xff]
    %v309 = vld [vmem:[#allocation5 + $0x6d0] sm:$0xff]
    %v310 = vld [vmem:[#allocation5 + $0x6d8] sm:$0xff]
    %v311 = vld [vmem:[#allocation5 + $0x6e0] sm:$0xff]
    %v312 = vld [vmem:[#allocation5 + $0x6e8] sm:$0xff]
    %v313 = vld [vmem:[#allocation5 + $0x6f0] sm:$0xff]
    %v314 = vld [vmem:[#allocation5 + $0x6f8] sm:$0xff]
    %v315 = vld [vmem:[#allocation5 + $0x700] sm:$0xff]
    %v316 = vld [vmem:[#allocation5 + $0x708] sm:$0xff]
    %v317 = vld [vmem:[#allocation5 + $0x710] sm:$0xff]
    %v318 = vld [vmem:[#allocation5 + $0x718] sm:$0xff]
    %v319 = vld [vmem:[#allocation5 + $0x720] sm:$0xff]
    %v320 = vld [vmem:[#allocation5 + $0x728] sm:$0xff]
    %v321 = vld [vmem:[#allocation5 + $0x730] sm:$0xff]
    %v322 = vld [vmem:[#allocation5 + $0x738] sm:$0xff]
    %v323 = vld [vmem:[#allocation5 + $0x740] sm:$0xff]
    %v324 = vld [vmem:[#allocation5 + $0x748] sm:$0xff]
    %v325 = vld [vmem:[#allocation5 + $0x750] sm:$0xff]
    %v326 = vld [vmem:[#allocation5 + $0x758] sm:$0xff]
    %v327 = vld [vmem:[#allocation5 + $0x760] sm:$0xff]
    %v328 = vld [vmem:[#allocation5 + $0x768] sm:$0xff]
    %v329 = vld [vmem:[#allocation5 + $0x770] sm:$0xff]
    %v330 = vld [vmem:[#allocation5 + $0x778] sm:$0xff]
    %v331 = vld [vmem:[#allocation5 + $0x780] sm:$0xff]
    %v332 = vld [vmem:[#allocation5 + $0x788] sm:$0xff]
    %v333 = vld [vmem:[#allocation5 + $0x790] sm:$0xff]
    %v334 = vld [vmem:[#allocation5 + $0x798] sm:$0xff]
    %v335 = vld [vmem:[#allocation5 + $0x7a0] sm:$0xff]
    %v336 = vld [vmem:[#allocation5 + $0x7a8] sm:$0xff]
    %v337 = vld [vmem:[#allocation5 + $0x7b0] sm:$0xff]
    %v338 = vld [vmem:[#allocation5 + $0x7b8] sm:$0xff]
    %v339 = vld [vmem:[#allocation5 + $0x7c0] sm:$0xff]
    %v340 = vld [vmem:[#allocation5 + $0x7c8] sm:$0xff]
    %v341 = vld [vmem:[#allocation5 + $0x7d0] sm:$0xff]
    %v342 = vld [vmem:[#allocation5 + $0x7d8] sm:$0xff]
    %v343 = vld [vmem:[#allocation5 + $0x7e0] sm:$0xff]
    %v344 = vld [vmem:[#allocation5 + $0x7e8] sm:$0xff]
    %v345 = vld [vmem:[#allocation5 + $0x7f0] sm:$0xff]
    %v346 = vld [vmem:[#allocation5 + $0x7f8] sm:$0xff]
    %v347 = vld [vmem:[#allocation5 + $0x800] sm:$0xff]
    %v348 = vld [vmem:[#allocation5 + $0x808] sm:$0xff]
    %v349 = vld [vmem:[#allocation5 + $0x810] sm:$0xff]
    %v350 = vld [vmem:[#allocation5 + $0x818] sm:$0xff]
    %v351 = vld [vmem:[#allocation5 + $0x820] sm:$0xff]
    %v352 = vld [vmem:[#allocation5 + $0x828] sm:$0xff]
    %v353 = vld [vmem:[#allocation5 + $0x830] sm:$0xff]
    %v354 = vld [vmem:[#allocation5 + $0x838] sm:$0xff]
    %v355 = vld [vmem:[#allocation5 + $0x840] sm:$0xff]
    %v356 = vld [vmem:[#allocation5 + $0x848] sm:$0xff]
    %v357 = vld [vmem:[#allocation5 + $0x850] sm:$0xff]
    %v358 = vld [vmem:[#allocation5 + $0x858] sm:$0xff]
    %v359 = vld [vmem:[#allocation5 + $0x860] sm:$0xff]
    %v360 = vld [vmem:[#allocation5 + $0x868] sm:$0xff]
    %v361 = vld [vmem:[#allocation5 + $0x870] sm:$0xff]
    %v362 = vld [vmem:[#allocation5 + $0x878] sm:$0xff]
    %v363 = vld [vmem:[#allocation5 + $0x880] sm:$0xff]
    %v364 = vld [vmem:[#allocation5 + $0x888] sm:$0xff]
    %v365 = vld [vmem:[#allocation5 + $0x890] sm:$0xff]
    %v366 = vld [vmem:[#allocation5 + $0x898] sm:$0xff]
    %v367 = vld [vmem:[#allocation5 + $0x8a0] sm:$0xff]
    %v368 = vld [vmem:[#allocation5 + $0x8a8] sm:$0xff]
    %v369 = vld [vmem:[#allocation5 + $0x8b0] sm:$0xff]
    %v370 = vld [vmem:[#allocation5 + $0x8b8] sm:$0xff]
    %v371 = vld [vmem:[#allocation5 + $0x8c0] sm:$0xff]
    %v372 = vld [vmem:[#allocation5 + $0x8c8] sm:$0xff]
    %v373 = vld [vmem:[#allocation5 + $0x8d0] sm:$0xff]
    %v374 = vld [vmem:[#allocation5 + $0x8d8] sm:$0xff]
    %v375 = vld [vmem:[#allocation5 + $0x8e0] sm:$0xff]
    %v376 = vld [vmem:[#allocation5 + $0x8e8] sm:$0xff]
    %v377 = vld [vmem:[#allocation5 + $0x8f0] sm:$0xff]
    %v378 = vld [vmem:[#allocation5 + $0x8f8] sm:$0xff]
    %v379 = vld [vmem:[#allocation5 + $0x900] sm:$0xff]
    %v380 = vld [vmem:[#allocation5 + $0x908] sm:$0xff]
    %v381 = vld [vmem:[#allocation5 + $0x910] sm:$0xff]
    %v382 = vld [vmem:[#allocation5 + $0x918] sm:$0xff]
    %v383 = vld [vmem:[#allocation5 + $0x920] sm:$0xff]
    %v384 = vld [vmem:[#allocation5 + $0x928] sm:$0xff]
    %v385 = vld [vmem:[#allocation5 + $0x930] sm:$0xff]
    %v386 = vld [vmem:[#allocation5 + $0x938] sm:$0xff]
    %v387 = vld [vmem:[#allocation5 + $0x940] sm:$0xff]
    %v388 = vld [vmem:[#allocation5 + $0x948] sm:$0xff]
    %v389 = vld [vmem:[#allocation5 + $0x950] sm:$0xff]
    %v390 = vld [vmem:[#allocation5 + $0x958] sm:$0xff]
    %v391 = vld [vmem:[#allocation5 + $0x960] sm:$0xff]
    %v392 = vld [vmem:[#allocation5 + $0x968] sm:$0xff]
    %v393 = vld [vmem:[#allocation5 + $0x970] sm:$0xff]
    %v394 = vld [vmem:[#allocation5 + $0x978] sm:$0xff]
    %v395 = vld [vmem:[#allocation5 + $0x980] sm:$0xff]
    %v396 = vld [vmem:[#allocation5 + $0x988] sm:$0xff]
    %v397 = vld [vmem:[#allocation5 + $0x990] sm:$0xff]
    %v398 = vld [vmem:[#allocation5 + $0x998] sm:$0xff]
    %v399 = vld [vmem:[#allocation5 + $0x9a0] sm:$0xff]
    %v400 = vld [vmem:[#allocation5 + $0x9a8] sm:$0xff]
    %v401 = vld [vmem:[#allocation5 + $0x9b0] sm:$0xff]
    %v402 = vld [vmem:[#allocation5 + $0x9b8] sm:$0xff]
    %v403 = vld [vmem:[#allocation5 + $0x9c0] sm:$0xff]
    %v404 = vld [vmem:[#allocation5 + $0x9c8] sm:$0xff]
    %v405 = vld [vmem:[#allocation5 + $0x9d0] sm:$0xff]
    %v406 = vld [vmem:[#allocation5 + $0x9d8] sm:$0xff]
    %v407 = vld [vmem:[#allocation5 + $0x9e0] sm:$0xff]
    %v408 = vld [vmem:[#allocation5 + $0x9e8] sm:$0xff]
    %v409 = vld [vmem:[#allocation5 + $0x9f0] sm:$0xff]
    %v410 = vld [vmem:[#allocation5 + $0x9f8] sm:$0xff]
    %v411 = vld [vmem:[#allocation5 + $0xa00] sm:$0xff]
    %v412 = vld [vmem:[#allocation5 + $0xa08] sm:$0xff]
    %v413 = vld [vmem:[#allocation5 + $0xa10] sm:$0xff]
    %v414 = vld [vmem:[#allocation5 + $0xa18] sm:$0xff]
    %v415 = vld [vmem:[#allocation5 + $0xa20] sm:$0xff]
    %v416 = vld [vmem:[#allocation5 + $0xa28] sm:$0xff]
    %v417 = vld [vmem:[#allocation5 + $0xa30] sm:$0xff]
    %v418 = vld [vmem:[#allocation5 + $0xa38] sm:$0xff]
    %v419 = vld [vmem:[#allocation5 + $0xa40] sm:$0xff]
    %v420 = vld [vmem:[#allocation5 + $0xa48] sm:$0xff]
    %v421 = vld [vmem:[#allocation5 + $0xa50] sm:$0xff]
    %v422 = vld [vmem:[#allocation5 + $0xa58] sm:$0xff]
    %v423 = vld [vmem:[#allocation5 + $0xa60] sm:$0xff]
    %v424 = vld [vmem:[#allocation5 + $0xa68] sm:$0xff]
    %v425 = vld [vmem:[#allocation5 + $0xa70] sm:$0xff]
    %v426 = vld [vmem:[#allocation5 + $0xa78] sm:$0xff]
    %v427 = vld [vmem:[#allocation5 + $0xa80] sm:$0xff]
    %v428 = vld [vmem:[#allocation5 + $0xa88] sm:$0xff]
    %v429 = vld [vmem:[#allocation5 + $0xa90] sm:$0xff]
    %v430 = vld [vmem:[#allocation5 + $0xa98] sm:$0xff]
    %v431 = vld [vmem:[#allocation5 + $0xaa0] sm:$0xff]
    %v432 = vld [vmem:[#allocation5 + $0xaa8] sm:$0xff]
    %v433 = vld [vmem:[#allocation5 + $0xab0] sm:$0xff]
    %v434 = vld [vmem:[#allocation5 + $0xab8] sm:$0xff]
    %v435 = vld [vmem:[#allocation5 + $0xac0] sm:$0xff]
    %v436 = vld [vmem:[#allocation5 + $0xac8] sm:$0xff]
    %v437 = vld [vmem:[#allocation5 + $0xad0] sm:$0xff]
    %v438 = vld [vmem:[#allocation5 + $0xad8] sm:$0xff]
    %v439 = vld [vmem:[#allocation5 + $0xae0] sm:$0xff]
    %v440 = vld [vmem:[#allocation5 + $0xae8] sm:$0xff]
    %v441 = vld [vmem:[#allocation5 + $0xaf0] sm:$0xff]
    %v442 = vld [vmem:[#allocation5 + $0xaf8] sm:$0xff]
    %v443 = vld [vmem:[#allocation5 + $0xb00] sm:$0xff]
    %v444 = vld [vmem:[#allocation5 + $0xb08] sm:$0xff]
    %v445 = vld [vmem:[#allocation5 + $0xb10] sm:$0xff]
    %v446 = vld [vmem:[#allocation5 + $0xb18] sm:$0xff]
    %v447 = vld [vmem:[#allocation5 + $0xb20] sm:$0xff]
    %v448 = vld [vmem:[#allocation5 + $0xb28] sm:$0xff]
    %v449 = vld [vmem:[#allocation5 + $0xb30] sm:$0xff]
    %v450 = vld [vmem:[#allocation5 + $0xb38] sm:$0xff]
    %v451 = vld [vmem:[#allocation5 + $0xb40] sm:$0xff]
    %v452 = vld [vmem:[#allocation5 + $0xb48] sm:$0xff]
    %v453 = vld [vmem:[#allocation5 + $0xb50] sm:$0xff]
    %v454 = vld [vmem:[#allocation5 + $0xb58] sm:$0xff]
    %v455 = vld [vmem:[#allocation5 + $0xb60] sm:$0xff]
    %v456 = vld [vmem:[#allocation5 + $0xb68] sm:$0xff]
    %v457 = vld [vmem:[#allocation5 + $0xb70] sm:$0xff]
    %v458 = vld [vmem:[#allocation5 + $0xb78] sm:$0xff]
    %v459 = vld [vmem:[#allocation5 + $0xb80] sm:$0xff]
    %v460 = vld [vmem:[#allocation5 + $0xb88] sm:$0xff]
    %v461 = vld [vmem:[#allocation5 + $0xb90] sm:$0xff]
    %v462 = vld [vmem:[#allocation5 + $0xb98] sm:$0xff]
    %v463 = vld [vmem:[#allocation5 + $0xba0] sm:$0xff]
    %v464 = vld [vmem:[#allocation5 + $0xba8] sm:$0xff]
    %v465 = vld [vmem:[#allocation5 + $0xbb0] sm:$0xff]
    %v466 = vld [vmem:[#allocation5 + $0xbb8] sm:$0xff]
    %v467 = vld [vmem:[#allocation5 + $0xbc0] sm:$0xff]
    %v468 = vld [vmem:[#allocation5 + $0xbc8] sm:$0xff]
    %v469 = vld [vmem:[#allocation5 + $0xbd0] sm:$0xff]
    %v470 = vld [vmem:[#allocation5 + $0xbd8] sm:$0xff]
    %v471 = vld [vmem:[#allocation5 + $0xbe0] sm:$0xff]
    %v472 = vld [vmem:[#allocation5 + $0xbe8] sm:$0xff]
    %v473 = vld [vmem:[#allocation5 + $0xbf0] sm:$0xff]
    %v474 = vld [vmem:[#allocation5 + $0xbf8] sm:$0xff]
    %v475 = vld [vmem:[#allocation5 + $0xc00] sm:$0xff]
    %v476 = vld [vmem:[#allocation5 + $0xc08] sm:$0xff]
    %v477 = vld [vmem:[#allocation5 + $0xc10] sm:$0xff]
    %v478 = vld [vmem:[#allocation5 + $0xc18] sm:$0xff]
    %v479 = vld [vmem:[#allocation5 + $0xc20] sm:$0xff]
    %v480 = vld [vmem:[#allocation5 + $0xc28] sm:$0xff]
    %v481 = vld [vmem:[#allocation5 + $0xc30] sm:$0xff]
    %v482 = vld [vmem:[#allocation5 + $0xc38] sm:$0xff]
    %v483 = vld [vmem:[#allocation5 + $0xc40] sm:$0xff]
    %v484 = vld [vmem:[#allocation5 + $0xc48] sm:$0xff]
    %v485 = vld [vmem:[#allocation5 + $0xc50] sm:$0xff]
    %v486 = vld [vmem:[#allocation5 + $0xc58] sm:$0xff]
    %v487 = vld [vmem:[#allocation5 + $0xc60] sm:$0xff]
    %v488 = vld [vmem:[#allocation5 + $0xc68] sm:$0xff]
    %v489 = vld [vmem:[#allocation5 + $0xc70] sm:$0xff]
    %v490 = vld [vmem:[#allocation5 + $0xc78] sm:$0xff]
    %v491 = vld [vmem:[#allocation5 + $0xc80] sm:$0xff]
    %v492 = vld [vmem:[#allocation5 + $0xc88] sm:$0xff]
    %v493 = vld [vmem:[#allocation5 + $0xc90] sm:$0xff]
    %v494 = vld [vmem:[#allocation5 + $0xc98] sm:$0xff]
    %v495 = vld [vmem:[#allocation5 + $0xca0] sm:$0xff]
    %v496 = vld [vmem:[#allocation5 + $0xca8] sm:$0xff]
    %v497 = vld [vmem:[#allocation5 + $0xcb0] sm:$0xff]
    %v498 = vld [vmem:[#allocation5 + $0xcb8] sm:$0xff]
    %v499 = vld [vmem:[#allocation5 + $0xcc0] sm:$0xff]
    %v500 = vld [vmem:[#allocation5 + $0xcc8] sm:$0xff]
    %v501 = vld [vmem:[#allocation5 + $0xcd0] sm:$0xff]
    %v502 = vld [vmem:[#allocation5 + $0xcd8] sm:$0xff]
    %v503 = vld [vmem:[#allocation5 + $0xce0] sm:$0xff]
    %v504 = vld [vmem:[#allocation5 + $0xce8] sm:$0xff]
    %v505 = vld [vmem:[#allocation5 + $0xcf0] sm:$0xff]
    %v506 = vld [vmem:[#allocation5 + $0xcf8] sm:$0xff]
    %v507 = vld [vmem:[#allocation5 + $0xd00] sm:$0xff]
    %v508 = vld [vmem:[#allocation5 + $0xd08] sm:$0xff]
    %v509 = vld [vmem:[#allocation5 + $0xd10] sm:$0xff]
    %v510 = vld [vmem:[#allocation5 + $0xd18] sm:$0xff]
    %v511 = vld [vmem:[#allocation5 + $0xd20] sm:$0xff]
    %v512 = vld [vmem:[#allocation5 + $0xd28] sm:$0xff]
    %v513 = vld [vmem:[#allocation5 + $0xd30] sm:$0xff]
    %v514 = vld [vmem:[#allocation5 + $0xd38] sm:$0xff]
    %v515 = vld [vmem:[#allocation5 + $0xd40] sm:$0xff]
    %v516 = vld [vmem:[#allocation5 + $0xd48] sm:$0xff]
    %v517 = vld [vmem:[#allocation5 + $0xd50] sm:$0xff]
    %v518 = vld [vmem:[#allocation5 + $0xd58] sm:$0xff]
    %v519 = vld [vmem:[#allocation5 + $0xd60] sm:$0xff]
    %v520 = vld [vmem:[#allocation5 + $0xd68] sm:$0xff]
    %v521 = vld [vmem:[#allocation5 + $0xd70] sm:$0xff]
    %v522 = vld [vmem:[#allocation5 + $0xd78] sm:$0xff]
    %v523 = vld [vmem:[#allocation5 + $0xd80] sm:$0xff]
    %v524 = vld [vmem:[#allocation5 + $0xd88] sm:$0xff]
    %v525 = vld [vmem:[#allocation5 + $0xd90] sm:$0xff]
    %v526 = vld [vmem:[#allocation5 + $0xd98] sm:$0xff]
    %v527 = vld [vmem:[#allocation5 + $0xda0] sm:$0xff]
    %v528 = vld [vmem:[#allocation5 + $0xda8] sm:$0xff]
    %v529 = vld [vmem:[#allocation5 + $0xdb0] sm:$0xff]
    %v530 = vld [vmem:[#allocation5 + $0xdb8] sm:$0xff]
    %v531 = vld [vmem:[#allocation5 + $0xdc0] sm:$0xff]
    %v532 = vld [vmem:[#allocation5 + $0xdc8] sm:$0xff]
    %v533 = vld [vmem:[#allocation5 + $0xdd0] sm:$0xff]
    %v534 = vld [vmem:[#allocation5 + $0xdd8] sm:$0xff]
    %v535 = vld [vmem:[#allocation5 + $0xde0] sm:$0xff]
    %v536 = vld [vmem:[#allocation5 + $0xde8] sm:$0xff]
    %v537 = vld [vmem:[#allocation5 + $0xdf0] sm:$0xff]
    %v538 = vld [vmem:[#allocation5 + $0xdf8] sm:$0xff]
    %v539 = vld [vmem:[#allocation5 + $0xe00] sm:$0xff]
    %v540 = vld [vmem:[#allocation5 + $0xe08] sm:$0xff]
    %v541 = vld [vmem:[#allocation5 + $0xe10] sm:$0xff]
    %v542 = vld [vmem:[#allocation5 + $0xe18] sm:$0xff]
    %v543 = vld [vmem:[#allocation5 + $0xe20] sm:$0xff]
    %v544 = vld [vmem:[#allocation5 + $0xe28] sm:$0xff]
    %v545 = vld [vmem:[#allocation5 + $0xe30] sm:$0xff]
    %v546 = vld [vmem:[#allocation5 + $0xe38] sm:$0xff]
    %v547 = vld [vmem:[#allocation5 + $0xe40] sm:$0xff]
    %v548 = vld [vmem:[#allocation5 + $0xe48] sm:$0xff]
    %v549 = vld [vmem:[#allocation5 + $0xe50] sm:$0xff]
    %v550 = vld [vmem:[#allocation5 + $0xe58] sm:$0xff]
    %v551 = vld [vmem:[#allocation5 + $0xe60] sm:$0xff]
    %v552 = vld [vmem:[#allocation5 + $0xe68] sm:$0xff]
    %v553 = vld [vmem:[#allocation5 + $0xe70] sm:$0xff]
    %v554 = vld [vmem:[#allocation5 + $0xe78] sm:$0xff]
    %v555 = vld [vmem:[#allocation5 + $0xe80] sm:$0xff]
    %v556 = vld [vmem:[#allocation5 + $0xe88] sm:$0xff]
    %v557 = vld [vmem:[#allocation5 + $0xe90] sm:$0xff]
    %v558 = vld [vmem:[#allocation5 + $0xe98] sm:$0xff]
    %v559 = vld [vmem:[#allocation5 + $0xea0] sm:$0xff]
    %v560 = vld [vmem:[#allocation5 + $0xea8] sm:$0xff]
    %v561 = vld [vmem:[#allocation5 + $0xeb0] sm:$0xff]
    %v562 = vld [vmem:[#allocation5 + $0xeb8] sm:$0xff]
    %v563 = vld [vmem:[#allocation5 + $0xec0] sm:$0xff]
    %v564 = vld [vmem:[#allocation5 + $0xec8] sm:$0xff]
    %v565 = vld [vmem:[#allocation5 + $0xed0] sm:$0xff]
    %v566 = vld [vmem:[#allocation5 + $0xed8] sm:$0xff]
    %v567 = vld [vmem:[#allocation5 + $0xee0] sm:$0xff]
    %v568 = vld [vmem:[#allocation5 + $0xee8] sm:$0xff]
    %v569 = vld [vmem:[#allocation5 + $0xef0] sm:$0xff]
    %v570 = vld [vmem:[#allocation5 + $0xef8] sm:$0xff]
    %v571 = vld [vmem:[#allocation5 + $0xf00] sm:$0xff]
    %v572 = vld [vmem:[#allocation5 + $0xf08] sm:$0xff]
    %v573 = vld [vmem:[#allocation5 + $0xf10] sm:$0xff]
    %v574 = vld [vmem:[#allocation5 + $0xf18] sm:$0xff]
    %v575 = vld [vmem:[#allocation5 + $0xf20] sm:$0xff]
    %v576 = vld [vmem:[#allocation5 + $0xf28] sm:$0xff]
    %v577 = vld [vmem:[#allocation5 + $0xf30] sm:$0xff]
    %v578 = vld [vmem:[#allocation5 + $0xf38] sm:$0xff]
    %v579 = vld [vmem:[#allocation5 + $0xf40] sm:$0xff]
    %v580 = vld [vmem:[#allocation5 + $0xf48] sm:$0xff]
    %v581 = vld [vmem:[#allocation5 + $0xf50] sm:$0xff]
    %v582 = vld [vmem:[#allocation5 + $0xf58] sm:$0xff]
    %v583 = vld [vmem:[#allocation5 + $0xf60] sm:$0xff]
    %v584 = vld [vmem:[#allocation5 + $0xf68] sm:$0xff]
    %v585 = vld [vmem:[#allocation5 + $0xf70] sm:$0xff]
    %v586 = vld [vmem:[#allocation5 + $0xf78] sm:$0xff]
    %v587 = vld [vmem:[#allocation5 + $0xf80] sm:$0xff]
    %v588 = vld [vmem:[#allocation5 + $0xf88] sm:$0xff]
    %v589 = vld [vmem:[#allocation5 + $0xf90] sm:$0xff]
    %v590 = vld [vmem:[#allocation5 + $0xf98] sm:$0xff]
    %v591 = vld [vmem:[#allocation5 + $0xfa0] sm:$0xff]
    %v592 = vld [vmem:[#allocation5 + $0xfa8] sm:$0xff]
    %v593 = vld [vmem:[#allocation5 + $0xfb0] sm:$0xff]
    %v594 = vld [vmem:[#allocation5 + $0xfb8] sm:$0xff]
    %v595 = vld [vmem:[#allocation5 + $0xfc0] sm:$0xff]
    %v596 = vld [vmem:[#allocation5 + $0xfc8] sm:$0xff]
    %v597 = vld [vmem:[#allocation5 + $0xfd0] sm:$0xff]
    %v598 = vld [vmem:[#allocation5 + $0xfd8] sm:$0xff]
    %v599 = vld [vmem:[#allocation5 + $0xfe0] sm:$0xff]
    %v600 = vld [vmem:[#allocation5 + $0xfe8] sm:$0xff]
    %v601 = vld [vmem:[#allocation5 + $0xff0] sm:$0xff]
    %v602 = vld [vmem:[#allocation5 + $0xff8] sm:$0xff]
    %v603 = vld [vmem:[#allocation5 + $0x1000] sm:$0xff]
    %v604 = vld [vmem:[#allocation5 + $0x1008] sm:$0xff]
    %v605 = vld [vmem:[#allocation5 + $0x1010] sm:$0xff]
    %v606 = vld [vmem:[#allocation5 + $0x1018] sm:$0xff]
    %v607 = vld [vmem:[#allocation5 + $0x1020] sm:$0xff]
    %v608 = vld [vmem:[#allocation5 + $0x1028] sm:$0xff]
    %v609 = vld [vmem:[#allocation5 + $0x1030] sm:$0xff]
    %v610 = vld [vmem:[#allocation5 + $0x1038] sm:$0xff]
    %v611 = vld [vmem:[#allocation5 + $0x1040] sm:$0xff]
    %v612 = vld [vmem:[#allocation5 + $0x1048] sm:$0xff]
    %v613 = vld [vmem:[#allocation5 + $0x1050] sm:$0xff]
    %v614 = vld [vmem:[#allocation5 + $0x1058] sm:$0xff]
    %v615 = vld [vmem:[#allocation5 + $0x1060] sm:$0xff]
    %v616 = vld [vmem:[#allocation5 + $0x1068] sm:$0xff]
    %v617 = vld [vmem:[#allocation5 + $0x1070] sm:$0xff]
    %v618 = vld [vmem:[#allocation5 + $0x1078] sm:$0xff]
    %v619 = vld [vmem:[#allocation5 + $0x1080] sm:$0xff]
    %v620 = vld [vmem:[#allocation5 + $0x1088] sm:$0xff]
    %v621 = vld [vmem:[#allocation5 + $0x1090] sm:$0xff]
    %v622 = vld [vmem:[#allocation5 + $0x1098] sm:$0xff]
    %v623 = vld [vmem:[#allocation5 + $0x10a0] sm:$0xff]
    %v624 = vld [vmem:[#allocation5 + $0x10a8] sm:$0xff]
    %v625 = vld [vmem:[#allocation5 + $0x10b0] sm:$0xff]
    %v626 = vld [vmem:[#allocation5 + $0x10b8] sm:$0xff]
    %v627 = vld [vmem:[#allocation5 + $0x10c0] sm:$0xff]
    %v628 = vld [vmem:[#allocation5 + $0x10c8] sm:$0xff]
    %v629 = vld [vmem:[#allocation5 + $0x10d0] sm:$0xff]
    %v630 = vld [vmem:[#allocation5 + $0x10d8] sm:$0xff]
    %v631 = vld [vmem:[#allocation5 + $0x10e0] sm:$0xff]
    %v632 = vld [vmem:[#allocation5 + $0x10e8] sm:$0xff]
    %v633 = vld [vmem:[#allocation5 + $0x10f0] sm:$0xff]
    %v634 = vld [vmem:[#allocation5 + $0x10f8] sm:$0xff]
    %v635 = vld [vmem:[#allocation5 + $0x1100] sm:$0xff]
    %v636 = vld [vmem:[#allocation5 + $0x1108] sm:$0xff]
    %v637 = vld [vmem:[#allocation5 + $0x1110] sm:$0xff]
    %v638 = vld [vmem:[#allocation5 + $0x1118] sm:$0xff]
    %v639 = vld [vmem:[#allocation5 + $0x1120] sm:$0xff]
    %v640 = vld [vmem:[#allocation5 + $0x1128] sm:$0xff]
    %v641 = vld [vmem:[#allocation5 + $0x1130] sm:$0xff]
    %v642 = vld [vmem:[#allocation5 + $0x1138] sm:$0xff]
    %v643 = vld [vmem:[#allocation5 + $0x1140] sm:$0xff]
    %v644 = vld [vmem:[#allocation5 + $0x1148] sm:$0xff]
    %v645 = vld [vmem:[#allocation5 + $0x1150] sm:$0xff]
    %v646 = vld [vmem:[#allocation5 + $0x1158] sm:$0xff]
    %v647 = vld [vmem:[#allocation5 + $0x1160] sm:$0xff]
    %v648 = vld [vmem:[#allocation5 + $0x1168] sm:$0xff]
    %v649 = vld [vmem:[#allocation5 + $0x1170] sm:$0xff]
    %v650 = vld [vmem:[#allocation5 + $0x1178] sm:$0xff]
    %v651 = vld [vmem:[#allocation5 + $0x1180] sm:$0xff]
    %v652 = vld [vmem:[#allocation5 + $0x1188] sm:$0xff]
    %v653 = vld [vmem:[#allocation5 + $0x1190] sm:$0xff]
    %v654 = vld [vmem:[#allocation5 + $0x1198] sm:$0xff]
    %v655 = vld [vmem:[#allocation5 + $0x11a0] sm:$0xff]
    %v656 = vld [vmem:[#allocation5 + $0x11a8] sm:$0xff]
    %v657 = vld [vmem:[#allocation5 + $0x11b0] sm:$0xff]
    %v658 = vld [vmem:[#allocation5 + $0x11b8] sm:$0xff]
    %v659 = vld [vmem:[#allocation5 + $0x11c0] sm:$0xff]
    %v660 = vld [vmem:[#allocation5 + $0x11c8] sm:$0xff]
    %v661 = vld [vmem:[#allocation5 + $0x11d0] sm:$0xff]
    %v662 = vld [vmem:[#allocation5 + $0x11d8] sm:$0xff]
    %v663 = vld [vmem:[#allocation5 + $0x11e0] sm:$0xff]
    %v664 = vld [vmem:[#allocation5 + $0x11e8] sm:$0xff]
    %v665 = vld [vmem:[#allocation5 + $0x11f0] sm:$0xff]
    %v666 = vld [vmem:[#allocation5 + $0x11f8] sm:$0xff]
    %v667 = vld [vmem:[#allocation5 + $0x1200] sm:$0xff]
    %v668 = vld [vmem:[#allocation5 + $0x1208] sm:$0xff]
    %v669 = vld [vmem:[#allocation5 + $0x1210] sm:$0xff]
    %v670 = vld [vmem:[#allocation5 + $0x1218] sm:$0xff]
    %v671 = vld [vmem:[#allocation5 + $0x1220] sm:$0xff]
    %v672 = vld [vmem:[#allocation5 + $0x1228] sm:$0xff]
    %v673 = vld [vmem:[#allocation5 + $0x1230] sm:$0xff]
    %v674 = vld [vmem:[#allocation5 + $0x1238] sm:$0xff]
    %v675 = vld [vmem:[#allocation5 + $0x1240] sm:$0xff]
    %v676 = vld [vmem:[#allocation5 + $0x1248] sm:$0xff]
    %v677 = vld [vmem:[#allocation5 + $0x1250] sm:$0xff]
    %v678 = vld [vmem:[#allocation5 + $0x1258] sm:$0xff]
    %v679 = vld [vmem:[#allocation5 + $0x1260] sm:$0xff]
    %v680 = vld [vmem:[#allocation5 + $0x1268] sm:$0xff]
    %v681 = vld [vmem:[#allocation5 + $0x1270] sm:$0xff]
    %v682 = vld [vmem:[#allocation5 + $0x1278] sm:$0xff]
    %v683 = vld [vmem:[#allocation5 + $0x1280] sm:$0xff]
    %v684 = vld [vmem:[#allocation5 + $0x1288] sm:$0xff]
    %v685 = vld [vmem:[#allocation5 + $0x1290] sm:$0xff]
    %v686 = vld [vmem:[#allocation5 + $0x1298] sm:$0xff]
    %v687 = vld [vmem:[#allocation5 + $0x12a0] sm:$0xff]
    %v688 = vld [vmem:[#allocation5 + $0x12a8] sm:$0xff]
    %v689 = vld [vmem:[#allocation5 + $0x12b0] sm:$0xff]
    %v690 = vld [vmem:[#allocation5 + $0x12b8] sm:$0xff]
    %v691 = vld [vmem:[#allocation5 + $0x12c0] sm:$0xff]
    %v692 = vld [vmem:[#allocation5 + $0x12c8] sm:$0xff]
    %v693 = vld [vmem:[#allocation5 + $0x12d0] sm:$0xff]
    %v694 = vld [vmem:[#allocation5 + $0x12d8] sm:$0xff]
    %v695 = vld [vmem:[#allocation5 + $0x12e0] sm:$0xff]
    %v696 = vld [vmem:[#allocation5 + $0x12e8] sm:$0xff]
    %v697 = vld [vmem:[#allocation5 + $0x12f0] sm:$0xff]
    %v698 = vld [vmem:[#allocation5 + $0x12f8] sm:$0xff]
    %v699 = vld [vmem:[#allocation5 + $0x1300] sm:$0xff]
    %v700 = vld [vmem:[#allocation5 + $0x1308] sm:$0xff]
    %v701 = vld [vmem:[#allocation5 + $0x1310] sm:$0xff]
    %v702 = vld [vmem:[#allocation5 + $0x1318] sm:$0xff]
    %v703 = vld [vmem:[#allocation5 + $0x1320] sm:$0xff]
    %v704 = vld [vmem:[#allocation5 + $0x1328] sm:$0xff]
    %v705 = vld [vmem:[#allocation5 + $0x1330] sm:$0xff]
    %v706 = vld [vmem:[#allocation5 + $0x1338] sm:$0xff]
    %v707 = vld [vmem:[#allocation5 + $0x1340] sm:$0xff]
    %v708 = vld [vmem:[#allocation5 + $0x1348] sm:$0xff]
    %v709 = vld [vmem:[#allocation5 + $0x1350] sm:$0xff]
    %v710 = vld [vmem:[#allocation5 + $0x1358] sm:$0xff]
    %v711 = vld [vmem:[#allocation5 + $0x1360] sm:$0xff]
    %v712 = vld [vmem:[#allocation5 + $0x1368] sm:$0xff]
    %v713 = vld [vmem:[#allocation5 + $0x1370] sm:$0xff]
    %v714 = vld [vmem:[#allocation5 + $0x1378] sm:$0xff]
    %v715 = vld [vmem:[#allocation5 + $0x1380] sm:$0xff]
    %v716 = vld [vmem:[#allocation5 + $0x1388] sm:$0xff]
    %v717 = vld [vmem:[#allocation5 + $0x1390] sm:$0xff]
    %v718 = vld [vmem:[#allocation5 + $0x1398] sm:$0xff]
    %v719 = vld [vmem:[#allocation5 + $0x13a0] sm:$0xff]
    %v720 = vld [vmem:[#allocation5 + $0x13a8] sm:$0xff]
    %v721 = vld [vmem:[#allocation5 + $0x13b0] sm:$0xff]
    %v722 = vld [vmem:[#allocation5 + $0x13b8] sm:$0xff]
    %v723 = vld [vmem:[#allocation5 + $0x13c0] sm:$0xff]
    %v724 = vld [vmem:[#allocation5 + $0x13c8] sm:$0xff]
    %v725 = vld [vmem:[#allocation5 + $0x13d0] sm:$0xff]
    %v726 = vld [vmem:[#allocation5 + $0x13d8] sm:$0xff]
    %v727 = vld [vmem:[#allocation5 + $0x13e0] sm:$0xff]
    %v728 = vld [vmem:[#allocation5 + $0x13e8] sm:$0xff]
    %v729 = vld [vmem:[#allocation5 + $0x13f0] sm:$0xff]
    %v730 = vld [vmem:[#allocation5 + $0x13f8] sm:$0xff]
    %v731 = vld [vmem:[#allocation5 + $0x1400] sm:$0xff]
    %v732 = vld [vmem:[#allocation5 + $0x1408] sm:$0xff]
    %v733 = vld [vmem:[#allocation5 + $0x1410] sm:$0xff]
    %v734 = vld [vmem:[#allocation5 + $0x1418] sm:$0xff]
    %v735 = vld [vmem:[#allocation5 + $0x1420] sm:$0xff]
    %v736 = vld [vmem:[#allocation5 + $0x1428] sm:$0xff]
    %v737 = vld [vmem:[#allocation5 + $0x1430] sm:$0xff]
    %v738 = vld [vmem:[#allocation5 + $0x1438] sm:$0xff]
    %v739 = vld [vmem:[#allocation5 + $0x1440] sm:$0xff]
    %v740 = vld [vmem:[#allocation5 + $0x1448] sm:$0xff]
    %v741 = vld [vmem:[#allocation5 + $0x1450] sm:$0xff]
    %v742 = vld [vmem:[#allocation5 + $0x1458] sm:$0xff]
    %v743 = vld [vmem:[#allocation5 + $0x1460] sm:$0xff]
    %v744 = vld [vmem:[#allocation5 + $0x1468] sm:$0xff]
    %v745 = vld [vmem:[#allocation5 + $0x1470] sm:$0xff]
    %v746 = vld [vmem:[#allocation5 + $0x1478] sm:$0xff]
    %v747 = vld [vmem:[#allocation5 + $0x1480] sm:$0xff]
    %v748 = vld [vmem:[#allocation5 + $0x1488] sm:$0xff]
    %v749 = vld [vmem:[#allocation5 + $0x1490] sm:$0xff]
    %v750 = vld [vmem:[#allocation5 + $0x1498] sm:$0xff]
    %v751 = vld [vmem:[#allocation5 + $0x14a0] sm:$0xff]
    %v752 = vld [vmem:[#allocation5 + $0x14a8] sm:$0xff]
    %v753 = vld [vmem:[#allocation5 + $0x14b0] sm:$0xff]
    %v754 = vld [vmem:[#allocation5 + $0x14b8] sm:$0xff]
    %v755 = vld [vmem:[#allocation5 + $0x14c0] sm:$0xff]
    %v756 = vld [vmem:[#allocation5 + $0x14c8] sm:$0xff]
    %v757 = vld [vmem:[#allocation5 + $0x14d0] sm:$0xff]
    %v758 = vld [vmem:[#allocation5 + $0x14d8] sm:$0xff]
    %v759 = vld [vmem:[#allocation5 + $0x14e0] sm:$0xff]
    %v760 = vld [vmem:[#allocation5 + $0x14e8] sm:$0xff]
    %v761 = vld [vmem:[#allocation5 + $0x14f0] sm:$0xff]
    %v762 = vld [vmem:[#allocation5 + $0x14f8] sm:$0xff]
    %v763 = vld [vmem:[#allocation5 + $0x1500] sm:$0xff]
    %v764 = vld [vmem:[#allocation5 + $0x1508] sm:$0xff]
    %v765 = vld [vmem:[#allocation5 + $0x1510] sm:$0xff]
    %v766 = vld [vmem:[#allocation5 + $0x1518] sm:$0xff]
    %v767 = vld [vmem:[#allocation5 + $0x1520] sm:$0xff]
    %v768 = vld [vmem:[#allocation5 + $0x1528] sm:$0xff]
    %v769 = vld [vmem:[#allocation5 + $0x1530] sm:$0xff]
    %v770 = vld [vmem:[#allocation5 + $0x1538] sm:$0xff]
    %v771 = vld [vmem:[#allocation5 + $0x1540] sm:$0xff]
    %v772 = vld [vmem:[#allocation5 + $0x1548] sm:$0xff]
    %v773 = vld [vmem:[#allocation5 + $0x1550] sm:$0xff]
    %v774 = vld [vmem:[#allocation5 + $0x1558] sm:$0xff]
    %v775 = vld [vmem:[#allocation5 + $0x1560] sm:$0xff]
    %v776 = vld [vmem:[#allocation5 + $0x1568] sm:$0xff]
    %v777 = vld [vmem:[#allocation5 + $0x1570] sm:$0xff]
    %v778 = vld [vmem:[#allocation5 + $0x1578] sm:$0xff]
    %v779 = vld [vmem:[#allocation5 + $0x1580] sm:$0xff]
    %v780 = vld [vmem:[#allocation5 + $0x1588] sm:$0xff]
    %v781 = vld [vmem:[#allocation5 + $0x1590] sm:$0xff]
    %v782 = vld [vmem:[#allocation5 + $0x1598] sm:$0xff]
    %v783 = vld [vmem:[#allocation5 + $0x15a0] sm:$0xff]
    %v784 = vld [vmem:[#allocation5 + $0x15a8] sm:$0xff]
    %v785 = vld [vmem:[#allocation5 + $0x15b0] sm:$0xff]
    %v786 = vld [vmem:[#allocation5 + $0x15b8] sm:$0xff]
    %v787 = vld [vmem:[#allocation5 + $0x15c0] sm:$0xff]
    %v788 = vld [vmem:[#allocation5 + $0x15c8] sm:$0xff]
    %v789 = vld [vmem:[#allocation5 + $0x15d0] sm:$0xff]
    %v790 = vld [vmem:[#allocation5 + $0x15d8] sm:$0xff]
    %v791 = vld [vmem:[#allocation5 + $0x15e0] sm:$0xff]
    %v792 = vld [vmem:[#allocation5 + $0x15e8] sm:$0xff]
    %v793 = vld [vmem:[#allocation5 + $0x15f0] sm:$0xff]
    %v794 = vld [vmem:[#allocation5 + $0x15f8] sm:$0xff]
    %v795 = vld [vmem:[#allocation5 + $0x1600] sm:$0xff]
    %v796 = vld [vmem:[#allocation5 + $0x1608] sm:$0xff]
    %v797 = vld [vmem:[#allocation5 + $0x1610] sm:$0xff]
    %v798 = vld [vmem:[#allocation5 + $0x1618] sm:$0xff]
    %v799 = vld [vmem:[#allocation5 + $0x1620] sm:$0xff]
    %v800 = vld [vmem:[#allocation5 + $0x1628] sm:$0xff]
    %v801 = vld [vmem:[#allocation5 + $0x1630] sm:$0xff]
    %v802 = vld [vmem:[#allocation5 + $0x1638] sm:$0xff]
    %v803 = vld [vmem:[#allocation5 + $0x1640] sm:$0xff]
    %v804 = vld [vmem:[#allocation5 + $0x1648] sm:$0xff]
    %v805 = vld [vmem:[#allocation5 + $0x1650] sm:$0xff]
    %v806 = vld [vmem:[#allocation5 + $0x1658] sm:$0xff]
    %v807 = vld [vmem:[#allocation5 + $0x1660] sm:$0xff]
    %v808 = vld [vmem:[#allocation5 + $0x1668] sm:$0xff]
    %v809 = vld [vmem:[#allocation5 + $0x1670] sm:$0xff]
    %v810 = vld [vmem:[#allocation5 + $0x1678] sm:$0xff]
    %v811 = vld [vmem:[#allocation5 + $0x1680] sm:$0xff]
    %v812 = vld [vmem:[#allocation5 + $0x1688] sm:$0xff]
    %v813 = vld [vmem:[#allocation5 + $0x1690] sm:$0xff]
    %v814 = vld [vmem:[#allocation5 + $0x1698] sm:$0xff]
    %v815 = vld [vmem:[#allocation5 + $0x16a0] sm:$0xff]
    %v816 = vld [vmem:[#allocation5 + $0x16a8] sm:$0xff]
    %v817 = vld [vmem:[#allocation5 + $0x16b0] sm:$0xff]
    %v818 = vld [vmem:[#allocation5 + $0x16b8] sm:$0xff]
    %v819 = vld [vmem:[#allocation5 + $0x16c0] sm:$0xff]
    %v820 = vld [vmem:[#allocation5 + $0x16c8] sm:$0xff]
    %v821 = vld [vmem:[#allocation5 + $0x16d0] sm:$0xff]
    %v822 = vld [vmem:[#allocation5 + $0x16d8] sm:$0xff]
    %v823 = vld [vmem:[#allocation5 + $0x16e0] sm:$0xff]
    %v824 = vld [vmem:[#allocation5 + $0x16e8] sm:$0xff]
    %v825 = vld [vmem:[#allocation5 + $0x16f0] sm:$0xff]
    %v826 = vld [vmem:[#allocation5 + $0x16f8] sm:$0xff]
    %v827 = vld [vmem:[#allocation5 + $0x1700] sm:$0xff]
    %v828 = vld [vmem:[#allocation5 + $0x1708] sm:$0xff]
    %v829 = vld [vmem:[#allocation5 + $0x1710] sm:$0xff]
    %v830 = vld [vmem:[#allocation5 + $0x1718] sm:$0xff]
    %v831 = vld [vmem:[#allocation5 + $0x1720] sm:$0xff]
    %v832 = vld [vmem:[#allocation5 + $0x1728] sm:$0xff]
    %v833 = vld [vmem:[#allocation5 + $0x1730] sm:$0xff]
    %v834 = vld [vmem:[#allocation5 + $0x1738] sm:$0xff]
    %v835 = vld [vmem:[#allocation5 + $0x1740] sm:$0xff]
    %v836 = vld [vmem:[#allocation5 + $0x1748] sm:$0xff]
    %v837 = vld [vmem:[#allocation5 + $0x1750] sm:$0xff]
    %v838 = vld [vmem:[#allocation5 + $0x1758] sm:$0xff]
    %v839 = vld [vmem:[#allocation5 + $0x1760] sm:$0xff]
    %v840 = vld [vmem:[#allocation5 + $0x1768] sm:$0xff]
    %v841 = vld [vmem:[#allocation5 + $0x1770] sm:$0xff]
    %v842 = vld [vmem:[#allocation5 + $0x1778] sm:$0xff]
    %v843 = vld [vmem:[#allocation5 + $0x1780] sm:$0xff]
    %v844 = vld [vmem:[#allocation5 + $0x1788] sm:$0xff]
    %v845 = vld [vmem:[#allocation5 + $0x1790] sm:$0xff]
    %v846 = vld [vmem:[#allocation5 + $0x1798] sm:$0xff]
    %v847 = vld [vmem:[#allocation5 + $0x17a0] sm:$0xff]
    %v848 = vld [vmem:[#allocation5 + $0x17a8] sm:$0xff]
    %v849 = vld [vmem:[#allocation5 + $0x17b0] sm:$0xff]
    %v850 = vld [vmem:[#allocation5 + $0x17b8] sm:$0xff]
    %v851 = vld [vmem:[#allocation5 + $0x17c0] sm:$0xff]
    %v852 = vld [vmem:[#allocation5 + $0x17c8] sm:$0xff]
    %v853 = vld [vmem:[#allocation5 + $0x17d0] sm:$0xff]
    %v854 = vld [vmem:[#allocation5 + $0x17d8] sm:$0xff]
    %v855 = vld [vmem:[#allocation5 + $0x17e0] sm:$0xff]
    %v856 = vld [vmem:[#allocation5 + $0x17e8] sm:$0xff]
    %v857 = vld [vmem:[#allocation5 + $0x17f0] sm:$0xff]
    %v858 = vld [vmem:[#allocation5 + $0x17f8] sm:$0xff]
    %v859 = vld [vmem:[#allocation5 + $0x1800] sm:$0xff]
    %v860 = vld [vmem:[#allocation5 + $0x1808] sm:$0xff]
    %v861 = vld [vmem:[#allocation5 + $0x1810] sm:$0xff]
    %v862 = vld [vmem:[#allocation5 + $0x1818] sm:$0xff]
    %v863 = vld [vmem:[#allocation5 + $0x1820] sm:$0xff]
    %v864 = vld [vmem:[#allocation5 + $0x1828] sm:$0xff]
    %v865 = vld [vmem:[#allocation5 + $0x1830] sm:$0xff]
    %v866 = vld [vmem:[#allocation5 + $0x1838] sm:$0xff]
    %v867 = vld [vmem:[#allocation5 + $0x1840] sm:$0xff]
    %v868 = vld [vmem:[#allocation5 + $0x1848] sm:$0xff]
    %v869 = vld [vmem:[#allocation5 + $0x1850] sm:$0xff]
    %v870 = vld [vmem:[#allocation5 + $0x1858] sm:$0xff]
    %v871 = vld [vmem:[#allocation5 + $0x1860] sm:$0xff]
    %v872 = vld [vmem:[#allocation5 + $0x1868] sm:$0xff]
    %v873 = vld [vmem:[#allocation5 + $0x1870] sm:$0xff]
    %v874 = vld [vmem:[#allocation5 + $0x1878] sm:$0xff]
    %v875 = vld [vmem:[#allocation5 + $0x1880] sm:$0xff]
    %v876 = vld [vmem:[#allocation5 + $0x1888] sm:$0xff]
    %v877 = vld [vmem:[#allocation5 + $0x1890] sm:$0xff]
    %v878 = vld [vmem:[#allocation5 + $0x1898] sm:$0xff]
    %v879 = vld [vmem:[#allocation5 + $0x18a0] sm:$0xff]
    %v880 = vld [vmem:[#allocation5 + $0x18a8] sm:$0xff]
    %v881 = vld [vmem:[#allocation5 + $0x18b0] sm:$0xff]
    %v882 = vld [vmem:[#allocation5 + $0x18b8] sm:$0xff]
    %v883 = vld [vmem:[#allocation5 + $0x18c0] sm:$0xff]
    %v884 = vld [vmem:[#allocation5 + $0x18c8] sm:$0xff]
    %v885 = vld [vmem:[#allocation5 + $0x18d0] sm:$0xff]
    %v886 = vld [vmem:[#allocation5 + $0x18d8] sm:$0xff]
    %v887 = vld [vmem:[#allocation5 + $0x18e0] sm:$0xff]
    %v888 = vld [vmem:[#allocation5 + $0x18e8] sm:$0xff]
    %v889 = vld [vmem:[#allocation5 + $0x18f0] sm:$0xff]
    %v890 = vld [vmem:[#allocation5 + $0x18f8] sm:$0xff]
    %v891 = vld [vmem:[#allocation5 + $0x1900] sm:$0xff]
    %v892 = vld [vmem:[#allocation5 + $0x1908] sm:$0xff]
    %v893 = vld [vmem:[#allocation5 + $0x1910] sm:$0xff]
    %v894 = vld [vmem:[#allocation5 + $0x1918] sm:$0xff]
    %v895 = vld [vmem:[#allocation5 + $0x1920] sm:$0xff]
    %v896 = vld [vmem:[#allocation5 + $0x1928] sm:$0xff]
    %v897 = vld [vmem:[#allocation5 + $0x1930] sm:$0xff]
    %v898 = vld [vmem:[#allocation5 + $0x1938] sm:$0xff]
    %v899 = vld [vmem:[#allocation5 + $0x1940] sm:$0xff]
    %v900 = vld [vmem:[#allocation5 + $0x1948] sm:$0xff]
    %v901 = vld [vmem:[#allocation5 + $0x1950] sm:$0xff]
    %v902 = vld [vmem:[#allocation5 + $0x1958] sm:$0xff]
    %v903 = vld [vmem:[#allocation5 + $0x1960] sm:$0xff]
    %v904 = vld [vmem:[#allocation5 + $0x1968] sm:$0xff]
    %v905 = vld [vmem:[#allocation5 + $0x1970] sm:$0xff]
    %v906 = vld [vmem:[#allocation5 + $0x1978] sm:$0xff]
    %v907 = vld [vmem:[#allocation5 + $0x1980] sm:$0xff]
    %v908 = vld [vmem:[#allocation5 + $0x1988] sm:$0xff]
    %v909 = vld [vmem:[#allocation5 + $0x1990] sm:$0xff]
    %v910 = vld [vmem:[#allocation5 + $0x1998] sm:$0xff]
    %v911 = vld [vmem:[#allocation5 + $0x19a0] sm:$0xff]
    %v912 = vld [vmem:[#allocation5 + $0x19a8] sm:$0xff]
    %v913 = vld [vmem:[#allocation5 + $0x19b0] sm:$0xff]
    %v914 = vld [vmem:[#allocation5 + $0x19b8] sm:$0xff]
    %v915 = vld [vmem:[#allocation5 + $0x19c0] sm:$0xff]
    %v916 = vld [vmem:[#allocation5 + $0x19c8] sm:$0xff]
    %v917 = vld [vmem:[#allocation5 + $0x19d0] sm:$0xff]
    %v918 = vld [vmem:[#allocation5 + $0x19d8] sm:$0xff]
    %v919 = vld [vmem:[#allocation5 + $0x19e0] sm:$0xff]
    %v920 = vld [vmem:[#allocation5 + $0x19e8] sm:$0xff]
    %v921 = vld [vmem:[#allocation5 + $0x19f0] sm:$0xff]
    %v922 = vld [vmem:[#allocation5 + $0x19f8] sm:$0xff]
    %v923 = vld [vmem:[#allocation5 + $0x1a00] sm:$0xff]
    %v924 = vld [vmem:[#allocation5 + $0x1a08] sm:$0xff]
    %v925 = vld [vmem:[#allocation5 + $0x1a10] sm:$0xff]
    %v926 = vld [vmem:[#allocation5 + $0x1a18] sm:$0xff]
    %v927 = vld [vmem:[#allocation5 + $0x1a20] sm:$0xff]
    %v928 = vld [vmem:[#allocation5 + $0x1a28] sm:$0xff]
    %v929 = vld [vmem:[#allocation5 + $0x1a30] sm:$0xff]
    %v930 = vld [vmem:[#allocation5 + $0x1a38] sm:$0xff]
    %v931 = vld [vmem:[#allocation5 + $0x1a40] sm:$0xff]
    %v932 = vld [vmem:[#allocation5 + $0x1a48] sm:$0xff]
    %v933 = vld [vmem:[#allocation5 + $0x1a50] sm:$0xff]
    %v934 = vld [vmem:[#allocation5 + $0x1a58] sm:$0xff]
    %v935 = vld [vmem:[#allocation5 + $0x1a60] sm:$0xff]
    %v936 = vld [vmem:[#allocation5 + $0x1a68] sm:$0xff]
    %v937 = vld [vmem:[#allocation5 + $0x1a70] sm:$0xff]
    %v938 = vld [vmem:[#allocation5 + $0x1a78] sm:$0xff]
    %v939 = vld [vmem:[#allocation5 + $0x1a80] sm:$0xff]
    %v940 = vld [vmem:[#allocation5 + $0x1a88] sm:$0xff]
    %v941 = vld [vmem:[#allocation5 + $0x1a90] sm:$0xff]
    %v942 = vld [vmem:[#allocation5 + $0x1a98] sm:$0xff]
    %v943 = vld [vmem:[#allocation5 + $0x1aa0] sm:$0xff]
    %v944 = vld [vmem:[#allocation5 + $0x1aa8] sm:$0xff]
    %v945 = vld [vmem:[#allocation5 + $0x1ab0] sm:$0xff]
    %v946 = vld [vmem:[#allocation5 + $0x1ab8] sm:$0xff]
    %v947 = vld [vmem:[#allocation5 + $0x1ac0] sm:$0xff]
    %v948 = vld [vmem:[#allocation5 + $0x1ac8] sm:$0xff]
    %v949 = vld [vmem:[#allocation5 + $0x1ad0] sm:$0xff]
    %v950 = vld [vmem:[#allocation5 + $0x1ad8] sm:$0xff]
    %v951 = vld [vmem:[#allocation5 + $0x1ae0] sm:$0xff]
    %v952 = vld [vmem:[#allocation5 + $0x1ae8] sm:$0xff]
    %v953 = vld [vmem:[#allocation5 + $0x1af0] sm:$0xff]
    %v954 = vld [vmem:[#allocation5 + $0x1af8] sm:$0xff]
    %v955 = vld [vmem:[#allocation5 + $0x1b00] sm:$0xff]
    %v956 = vld [vmem:[#allocation5 + $0x1b08] sm:$0xff]
    %v957 = vld [vmem:[#allocation5 + $0x1b10] sm:$0xff]
    %v958 = vld [vmem:[#allocation5 + $0x1b18] sm:$0xff]
    %v959 = vld [vmem:[#allocation5 + $0x1b20] sm:$0xff]
    %v960 = vld [vmem:[#allocation5 + $0x1b28] sm:$0xff]
    %v961 = vld [vmem:[#allocation5 + $0x1b30] sm:$0xff]
    %v962 = vld [vmem:[#allocation5 + $0x1b38] sm:$0xff]
    %v963 = vld [vmem:[#allocation5 + $0x1b40] sm:$0xff]
    %v964 = vld [vmem:[#allocation5 + $0x1b48] sm:$0xff]
    %v965 = vld [vmem:[#allocation5 + $0x1b50] sm:$0xff]
    %v966 = vld [vmem:[#allocation5 + $0x1b58] sm:$0xff]
    %v967 = vld [vmem:[#allocation5 + $0x1b60] sm:$0xff]
    %v968 = vld [vmem:[#allocation5 + $0x1b68] sm:$0xff]
    %v969 = vld [vmem:[#allocation5 + $0x1b70] sm:$0xff]
    %v970 = vld [vmem:[#allocation5 + $0x1b78] sm:$0xff]
    %v971 = vld [vmem:[#allocation5 + $0x1b80] sm:$0xff]
    %v972 = vld [vmem:[#allocation5 + $0x1b88] sm:$0xff]
    %v973 = vld [vmem:[#allocation5 + $0x1b90] sm:$0xff]
    %v974 = vld [vmem:[#allocation5 + $0x1b98] sm:$0xff]
    %v975 = vld [vmem:[#allocation5 + $0x1ba0] sm:$0xff]
    %v976 = vld [vmem:[#allocation5 + $0x1ba8] sm:$0xff]
    %v977 = vld [vmem:[#allocation5 + $0x1bb0] sm:$0xff]
    %v978 = vld [vmem:[#allocation5 + $0x1bb8] sm:$0xff]
    %v979 = vld [vmem:[#allocation5 + $0x1bc0] sm:$0xff]
    %v980 = vld [vmem:[#allocation5 + $0x1bc8] sm:$0xff]
    %v981 = vld [vmem:[#allocation5 + $0x1bd0] sm:$0xff]
    %v982 = vld [vmem:[#allocation5 + $0x1bd8] sm:$0xff]
    %v983 = vld [vmem:[#allocation5 + $0x1be0] sm:$0xff]
    %v984 = vld [vmem:[#allocation5 + $0x1be8] sm:$0xff]
    %v985 = vld [vmem:[#allocation5 + $0x1bf0] sm:$0xff]
    %v986 = vld [vmem:[#allocation5 + $0x1bf8] sm:$0xff]
    %v987 = vld [vmem:[#allocation5 + $0x1c00] sm:$0xff]
    %v988 = vld [vmem:[#allocation5 + $0x1c08] sm:$0xff]
    %v989 = vld [vmem:[#allocation5 + $0x1c10] sm:$0xff]
    %v990 = vld [vmem:[#allocation5 + $0x1c18] sm:$0xff]
    %v991 = vld [vmem:[#allocation5 + $0x1c20] sm:$0xff]
    %v992 = vld [vmem:[#allocation5 + $0x1c28] sm:$0xff]
    %v993 = vld [vmem:[#allocation5 + $0x1c30] sm:$0xff]
    %v994 = vld [vmem:[#allocation5 + $0x1c38] sm:$0xff]
    %v995 = vld [vmem:[#allocation5 + $0x1c40] sm:$0xff]
    %v996 = vld [vmem:[#allocation5 + $0x1c48] sm:$0xff]
    %v997 = vld [vmem:[#allocation5 + $0x1c50] sm:$0xff]
    %v998 = vld [vmem:[#allocation5 + $0x1c58] sm:$0xff]
    %v999 = vld [vmem:[#allocation5 + $0x1c60] sm:$0xff]
    %v1000 = vld [vmem:[#allocation5 + $0x1c68] sm:$0xff]
    %v1001 = vld [vmem:[#allocation5 + $0x1c70] sm:$0xff]
    %v1002 = vld [vmem:[#allocation5 + $0x1c78] sm:$0xff]
    %v1003 = vld [vmem:[#allocation5 + $0x1c80] sm:$0xff]
    %v1004 = vld [vmem:[#allocation5 + $0x1c88] sm:$0xff]
    %v1005 = vld [vmem:[#allocation5 + $0x1c90] sm:$0xff]
    %v1006 = vld [vmem:[#allocation5 + $0x1c98] sm:$0xff]
    %v1007 = vld [vmem:[#allocation5 + $0x1ca0] sm:$0xff]
    %v1008 = vld [vmem:[#allocation5 + $0x1ca8] sm:$0xff]
    %v1009 = vld [vmem:[#allocation5 + $0x1cb0] sm:$0xff]
    %v1010 = vld [vmem:[#allocation5 + $0x1cb8] sm:$0xff]
    %v1011 = vld [vmem:[#allocation5 + $0x1cc0] sm:$0xff]
    %v1012 = vld [vmem:[#allocation5 + $0x1cc8] sm:$0xff]
    %v1013 = vld [vmem:[#allocation5 + $0x1cd0] sm:$0xff]
    %v1014 = vld [vmem:[#allocation5 + $0x1cd8] sm:$0xff]
    %v1015 = vld [vmem:[#allocation5 + $0x1ce0] sm:$0xff]
    %v1016 = vld [vmem:[#allocation5 + $0x1ce8] sm:$0xff]
    %v1017 = vld [vmem:[#allocation5 + $0x1cf0] sm:$0xff]
    %v1018 = vld [vmem:[#allocation5 + $0x1cf8] sm:$0xff]
    %v1019 = vld [vmem:[#allocation5 + $0x1d00] sm:$0xff]
    %v1020 = vld [vmem:[#allocation5 + $0x1d08] sm:$0xff]
    %v1021 = vld [vmem:[#allocation5 + $0x1d10] sm:$0xff]
    %v1022 = vld [vmem:[#allocation5 + $0x1d18] sm:$0xff]
    %v1023 = vld [vmem:[#allocation5 + $0x1d20] sm:$0xff]
    %v1024 = vld [vmem:[#allocation5 + $0x1d28] sm:$0xff]
    %v1025 = vld [vmem:[#allocation5 + $0x1d30] sm:$0xff]
    %v1026 = vld [vmem:[#allocation5 + $0x1d38] sm:$0xff]
    %v1027 = vld [vmem:[#allocation5 + $0x1d40] sm:$0xff]
    %v1028 = vld [vmem:[#allocation5 + $0x1d48] sm:$0xff]
    %v1029 = vld [vmem:[#allocation5 + $0x1d50] sm:$0xff]
    %v1030 = vld [vmem:[#allocation5 + $0x1d58] sm:$0xff]
    %v1031 = vld [vmem:[#allocation5 + $0x1d60] sm:$0xff]
    %v1032 = vld [vmem:[#allocation5 + $0x1d68] sm:$0xff]
    %v1033 = vld [vmem:[#allocation5 + $0x1d70] sm:$0xff]
    %v1034 = vld [vmem:[#allocation5 + $0x1d78] sm:$0xff]
    %v1035 = vld [vmem:[#allocation5 + $0x1d80] sm:$0xff]
    %v1036 = vld [vmem:[#allocation5 + $0x1d88] sm:$0xff]
    %v1037 = vld [vmem:[#allocation5 + $0x1d90] sm:$0xff]
    %v1038 = vld [vmem:[#allocation5 + $0x1d98] sm:$0xff]
    %v1039 = vld [vmem:[#allocation5 + $0x1da0] sm:$0xff]
    %v1040 = vld [vmem:[#allocation5 + $0x1da8] sm:$0xff]
    %v1041 = vld [vmem:[#allocation5 + $0x1db0] sm:$0xff]
    %v1042 = vld [vmem:[#allocation5 + $0x1db8] sm:$0xff]
    %v1043 = vld [vmem:[#allocation5 + $0x1dc0] sm:$0xff]
    %v1044 = vld [vmem:[#allocation5 + $0x1dc8] sm:$0xff]
    %v1045 = vld [vmem:[#allocation5 + $0x1dd0] sm:$0xff]
    %v1046 = vld [vmem:[#allocation5 + $0x1dd8] sm:$0xff]
    %v1047 = vld [vmem:[#allocation5 + $0x1de0] sm:$0xff]
    %v1048 = vld [vmem:[#allocation5 + $0x1de8] sm:$0xff]
    %v1049 = vld [vmem:[#allocation5 + $0x1df0] sm:$0xff]
    %v1050 = vld [vmem:[#allocation5 + $0x1df8] sm:$0xff]
    %v1051 = vld [vmem:[#allocation5 + $0x1e00] sm:$0xff]
    %v1052 = vld [vmem:[#allocation5 + $0x1e08] sm:$0xff]
    %v1053 = vld [vmem:[#allocation5 + $0x1e10] sm:$0xff]
    %v1054 = vld [vmem:[#allocation5 + $0x1e18] sm:$0xff]
    %v1055 = vld [vmem:[#allocation5 + $0x1e20] sm:$0xff]
    %v1056 = vld [vmem:[#allocation5 + $0x1e28] sm:$0xff]
    %v1057 = vld [vmem:[#allocation5 + $0x1e30] sm:$0xff]
    %v1058 = vld [vmem:[#allocation5 + $0x1e38] sm:$0xff]
    %v1059 = vld [vmem:[#allocation5 + $0x1e40] sm:$0xff]
    %v1060 = vld [vmem:[#allocation5 + $0x1e48] sm:$0xff]
    %v1061 = vld [vmem:[#allocation5 + $0x1e50] sm:$0xff]
    %v1062 = vld [vmem:[#allocation5 + $0x1e58] sm:$0xff]
    %v1063 = vld [vmem:[#allocation5 + $0x1e60] sm:$0xff]
    %v1064 = vld [vmem:[#allocation5 + $0x1e68] sm:$0xff]
    %v1065 = vld [vmem:[#allocation5 + $0x1e70] sm:$0xff]
    %v1066 = vld [vmem:[#allocation5 + $0x1e78] sm:$0xff]
    %v1067 = vld [vmem:[#allocation5 + $0x1e80] sm:$0xff]
    %v1068 = vld [vmem:[#allocation5 + $0x1e88] sm:$0xff]
    %v1069 = vld [vmem:[#allocation5 + $0x1e90] sm:$0xff]
    %v1070 = vld [vmem:[#allocation5 + $0x1e98] sm:$0xff]
    %v1071 = vld [vmem:[#allocation5 + $0x1ea0] sm:$0xff]
    %v1072 = vld [vmem:[#allocation5 + $0x1ea8] sm:$0xff]
    %v1073 = vld [vmem:[#allocation5 + $0x1eb0] sm:$0xff]
    %v1074 = vld [vmem:[#allocation5 + $0x1eb8] sm:$0xff]
    %v1075 = vld [vmem:[#allocation5 + $0x1ec0] sm:$0xff]
    %v1076 = vld [vmem:[#allocation5 + $0x1ec8] sm:$0xff]
    %v1077 = vld [vmem:[#allocation5 + $0x1ed0] sm:$0xff]
    %v1078 = vld [vmem:[#allocation5 + $0x1ed8] sm:$0xff]
    %v1079 = vld [vmem:[#allocation5 + $0x1ee0] sm:$0xff]
    %v1080 = vld [vmem:[#allocation5 + $0x1ee8] sm:$0xff]
    %v1081 = vld [vmem:[#allocation5 + $0x1ef0] sm:$0xff]
    %v1082 = vld [vmem:[#allocation5 + $0x1ef8] sm:$0xff]
    %v1083 = vld [vmem:[#allocation5 + $0x1f00] sm:$0xff]
    %v1084 = vld [vmem:[#allocation5 + $0x1f08] sm:$0xff]
    %v1085 = vld [vmem:[#allocation5 + $0x1f10] sm:$0xff]
    %v1086 = vld [vmem:[#allocation5 + $0x1f18] sm:$0xff]
    %v1087 = vld [vmem:[#allocation5 + $0x1f20] sm:$0xff]
    %v1088 = vld [vmem:[#allocation5 + $0x1f28] sm:$0xff]
    %v1089 = vld [vmem:[#allocation5 + $0x1f30] sm:$0xff]
    %v1090 = vld [vmem:[#allocation5 + $0x1f38] sm:$0xff]
    %v1091 = vld [vmem:[#allocation5 + $0x1f40] sm:$0xff]
    %v1092 = vld [vmem:[#allocation5 + $0x1f48] sm:$0xff]
    %v1093 = vld [vmem:[#allocation5 + $0x1f50] sm:$0xff]
    %v1094 = vld [vmem:[#allocation5 + $0x1f58] sm:$0xff]
    %v1095 = vld [vmem:[#allocation5 + $0x1f60] sm:$0xff]
    %v1096 = vld [vmem:[#allocation5 + $0x1f68] sm:$0xff]
    %v1097 = vld [vmem:[#allocation5 + $0x1f70] sm:$0xff]
    %v1098 = vld [vmem:[#allocation5 + $0x1f78] sm:$0xff]
    %v1099 = vld [vmem:[#allocation5 + $0x1f80] sm:$0xff]
    %v1100 = vld [vmem:[#allocation5 + $0x1f88] sm:$0xff]
    %v1101 = vld [vmem:[#allocation5 + $0x1f90] sm:$0xff]
    %v1102 = vld [vmem:[#allocation5 + $0x1f98] sm:$0xff]
    %v1103 = vld [vmem:[#allocation5 + $0x1fa0] sm:$0xff]
    %v1104 = vld [vmem:[#allocation5 + $0x1fa8] sm:$0xff]
    %v1105 = vld [vmem:[#allocation5 + $0x1fb0] sm:$0xff]
    %v1106 = vld [vmem:[#allocation5 + $0x1fb8] sm:$0xff]
    %v1107 = vld [vmem:[#allocation5 + $0x1fc0] sm:$0xff]
    %v1108 = vld [vmem:[#allocation5 + $0x1fc8] sm:$0xff]
    %v1109 = vld [vmem:[#allocation5 + $0x1fd0] sm:$0xff]
    %v1110 = vld [vmem:[#allocation5 + $0x1fd8] sm:$0xff]
    %v1111 = vld [vmem:[#allocation5 + $0x1fe0] sm:$0xff]
    %v1112 = vld [vmem:[#allocation5 + $0x1fe8] sm:$0xff]
    %v1113 = vld [vmem:[#allocation5 + $0x1ff0] sm:$0xff]
    %v1114 = vld [vmem:[#allocation5 + $0x1ff8] sm:$0xff]
    %v1115 = vld [vmem:[#allocation7] sm:$0xff]
    %v1117 = vlaneseq
    %v1118 = vshrl.u32 %v1117, 7
    %v1119 = vsub.s32 0, %v1118
    %v1120 = vrot.slane %v1115, %v1119
    %v1121 = vlaneseq
    %v1122 = vshrl.u32 %v1121, 7
    %v1123 = vsub.s32 1, %v1122
    %v1124 = vrot.slane %v1115, %v1123
    %v1125 = vlaneseq
    %v1126 = vshrl.u32 %v1125, 7
    %v1127 = vsub.s32 2, %v1126
    %v1128 = vrot.slane %v1115, %v1127
    %v1129 = vlaneseq
    %v1130 = vshrl.u32 %v1129, 7
    %v1131 = vsub.s32 3, %v1130
    %v1132 = vrot.slane %v1115, %v1131
    %v1133 = vlaneseq
    %v1134 = vshrl.u32 %v1133, 7
    %v1135 = vsub.s32 4, %v1134
    %v1136 = vrot.slane %v1115, %v1135
    %v1137 = vlaneseq
    %v1138 = vshrl.u32 %v1137, 7
    %v1139 = vsub.s32 5, %v1138
    %v1140 = vrot.slane %v1115, %v1139
    %v1141 = vlaneseq
    %v1142 = vshrl.u32 %v1141, 7
    %v1143 = vsub.s32 6, %v1142
    %v1144 = vrot.slane %v1115, %v1143
    %v1145 = vlaneseq
    %v1146 = vshrl.u32 %v1145, 7
    %v1147 = vsub.s32 7, %v1146
    %v1148 = vrot.slane %v1115, %v1147
    %1157 = vmatprep.subr.mxu0 %v92
    %1158 = vmatpush1.msra.mxu0 %v91
    %1159 = vmatprep.subr.mxu0 %v100
    %1160 = vmatpush1.msra.mxu0 %v99
    %1161 = vmatprep.subr.mxu0 %v108
    %1162 = vmatpush1.msra.mxu0 %v107
    %1163 = vmatprep.subr.mxu0 %v116
    %1164 = vmatpush1.msra.mxu0 %v115
    %1165 = vmatprep.subr.mxu0 %v124
    %1166 = vmatpush1.msra.mxu0 %v123
    %1167 = vmatprep.subr.mxu0 %v132
    %1168 = vmatpush1.msra.mxu0 %v131
    %1169 = vmatprep.subr.mxu0 %v140
    %1170 = vmatpush1.msra.mxu0 %v139
    %1171 = vmatprep.subr.mxu0 %v148
    %1172 = vmatpush1.msra.mxu0 %v147
    %1173 = vmatprep.subr.mxu0 %v156
    %1174 = vmatpush1.msra.mxu0 %v155
    %1175 = vmatprep.subr.mxu0 %v164
    %1176 = vmatpush1.msra.mxu0 %v163
    %1177 = vmatprep.subr.mxu0 %v172
    %1178 = vmatpush1.msra.mxu0 %v171
    %1179 = vmatprep.subr.mxu0 %v180
    %1180 = vmatpush1.msra.mxu0 %v179
    %1181 = vmatprep.subr.mxu0 %v188
    %1182 = vmatpush1.msra.mxu0 %v187
    %1183 = vmatprep.subr.mxu0 %v196
    %1184 = vmatpush1.msra.mxu0 %v195
    %1185 = vmatprep.subr.mxu0 %v204
    %1186 = vmatpush1.msra.mxu0 %v203
    %1187 = vmatprep.subr.mxu0 %v212
    %1188 = vmatpush1.msra.mxu0 %v211
    %1189 = vmatprep.subr.mxu0 %v220
    %1190 = vmatpush1.msra.mxu0 %v219
    %1191 = vmatprep.subr.mxu0 %v228
    %1192 = vmatpush1.msra.mxu0 %v227
    %1193 = vmatprep.subr.mxu0 %v236
    %1194 = vmatpush1.msra.mxu0 %v235
    %1195 = vmatprep.subr.mxu0 %v244
    %1196 = vmatpush1.msra.mxu0 %v243
    %1197 = vmatprep.subr.mxu0 %v252
    %1198 = vmatpush1.msra.mxu0 %v251
    %1199 = vmatprep.subr.mxu0 %v260
    %1200 = vmatpush1.msra.mxu0 %v259
    %1201 = vmatprep.subr.mxu0 %v268
    %1202 = vmatpush1.msra.mxu0 %v267
    %1203 = vmatprep.subr.mxu0 %v276
    %1204 = vmatpush1.msra.mxu0 %v275
    %1205 = vmatprep.subr.mxu0 %v284
    %1206 = vmatpush1.msra.mxu0 %v283
    %1207 = vmatprep.subr.mxu0 %v292
    %1208 = vmatpush1.msra.mxu0 %v291
    %1209 = vmatprep.subr.mxu0 %v300
    %1210 = vmatpush1.msra.mxu0 %v299
    %1211 = vmatprep.subr.mxu0 %v308
    %1212 = vmatpush1.msra.mxu0 %v307
    %1213 = vmatprep.subr.mxu0 %v316
    %1214 = vmatpush1.msra.mxu0 %v315
    %1215 = vmatprep.subr.mxu0 %v324
    %1216 = vmatpush1.msra.mxu0 %v323
    %1217 = vmatprep.subr.mxu0 %v332
    %1218 = vmatpush1.msra.mxu0 %v331
    %1219 = vmatprep.subr.mxu0 %v340
    %1220 = vmatpush1.msra.mxu0 %v339
    %1221 = vmatprep.mubr.f32.mxu0 %v84
    %1222 = vmatmul.mubr.f32.gmra.mrb[0].mxu0 %v83
    %v1223 = vpop.f32.mrb[0].mxu0
    %v1224 = vadd.f32 %v1120, %v1223
    %v1225 = vpop.f32.mrb[0].mxu0
    %v1226 = vadd.f32 %v1124, %v1225
    %1227 = vdwg.mxu0
    %1228 = vmatprep.subr.mxu0 %v348
    %1229 = vmatpush1.msra.mxu0 %v347
    %1230 = vmatprep.subr.mxu0 %v356
    %1231 = vmatpush1.msra.mxu0 %v355
    %1232 = vmatprep.subr.mxu0 %v364
    %1233 = vmatpush1.msra.mxu0 %v363
    %1234 = vmatprep.subr.mxu0 %v372
    %1235 = vmatpush1.msra.mxu0 %v371
    %1236 = vmatprep.subr.mxu0 %v380
    %1237 = vmatpush1.msra.mxu0 %v379
    %1238 = vmatprep.subr.mxu0 %v388
    %1239 = vmatpush1.msra.mxu0 %v387
    %1240 = vmatprep.subr.mxu0 %v396
    %1241 = vmatpush1.msra.mxu0 %v395
    %1242 = vmatprep.subr.mxu0 %v404
    %1243 = vmatpush1.msra.mxu0 %v403
    %1244 = vmatprep.subr.mxu0 %v412
    %1245 = vmatpush1.msra.mxu0 %v411
    %1246 = vmatprep.subr.mxu0 %v420
    %1247 = vmatpush1.msra.mxu0 %v419
    %1248 = vmatprep.subr.mxu0 %v428
    %1249 = vmatpush1.msra.mxu0 %v427
    %1250 = vmatprep.subr.mxu0 %v436
    %1251 = vmatpush1.msra.mxu0 %v435
    %1252 = vmatprep.subr.mxu0 %v444
    %1253 = vmatpush1.msra.mxu0 %v443
    %1254 = vmatprep.subr.mxu0 %v452
    %1255 = vmatpush1.msra.mxu0 %v451
    %1256 = vmatprep.subr.mxu0 %v460
    %1257 = vmatpush1.msra.mxu0 %v459
    %1258 = vmatprep.subr.mxu0 %v468
    %1259 = vmatpush1.msra.mxu0 %v467
    %1260 = vmatprep.subr.mxu0 %v476
    %1261 = vmatpush1.msra.mxu0 %v475
    %1262 = vmatprep.subr.mxu0 %v484
    %1263 = vmatpush1.msra.mxu0 %v483
    %1264 = vmatprep.subr.mxu0 %v492
    %1265 = vmatpush1.msra.mxu0 %v491
    %1266 = vmatprep.subr.mxu0 %v500
    %1267 = vmatpush1.msra.mxu0 %v499
    %1268 = vmatprep.subr.mxu0 %v508
    %1269 = vmatpush1.msra.mxu0 %v507
    %1270 = vmatprep.subr.mxu0 %v516
    %1271 = vmatpush1.msra.mxu0 %v515
    %1272 = vmatprep.subr.mxu0 %v524
    %1273 = vmatpush1.msra.mxu0 %v523
    %1274 = vmatprep.subr.mxu0 %v532
    %1275 = vmatpush1.msra.mxu0 %v531
    %1276 = vmatprep.subr.mxu0 %v540
    %1277 = vmatpush1.msra.mxu0 %v539
    %1278 = vmatprep.subr.mxu0 %v548
    %1279 = vmatpush1.msra.mxu0 %v547
    %1280 = vmatprep.subr.mxu0 %v556
    %1281 = vmatpush1.msra.mxu0 %v555
    %1282 = vmatprep.subr.mxu0 %v564
    %1283 = vmatpush1.msra.mxu0 %v563
    %1284 = vmatprep.subr.mxu0 %v572
    %1285 = vmatpush1.msra.mxu0 %v571
    %1286 = vmatprep.subr.mxu0 %v580
    %1287 = vmatpush1.msra.mxu0 %v579
    %1288 = vmatprep.subr.mxu0 %v588
    %1289 = vmatpush1.msra.mxu0 %v587
    %1290 = vmatprep.subr.mxu0 %v596
    %1291 = vmatpush1.msra.mxu0 %v595
    %1292 = vmatprep.mubr.f32.mxu0 %v86
    %1293 = vmatmul.mubr.f32.gmra.mrb[0].mxu0 %v85
    %v1294 = vpop.f32.mrb[0].mxu0
    %v1295 = vadd.f32 %v1224, %v1294
    %v1296 = vpop.f32.mrb[0].mxu0
    %v1297 = vadd.f32 %v1226, %v1296
    %1298 = vdwg.mxu0
    %1299 = vmatprep.subr.mxu0 %v604
    %1300 = vmatpush1.msra.mxu0 %v603
    %1301 = vmatprep.subr.mxu0 %v612
    %1302 = vmatpush1.msra.mxu0 %v611
    %1303 = vmatprep.subr.mxu0 %v620
    %1304 = vmatpush1.msra.mxu0 %v619
    %1305 = vmatprep.subr.mxu0 %v628
    %1306 = vmatpush1.msra.mxu0 %v627
    %1307 = vmatprep.subr.mxu0 %v636
    %1308 = vmatpush1.msra.mxu0 %v635
    %1309 = vmatprep.subr.mxu0 %v644
    %1310 = vmatpush1.msra.mxu0 %v643
    %1311 = vmatprep.subr.mxu0 %v652
    %1312 = vmatpush1.msra.mxu0 %v651
    %1313 = vmatprep.subr.mxu0 %v660
    %1314 = vmatpush1.msra.mxu0 %v659
    %1315 = vmatprep.subr.mxu0 %v668
    %1316 = vmatpush1.msra.mxu0 %v667
    %1317 = vmatprep.subr.mxu0 %v676
    %1318 = vmatpush1.msra.mxu0 %v675
    %1319 = vmatprep.subr.mxu0 %v684
    %1320 = vmatpush1.msra.mxu0 %v683
    %1321 = vmatprep.subr.mxu0 %v692
    %1322 = vmatpush1.msra.mxu0 %v691
    %1323 = vmatprep.subr.mxu0 %v700
    %1324 = vmatpush1.msra.mxu0 %v699
    %1325 = vmatprep.subr.mxu0 %v708
    %1326 = vmatpush1.msra.mxu0 %v707
    %1327 = vmatprep.subr.mxu0 %v716
    %1328 = vmatpush1.msra.mxu0 %v715
    %1329 = vmatprep.subr.mxu0 %v724
    %1330 = vmatpush1.msra.mxu0 %v723
    %1331 = vmatprep.subr.mxu0 %v732
    %1332 = vmatpush1.msra.mxu0 %v731
    %1333 = vmatprep.subr.mxu0 %v740
    %1334 = vmatpush1.msra.mxu0 %v739
    %1335 = vmatprep.subr.mxu0 %v748
    %1336 = vmatpush1.msra.mxu0 %v747
    %1337 = vmatprep.subr.mxu0 %v756
    %1338 = vmatpush1.msra.mxu0 %v755
    %1339 = vmatprep.subr.mxu0 %v764
    %1340 = vmatpush1.msra.mxu0 %v763
    %1341 = vmatprep.subr.mxu0 %v772
    %1342 = vmatpush1.msra.mxu0 %v771
    %1343 = vmatprep.subr.mxu0 %v780
    %1344 = vmatpush1.msra.mxu0 %v779
    %1345 = vmatprep.subr.mxu0 %v788
    %1346 = vmatpush1.msra.mxu0 %v787
    %1347 = vmatprep.subr.mxu0 %v796
    %1348 = vmatpush1.msra.mxu0 %v795
    %1349 = vmatprep.subr.mxu0 %v804
    %1350 = vmatpush1.msra.mxu0 %v803
    %1351 = vmatprep.subr.mxu0 %v812
    %1352 = vmatpush1.msra.mxu0 %v811
    %1353 = vmatprep.subr.mxu0 %v820
    %1354 = vmatpush1.msra.mxu0 %v819
    %1355 = vmatprep.subr.mxu0 %v828
    %1356 = vmatpush1.msra.mxu0 %v827
    %1357 = vmatprep.subr.mxu0 %v836
    %1358 = vmatpush1.msra.mxu0 %v835
    %1359 = vmatprep.subr.mxu0 %v844
    %1360 = vmatpush1.msra.mxu0 %v843
    %1361 = vmatprep.subr.mxu0 %v852
    %1362 = vmatpush1.msra.mxu0 %v851
    %1363 = vmatprep.mubr.f32.mxu0 %v88
    %1364 = vmatmul.mubr.f32.gmra.mrb[0].mxu0 %v87
    %v1365 = vpop.f32.mrb[0].mxu0
    %v1366 = vadd.f32 %v1295, %v1365
    %v1367 = vpop.f32.mrb[0].mxu0
    %v1368 = vadd.f32 %v1297, %v1367
    %1369 = vdwg.mxu0
    %1370 = vmatprep.subr.mxu0 %v860
    %1371 = vmatpush1.msra.mxu0 %v859
    %1372 = vmatprep.subr.mxu0 %v868
    %1373 = vmatpush1.msra.mxu0 %v867
    %1374 = vmatprep.subr.mxu0 %v876
    %1375 = vmatpush1.msra.mxu0 %v875
    %1376 = vmatprep.subr.mxu0 %v884
    %1377 = vmatpush1.msra.mxu0 %v883
    %1378 = vmatprep.subr.mxu0 %v892
    %1379 = vmatpush1.msra.mxu0 %v891
    %1380 = vmatprep.subr.mxu0 %v900
    %1381 = vmatpush1.msra.mxu0 %v899
    %1382 = vmatprep.subr.mxu0 %v908
    %1383 = vmatpush1.msra.mxu0 %v907
    %1384 = vmatprep.subr.mxu0 %v916
    %1385 = vmatpush1.msra.mxu0 %v915
    %1386 = vmatprep.subr.mxu0 %v924
    %1387 = vmatpush1.msra.mxu0 %v923
    %1388 = vmatprep.subr.mxu0 %v932
    %1389 = vmatpush1.msra.mxu0 %v931
    %1390 = vmatprep.subr.mxu0 %v940
    %1391 = vmatpush1.msra.mxu0 %v939
    %1392 = vmatprep.subr.mxu0 %v948
    %1393 = vmatpush1.msra.mxu0 %v947
    %1394 = vmatprep.subr.mxu0 %v956
    %1395 = vmatpush1.msra.mxu0 %v955
    %1396 = vmatprep.subr.mxu0 %v964
    %1397 = vmatpush1.msra.mxu0 %v963
    %1398 = vmatprep.subr.mxu0 %v972
    %1399 = vmatpush1.msra.mxu0 %v971
    %1400 = vmatprep.subr.mxu0 %v980
    %1401 = vmatpush1.msra.mxu0 %v979
    %1402 = vmatprep.subr.mxu0 %v988
    %1403 = vmatpush1.msra.mxu0 %v987
    %1404 = vmatprep.subr.mxu0 %v996
    %1405 = vmatpush1.msra.mxu0 %v995
    %1406 = vmatprep.subr.mxu0 %v1004
    %1407 = vmatpush1.msra.mxu0 %v1003
    %1408 = vmatprep.subr.mxu0 %v1012
    %1409 = vmatpush1.msra.mxu0 %v1011
    %1410 = vmatprep.subr.mxu0 %v1020
    %1411 = vmatpush1.msra.mxu0 %v1019
    %1412 = vmatprep.subr.mxu0 %v1028
    %1413 = vmatpush1.msra.mxu0 %v1027
    %1414 = vmatprep.subr.mxu0 %v1036
    %1415 = vmatpush1.msra.mxu0 %v1035
    %1416 = vmatprep.subr.mxu0 %v1044
    %1417 = vmatpush1.msra.mxu0 %v1043
    %1418 = vmatprep.subr.mxu0 %v1052
    %1419 = vmatpush1.msra.mxu0 %v1051
    %1420 = vmatprep.subr.mxu0 %v1060
    %1421 = vmatpush1.msra.mxu0 %v1059
    %1422 = vmatprep.subr.mxu0 %v1068
    %1423 = vmatpush1.msra.mxu0 %v1067
    %1424 = vmatprep.subr.mxu0 %v1076
    %1425 = vmatpush1.msra.mxu0 %v1075
    %1426 = vmatprep.subr.mxu0 %v1084
    %1427 = vmatpush1.msra.mxu0 %v1083
    %1428 = vmatprep.subr.mxu0 %v1092
    %1429 = vmatpush1.msra.mxu0 %v1091
    %1430 = vmatprep.subr.mxu0 %v1100
    %1431 = vmatpush1.msra.mxu0 %v1099
    %1432 = vmatprep.subr.mxu0 %v1108
    %1433 = vmatpush1.msra.mxu0 %v1107
    %1434 = vmatprep.mubr.f32.mxu0 %v90
    %1435 = vmatmul.mubr.f32.gmra.mrb[0].mxu0 %v89
    %v1436 = vpop.f32.mrb[0].mxu0
    %v1437 = vadd.f32 %v1366, %v1436
    %v1438 = vpop.f32.mrb[0].mxu0
    %v1439 = vadd.f32 %v1368, %v1438
    %1440 = vdwg.mxu0
    %1441 = vmatprep.subr.mxu0 %v94
    %1442 = vmatpush1.msra.mxu0 %v93
    %1443 = vmatprep.subr.mxu0 %v102
    %1444 = vmatpush1.msra.mxu0 %v101
    %1445 = vmatprep.subr.mxu0 %v110
    %1446 = vmatpush1.msra.mxu0 %v109
    %1447 = vmatprep.subr.mxu0 %v118
    %1448 = vmatpush1.msra.mxu0 %v117
    %1449 = vmatprep.subr.mxu0 %v126
    %1450 = vmatpush1.msra.mxu0 %v125
    %1451 = vmatprep.subr.mxu0 %v134
    %1452 = vmatpush1.msra.mxu0 %v133
    %1453 = vmatprep.subr.mxu0 %v142
    %1454 = vmatpush1.msra.mxu0 %v141
    %1455 = vmatprep.subr.mxu0 %v150
    %1456 = vmatpush1.msra.mxu0 %v149
    %1457 = vmatprep.subr.mxu0 %v158
    %1458 = vmatpush1.msra.mxu0 %v157
    %1459 = vmatprep.subr.mxu0 %v166
    %1460 = vmatpush1.msra.mxu0 %v165
    %1461 = vmatprep.subr.mxu0 %v174
    %1462 = vmatpush1.msra.mxu0 %v173
    %1463 = vmatprep.subr.mxu0 %v182
    %1464 = vmatpush1.msra.mxu0 %v181
    %1465 = vmatprep.subr.mxu0 %v190
    %1466 = vmatpush1.msra.mxu0 %v189
    %1467 = vmatprep.subr.mxu0 %v198
    %1468 = vmatpush1.msra.mxu0 %v197
    %1469 = vmatprep.subr.mxu0 %v206
    %1470 = vmatpush1.msra.mxu0 %v205
    %1471 = vmatprep.subr.mxu0 %v214
    %1472 = vmatpush1.msra.mxu0 %v213
    %1473 = vmatprep.subr.mxu0 %v222
    %1474 = vmatpush1.msra.mxu0 %v221
    %1475 = vmatprep.subr.mxu0 %v230
    %1476 = vmatpush1.msra.mxu0 %v229
    %1477 = vmatprep.subr.mxu0 %v238
    %1478 = vmatpush1.msra.mxu0 %v237
    %1479 = vmatprep.subr.mxu0 %v246
    %1480 = vmatpush1.msra.mxu0 %v245
    %1481 = vmatprep.subr.mxu0 %v254
    %1482 = vmatpush1.msra.mxu0 %v253
    %1483 = vmatprep.subr.mxu0 %v262
    %1484 = vmatpush1.msra.mxu0 %v261
    %1485 = vmatprep.subr.mxu0 %v270
    %1486 = vmatpush1.msra.mxu0 %v269
    %1487 = vmatprep.subr.mxu0 %v278
    %1488 = vmatpush1.msra.mxu0 %v277
    %1489 = vmatprep.subr.mxu0 %v286
    %1490 = vmatpush1.msra.mxu0 %v285
    %1491 = vmatprep.subr.mxu0 %v294
    %1492 = vmatpush1.msra.mxu0 %v293
    %1493 = vmatprep.subr.mxu0 %v302
    %1494 = vmatpush1.msra.mxu0 %v301
    %1495 = vmatprep.subr.mxu0 %v310
    %1496 = vmatpush1.msra.mxu0 %v309
    %1497 = vmatprep.subr.mxu0 %v318
    %1498 = vmatpush1.msra.mxu0 %v317
    %1499 = vmatprep.subr.mxu0 %v326
    %1500 = vmatpush1.msra.mxu0 %v325
    %1501 = vmatprep.subr.mxu0 %v334
    %1502 = vmatpush1.msra.mxu0 %v333
    %1503 = vmatprep.subr.mxu0 %v342
    %1504 = vmatpush1.msra.mxu0 %v341
    %1505 = vmatprep.mubr.f32.mxu0 %v84
    %1506 = vmatmul.mubr.f32.gmra.mrb[0].mxu0 %v83
    %v1507 = vpop.f32.mrb[0].mxu0
    %v1508 = vadd.f32 %v1128, %v1507
    %v1509 = vpop.f32.mrb[0].mxu0
    %v1510 = vadd.f32 %v1132, %v1509
    %1511 = vdwg.mxu0
    %1512 = vmatprep.subr.mxu0 %v350
    %1513 = vmatpush1.msra.mxu0 %v349
    %1514 = vmatprep.subr.mxu0 %v358
    %1515 = vmatpush1.msra.mxu0 %v357
    %1516 = vmatprep.subr.mxu0 %v366
    %1517 = vmatpush1.msra.mxu0 %v365
    %1518 = vmatprep.subr.mxu0 %v374
    %1519 = vmatpush1.msra.mxu0 %v373
    %1520 = vmatprep.subr.mxu0 %v382
    %1521 = vmatpush1.msra.mxu0 %v381
    %1522 = vmatprep.subr.mxu0 %v390
    %1523 = vmatpush1.msra.mxu0 %v389
    %1524 = vmatprep.subr.mxu0 %v398
    %1525 = vmatpush1.msra.mxu0 %v397
    %1526 = vmatprep.subr.mxu0 %v406
    %1527 = vmatpush1.msra.mxu0 %v405
    %1528 = vmatprep.subr.mxu0 %v414
    %1529 = vmatpush1.msra.mxu0 %v413
    %1530 = vmatprep.subr.mxu0 %v422
    %1531 = vmatpush1.msra.mxu0 %v421
    %1532 = vmatprep.subr.mxu0 %v430
    %1533 = vmatpush1.msra.mxu0 %v429
    %1534 = vmatprep.subr.mxu0 %v438
    %1535 = vmatpush1.msra.mxu0 %v437
    %1536 = vmatprep.subr.mxu0 %v446
    %1537 = vmatpush1.msra.mxu0 %v445
    %1538 = vmatprep.subr.mxu0 %v454
    %1539 = vmatpush1.msra.mxu0 %v453
    %1540 = vmatprep.subr.mxu0 %v462
    %1541 = vmatpush1.msra.mxu0 %v461
    %1542 = vmatprep.subr.mxu0 %v470
    %1543 = vmatpush1.msra.mxu0 %v469
    %1544 = vmatprep.subr.mxu0 %v478
    %1545 = vmatpush1.msra.mxu0 %v477
    %1546 = vmatprep.subr.mxu0 %v486
    %1547 = vmatpush1.msra.mxu0 %v485
    %1548 = vmatprep.subr.mxu0 %v494
    %1549 = vmatpush1.msra.mxu0 %v493
    %1550 = vmatprep.subr.mxu0 %v502
    %1551 = vmatpush1.msra.mxu0 %v501
    %1552 = vmatprep.subr.mxu0 %v510
    %1553 = vmatpush1.msra.mxu0 %v509
    %1554 = vmatprep.subr.mxu0 %v518
    %1555 = vmatpush1.msra.mxu0 %v517
    %1556 = vmatprep.subr.mxu0 %v526
    %1557 = vmatpush1.msra.mxu0 %v525
    %1558 = vmatprep.subr.mxu0 %v534
    %1559 = vmatpush1.msra.mxu0 %v533
    %1560 = vmatprep.subr.mxu0 %v542
    %1561 = vmatpush1.msra.mxu0 %v541
    %1562 = vmatprep.subr.mxu0 %v550
    %1563 = vmatpush1.msra.mxu0 %v549
    %1564 = vmatprep.subr.mxu0 %v558
    %1565 = vmatpush1.msra.mxu0 %v557
    %1566 = vmatprep.subr.mxu0 %v566
    %1567 = vmatpush1.msra.mxu0 %v565
    %1568 = vmatprep.subr.mxu0 %v574
    %1569 = vmatpush1.msra.mxu0 %v573
    %1570 = vmatprep.subr.mxu0 %v582
    %1571 = vmatpush1.msra.mxu0 %v581
    %1572 = vmatprep.subr.mxu0 %v590
    %1573 = vmatpush1.msra.mxu0 %v589
    %1574 = vmatprep.subr.mxu0 %v598
    %1575 = vmatpush1.msra.mxu0 %v597
    %1576 = vmatprep.mubr.f32.mxu0 %v86
    %1577 = vmatmul.mubr.f32.gmra.mrb[0].mxu0 %v85
    %v1578 = vpop.f32.mrb[0].mxu0
    %v1579 = vadd.f32 %v1508, %v1578
    %v1580 = vpop.f32.mrb[0].mxu0
    %v1581 = vadd.f32 %v1510, %v1580
    %1582 = vdwg.mxu0
    %1583 = vmatprep.subr.mxu0 %v606
    %1584 = vmatpush1.msra.mxu0 %v605
    %1585 = vmatprep.subr.mxu0 %v614
    %1586 = vmatpush1.msra.mxu0 %v613
    %1587 = vmatprep.subr.mxu0 %v622
    %1588 = vmatpush1.msra.mxu0 %v621
    %1589 = vmatprep.subr.mxu0 %v630
    %1590 = vmatpush1.msra.mxu0 %v629
    %1591 = vmatprep.subr.mxu0 %v638
    %1592 = vmatpush1.msra.mxu0 %v637
    %1593 = vmatprep.subr.mxu0 %v646
    %1594 = vmatpush1.msra.mxu0 %v645
    %1595 = vmatprep.subr.mxu0 %v654
    %1596 = vmatpush1.msra.mxu0 %v653
    %1597 = vmatprep.subr.mxu0 %v662
    %1598 = vmatpush1.msra.mxu0 %v661
    %1599 = vmatprep.subr.mxu0 %v670
    %1600 = vmatpush1.msra.mxu0 %v669
    %1601 = vmatprep.subr.mxu0 %v678
    %1602 = vmatpush1.msra.mxu0 %v677
    %1603 = vmatprep.subr.mxu0 %v686
    %1604 = vmatpush1.msra.mxu0 %v685
    %1605 = vmatprep.subr.mxu0 %v694
    %1606 = vmatpush1.msra.mxu0 %v693
    %1607 = vmatprep.subr.mxu0 %v702
    %1608 = vmatpush1.msra.mxu0 %v701
    %1609 = vmatprep.subr.mxu0 %v710
    %1610 = vmatpush1.msra.mxu0 %v709
    %1611 = vmatprep.subr.mxu0 %v718
    %1612 = vmatpush1.msra.mxu0 %v717
    %1613 = vmatprep.subr.mxu0 %v726
    %1614 = vmatpush1.msra.mxu0 %v725
    %1615 = vmatprep.subr.mxu0 %v734
    %1616 = vmatpush1.msra.mxu0 %v733
    %1617 = vmatprep.subr.mxu0 %v742
    %1618 = vmatpush1.msra.mxu0 %v741
    %1619 = vmatprep.subr.mxu0 %v750
    %1620 = vmatpush1.msra.mxu0 %v749
    %1621 = vmatprep.subr.mxu0 %v758
    %1622 = vmatpush1.msra.mxu0 %v757
    %1623 = vmatprep.subr.mxu0 %v766
    %1624 = vmatpush1.msra.mxu0 %v765
    %1625 = vmatprep.subr.mxu0 %v774
    %1626 = vmatpush1.msra.mxu0 %v773
    %1627 = vmatprep.subr.mxu0 %v782
    %1628 = vmatpush1.msra.mxu0 %v781
    %1629 = vmatprep.subr.mxu0 %v790
    %1630 = vmatpush1.msra.mxu0 %v789
    %1631 = vmatprep.subr.mxu0 %v798
    %1632 = vmatpush1.msra.mxu0 %v797
    %1633 = vmatprep.subr.mxu0 %v806
    %1634 = vmatpush1.msra.mxu0 %v805
    %1635 = vmatprep.subr.mxu0 %v814
    %1636 = vmatpush1.msra.mxu0 %v813
    %1637 = vmatprep.subr.mxu0 %v822
    %1638 = vmatpush1.msra.mxu0 %v821
    %1639 = vmatprep.subr.mxu0 %v830
    %1640 = vmatpush1.msra.mxu0 %v829
    %1641 = vmatprep.subr.mxu0 %v838
    %1642 = vmatpush1.msra.mxu0 %v837
    %1643 = vmatprep.subr.mxu0 %v846
    %1644 = vmatpush1.msra.mxu0 %v845
    %1645 = vmatprep.subr.mxu0 %v854
    %1646 = vmatpush1.msra.mxu0 %v853
    %1647 = vmatprep.mubr.f32.mxu0 %v88
    %1648 = vmatmul.mubr.f32.gmra.mrb[0].mxu0 %v87
    %v1649 = vpop.f32.mrb[0].mxu0
    %v1650 = vadd.f32 %v1579, %v1649
    %v1651 = vpop.f32.mrb[0].mxu0
    %v1652 = vadd.f32 %v1581, %v1651
    %1653 = vdwg.mxu0
    %1654 = vmatprep.subr.mxu0 %v862
    %1655 = vmatpush1.msra.mxu0 %v861
    %1656 = vmatprep.subr.mxu0 %v870
    %1657 = vmatpush1.msra.mxu0 %v869
    %1658 = vmatprep.subr.mxu0 %v878
    %1659 = vmatpush1.msra.mxu0 %v877
    %1660 = vmatprep.subr.mxu0 %v886
    %1661 = vmatpush1.msra.mxu0 %v885
    %1662 = vmatprep.subr.mxu0 %v894
    %1663 = vmatpush1.msra.mxu0 %v893
    %1664 = vmatprep.subr.mxu0 %v902
    %1665 = vmatpush1.msra.mxu0 %v901
    %1666 = vmatprep.subr.mxu0 %v910
    %1667 = vmatpush1.msra.mxu0 %v909
    %1668 = vmatprep.subr.mxu0 %v918
    %1669 = vmatpush1.msra.mxu0 %v917
    %1670 = vmatprep.subr.mxu0 %v926
    %1671 = vmatpush1.msra.mxu0 %v925
    %1672 = vmatprep.subr.mxu0 %v934
    %1673 = vmatpush1.msra.mxu0 %v933
    %1674 = vmatprep.subr.mxu0 %v942
    %1675 = vmatpush1.msra.mxu0 %v941
    %1676 = vmatprep.subr.mxu0 %v950
    %1677 = vmatpush1.msra.mxu0 %v949
    %1678 = vmatprep.subr.mxu0 %v958
    %1679 = vmatpush1.msra.mxu0 %v957
    %1680 = vmatprep.subr.mxu0 %v966
    %1681 = vmatpush1.msra.mxu0 %v965
    %1682 = vmatprep.subr.mxu0 %v974
    %1683 = vmatpush1.msra.mxu0 %v973
    %1684 = vmatprep.subr.mxu0 %v982
    %1685 = vmatpush1.msra.mxu0 %v981
    %1686 = vmatprep.subr.mxu0 %v990
    %1687 = vmatpush1.msra.mxu0 %v989
    %1688 = vmatprep.subr.mxu0 %v998
    %1689 = vmatpush1.msra.mxu0 %v997
    %1690 = vmatprep.subr.mxu0 %v1006
    %1691 = vmatpush1.msra.mxu0 %v1005
    %1692 = vmatprep.subr.mxu0 %v1014
    %1693 = vmatpush1.msra.mxu0 %v1013
    %1694 = vmatprep.subr.mxu0 %v1022
    %1695 = vmatpush1.msra.mxu0 %v1021
    %1696 = vmatprep.subr.mxu0 %v1030
    %1697 = vmatpush1.msra.mxu0 %v1029
    %1698 = vmatprep.subr.mxu0 %v1038
    %1699 = vmatpush1.msra.mxu0 %v1037
    %1700 = vmatprep.subr.mxu0 %v1046
    %1701 = vmatpush1.msra.mxu0 %v1045
    %1702 = vmatprep.subr.mxu0 %v1054
    %1703 = vmatpush1.msra.mxu0 %v1053
    %1704 = vmatprep.subr.mxu0 %v1062
    %1705 = vmatpush1.msra.mxu0 %v1061
    %1706 = vmatprep.subr.mxu0 %v1070
    %1707 = vmatpush1.msra.mxu0 %v1069
    %1708 = vmatprep.subr.mxu0 %v1078
    %1709 = vmatpush1.msra.mxu0 %v1077
    %1710 = vmatprep.subr.mxu0 %v1086
    %1711 = vmatpush1.msra.mxu0 %v1085
    %1712 = vmatprep.subr.mxu0 %v1094
    %1713 = vmatpush1.msra.mxu0 %v1093
    %1714 = vmatprep.subr.mxu0 %v1102
    %1715 = vmatpush1.msra.mxu0 %v1101
    %1716 = vmatprep.subr.mxu0 %v1110
    %1717 = vmatpush1.msra.mxu0 %v1109
    %1718 = vmatprep.mubr.f32.mxu0 %v90
    %1719 = vmatmul.mubr.f32.gmra.mrb[0].mxu0 %v89
    %v1720 = vpop.f32.mrb[0].mxu0
    %v1721 = vadd.f32 %v1650, %v1720
    %v1722 = vpop.f32.mrb[0].mxu0
    %v1723 = vadd.f32 %v1652, %v1722
    %1724 = vdwg.mxu0
    %1725 = vmatprep.subr.mxu0 %v96
    %1726 = vmatpush1.msra.mxu0 %v95
    %1727 = vmatprep.subr.mxu0 %v104
    %1728 = vmatpush1.msra.mxu0 %v103
    %1729 = vmatprep.subr.mxu0 %v112
    %1730 = vmatpush1.msra.mxu0 %v111
    %1731 = vmatprep.subr.mxu0 %v120
    %1732 = vmatpush1.msra.mxu0 %v119
    %1733 = vmatprep.subr.mxu0 %v128
    %1734 = vmatpush1.msra.mxu0 %v127
    %1735 = vmatprep.subr.mxu0 %v136
    %1736 = vmatpush1.msra.mxu0 %v135
    %1737 = vmatprep.subr.mxu0 %v144
    %1738 = vmatpush1.msra.mxu0 %v143
    %1739 = vmatprep.subr.mxu0 %v152
    %1740 = vmatpush1.msra.mxu0 %v151
    %1741 = vmatprep.subr.mxu0 %v160
    %1742 = vmatpush1.msra.mxu0 %v159
    %1743 = vmatprep.subr.mxu0 %v168
    %1744 = vmatpush1.msra.mxu0 %v167
    %1745 = vmatprep.subr.mxu0 %v176
    %1746 = vmatpush1.msra.mxu0 %v175
    %1747 = vmatprep.subr.mxu0 %v184
    %1748 = vmatpush1.msra.mxu0 %v183
    %1749 = vmatprep.subr.mxu0 %v192
    %1750 = vmatpush1.msra.mxu0 %v191
    %1751 = vmatprep.subr.mxu0 %v200
    %1752 = vmatpush1.msra.mxu0 %v199
    %1753 = vmatprep.subr.mxu0 %v208
    %1754 = vmatpush1.msra.mxu0 %v207
    %1755 = vmatprep.subr.mxu0 %v216
    %1756 = vmatpush1.msra.mxu0 %v215
    %1757 = vmatprep.subr.mxu0 %v224
    %1758 = vmatpush1.msra.mxu0 %v223
    %1759 = vmatprep.subr.mxu0 %v232
    %1760 = vmatpush1.msra.mxu0 %v231
    %1761 = vmatprep.subr.mxu0 %v240
    %1762 = vmatpush1.msra.mxu0 %v239
    %1763 = vmatprep.subr.mxu0 %v248
    %1764 = vmatpush1.msra.mxu0 %v247
    %1765 = vmatprep.subr.mxu0 %v256
    %1766 = vmatpush1.msra.mxu0 %v255
    %1767 = vmatprep.subr.mxu0 %v264
    %1768 = vmatpush1.msra.mxu0 %v263
    %1769 = vmatprep.subr.mxu0 %v272
    %1770 = vmatpush1.msra.mxu0 %v271
    %1771 = vmatprep.subr.mxu0 %v280
    %1772 = vmatpush1.msra.mxu0 %v279
    %1773 = vmatprep.subr.mxu0 %v288
    %1774 = vmatpush1.msra.mxu0 %v287
    %1775 = vmatprep.subr.mxu0 %v296
    %1776 = vmatpush1.msra.mxu0 %v295
    %1777 = vmatprep.subr.mxu0 %v304
    %1778 = vmatpush1.msra.mxu0 %v303
    %1779 = vmatprep.subr.mxu0 %v312
    %1780 = vmatpush1.msra.mxu0 %v311
    %1781 = vmatprep.subr.mxu0 %v320
    %1782 = vmatpush1.msra.mxu0 %v319
    %1783 = vmatprep.subr.mxu0 %v328
    %1784 = vmatpush1.msra.mxu0 %v327
    %1785 = vmatprep.subr.mxu0 %v336
    %1786 = vmatpush1.msra.mxu0 %v335
    %1787 = vmatprep.subr.mxu0 %v344
    %1788 = vmatpush1.msra.mxu0 %v343
    %1789 = vmatprep.mubr.f32.mxu0 %v84
    %1790 = vmatmul.mubr.f32.gmra.mrb[0].mxu0 %v83
    %v1791 = vpop.f32.mrb[0].mxu0
    %v1792 = vadd.f32 %v1136, %v1791
    %v1793 = vpop.f32.mrb[0].mxu0
    %v1794 = vadd.f32 %v1140, %v1793
    %1795 = vdwg.mxu0
    %1796 = vmatprep.subr.mxu0 %v352
    %1797 = vmatpush1.msra.mxu0 %v351
    %1798 = vmatprep.subr.mxu0 %v360
    %1799 = vmatpush1.msra.mxu0 %v359
    %1800 = vmatprep.subr.mxu0 %v368
    %1801 = vmatpush1.msra.mxu0 %v367
    %1802 = vmatprep.subr.mxu0 %v376
    %1803 = vmatpush1.msra.mxu0 %v375
    %1804 = vmatprep.subr.mxu0 %v384
    %1805 = vmatpush1.msra.mxu0 %v383
    %1806 = vmatprep.subr.mxu0 %v392
    %1807 = vmatpush1.msra.mxu0 %v391
    %1808 = vmatprep.subr.mxu0 %v400
    %1809 = vmatpush1.msra.mxu0 %v399
    %1810 = vmatprep.subr.mxu0 %v408
    %1811 = vmatpush1.msra.mxu0 %v407
    %1812 = vmatprep.subr.mxu0 %v416
    %1813 = vmatpush1.msra.mxu0 %v415
    %1814 = vmatprep.subr.mxu0 %v424
    %1815 = vmatpush1.msra.mxu0 %v423
    %1816 = vmatprep.subr.mxu0 %v432
    %1817 = vmatpush1.msra.mxu0 %v431
    %1818 = vmatprep.subr.mxu0 %v440
    %1819 = vmatpush1.msra.mxu0 %v439
    %1820 = vmatprep.subr.mxu0 %v448
    %1821 = vmatpush1.msra.mxu0 %v447
    %1822 = vmatprep.subr.mxu0 %v456
    %1823 = vmatpush1.msra.mxu0 %v455
    %1824 = vmatprep.subr.mxu0 %v464
    %1825 = vmatpush1.msra.mxu0 %v463
    %1826 = vmatprep.subr.mxu0 %v472
    %1827 = vmatpush1.msra.mxu0 %v471
    %1828 = vmatprep.subr.mxu0 %v480
    %1829 = vmatpush1.msra.mxu0 %v479
    %1830 = vmatprep.subr.mxu0 %v488
    %1831 = vmatpush1.msra.mxu0 %v487
    %1832 = vmatprep.subr.mxu0 %v496
    %1833 = vmatpush1.msra.mxu0 %v495
    %1834 = vmatprep.subr.mxu0 %v504
    %1835 = vmatpush1.msra.mxu0 %v503
    %1836 = vmatprep.subr.mxu0 %v512
    %1837 = vmatpush1.msra.mxu0 %v511
    %1838 = vmatprep.subr.mxu0 %v520
    %1839 = vmatpush1.msra.mxu0 %v519
    %1840 = vmatprep.subr.mxu0 %v528
    %1841 = vmatpush1.msra.mxu0 %v527
    %1842 = vmatprep.subr.mxu0 %v536
    %1843 = vmatpush1.msra.mxu0 %v535
    %1844 = vmatprep.subr.mxu0 %v544
    %1845 = vmatpush1.msra.mxu0 %v543
    %1846 = vmatprep.subr.mxu0 %v552
    %1847 = vmatpush1.msra.mxu0 %v551
    %1848 = vmatprep.subr.mxu0 %v560
    %1849 = vmatpush1.msra.mxu0 %v559
    %1850 = vmatprep.subr.mxu0 %v568
    %1851 = vmatpush1.msra.mxu0 %v567
    %1852 = vmatprep.subr.mxu0 %v576
    %1853 = vmatpush1.msra.mxu0 %v575
    %1854 = vmatprep.subr.mxu0 %v584
    %1855 = vmatpush1.msra.mxu0 %v583
    %1856 = vmatprep.subr.mxu0 %v592
    %1857 = vmatpush1.msra.mxu0 %v591
    %1858 = vmatprep.subr.mxu0 %v600
    %1859 = vmatpush1.msra.mxu0 %v599
    %1860 = vmatprep.mubr.f32.mxu0 %v86
    %1861 = vmatmul.mubr.f32.gmra.mrb[0].mxu0 %v85
    %v1862 = vpop.f32.mrb[0].mxu0
    %v1863 = vadd.f32 %v1792, %v1862
    %v1864 = vpop.f32.mrb[0].mxu0
    %v1865 = vadd.f32 %v1794, %v1864
    %1866 = vdwg.mxu0
    %1867 = vmatprep.subr.mxu0 %v608
    %1868 = vmatpush1.msra.mxu0 %v607
    %1869 = vmatprep.subr.mxu0 %v616
    %1870 = vmatpush1.msra.mxu0 %v615
    %1871 = vmatprep.subr.mxu0 %v624
    %1872 = vmatpush1.msra.mxu0 %v623
    %1873 = vmatprep.subr.mxu0 %v632
    %1874 = vmatpush1.msra.mxu0 %v631
    %1875 = vmatprep.subr.mxu0 %v640
    %1876 = vmatpush1.msra.mxu0 %v639
    %1877 = vmatprep.subr.mxu0 %v648
    %1878 = vmatpush1.msra.mxu0 %v647
    %1879 = vmatprep.subr.mxu0 %v656
    %1880 = vmatpush1.msra.mxu0 %v655
    %1881 = vmatprep.subr.mxu0 %v664
    %1882 = vmatpush1.msra.mxu0 %v663
    %1883 = vmatprep.subr.mxu0 %v672
    %1884 = vmatpush1.msra.mxu0 %v671
    %1885 = vmatprep.subr.mxu0 %v680
    %1886 = vmatpush1.msra.mxu0 %v679
    %1887 = vmatprep.subr.mxu0 %v688
    %1888 = vmatpush1.msra.mxu0 %v687
    %1889 = vmatprep.subr.mxu0 %v696
    %1890 = vmatpush1.msra.mxu0 %v695
    %1891 = vmatprep.subr.mxu0 %v704
    %1892 = vmatpush1.msra.mxu0 %v703
    %1893 = vmatprep.subr.mxu0 %v712
    %1894 = vmatpush1.msra.mxu0 %v711
    %1895 = vmatprep.subr.mxu0 %v720
    %1896 = vmatpush1.msra.mxu0 %v719
    %1897 = vmatprep.subr.mxu0 %v728
    %1898 = vmatpush1.msra.mxu0 %v727
    %1899 = vmatprep.subr.mxu0 %v736
    %1900 = vmatpush1.msra.mxu0 %v735
    %1901 = vmatprep.subr.mxu0 %v744
    %1902 = vmatpush1.msra.mxu0 %v743
    %1903 = vmatprep.subr.mxu0 %v752
    %1904 = vmatpush1.msra.mxu0 %v751
    %1905 = vmatprep.subr.mxu0 %v760
    %1906 = vmatpush1.msra.mxu0 %v759
    %1907 = vmatprep.subr.mxu0 %v768
    %1908 = vmatpush1.msra.mxu0 %v767
    %1909 = vmatprep.subr.mxu0 %v776
    %1910 = vmatpush1.msra.mxu0 %v775
    %1911 = vmatprep.subr.mxu0 %v784
    %1912 = vmatpush1.msra.mxu0 %v783
    %1913 = vmatprep.subr.mxu0 %v792
    %1914 = vmatpush1.msra.mxu0 %v791
    %1915 = vmatprep.subr.mxu0 %v800
    %1916 = vmatpush1.msra.mxu0 %v799
    %1917 = vmatprep.subr.mxu0 %v808
    %1918 = vmatpush1.msra.mxu0 %v807
    %1919 = vmatprep.subr.mxu0 %v816
    %1920 = vmatpush1.msra.mxu0 %v815
    %1921 = vmatprep.subr.mxu0 %v824
    %1922 = vmatpush1.msra.mxu0 %v823
    %1923 = vmatprep.subr.mxu0 %v832
    %1924 = vmatpush1.msra.mxu0 %v831
    %1925 = vmatprep.subr.mxu0 %v840
    %1926 = vmatpush1.msra.mxu0 %v839
    %1927 = vmatprep.subr.mxu0 %v848
    %1928 = vmatpush1.msra.mxu0 %v847
    %1929 = vmatprep.subr.mxu0 %v856
    %1930 = vmatpush1.msra.mxu0 %v855
    %1931 = vmatprep.mubr.f32.mxu0 %v88
    %1932 = vmatmul.mubr.f32.gmra.mrb[0].mxu0 %v87
    %v1933 = vpop.f32.mrb[0].mxu0
    %v1934 = vadd.f32 %v1863, %v1933
    %v1935 = vpop.f32.mrb[0].mxu0
    %v1936 = vadd.f32 %v1865, %v1935
    %1937 = vdwg.mxu0
    %1938 = vmatprep.subr.mxu0 %v864
    %1939 = vmatpush1.msra.mxu0 %v863
    %1940 = vmatprep.subr.mxu0 %v872
    %1941 = vmatpush1.msra.mxu0 %v871
    %1942 = vmatprep.subr.mxu0 %v880
    %1943 = vmatpush1.msra.mxu0 %v879
    %1944 = vmatprep.subr.mxu0 %v888
    %1945 = vmatpush1.msra.mxu0 %v887
    %1946 = vmatprep.subr.mxu0 %v896
    %1947 = vmatpush1.msra.mxu0 %v895
    %1948 = vmatprep.subr.mxu0 %v904
    %1949 = vmatpush1.msra.mxu0 %v903
    %1950 = vmatprep.subr.mxu0 %v912
    %1951 = vmatpush1.msra.mxu0 %v911
    %1952 = vmatprep.subr.mxu0 %v920
    %1953 = vmatpush1.msra.mxu0 %v919
    %1954 = vmatprep.subr.mxu0 %v928
    %1955 = vmatpush1.msra.mxu0 %v927
    %1956 = vmatprep.subr.mxu0 %v936
    %1957 = vmatpush1.msra.mxu0 %v935
    %1958 = vmatprep.subr.mxu0 %v944
    %1959 = vmatpush1.msra.mxu0 %v943
    %1960 = vmatprep.subr.mxu0 %v952
    %1961 = vmatpush1.msra.mxu0 %v951
    %1962 = vmatprep.subr.mxu0 %v960
    %1963 = vmatpush1.msra.mxu0 %v959
    %1964 = vmatprep.subr.mxu0 %v968
    %1965 = vmatpush1.msra.mxu0 %v967
    %1966 = vmatprep.subr.mxu0 %v976
    %1967 = vmatpush1.msra.mxu0 %v975
    %1968 = vmatprep.subr.mxu0 %v984
    %1969 = vmatpush1.msra.mxu0 %v983
    %1970 = vmatprep.subr.mxu0 %v992
    %1971 = vmatpush1.msra.mxu0 %v991
    %1972 = vmatprep.subr.mxu0 %v1000
    %1973 = vmatpush1.msra.mxu0 %v999
    %1974 = vmatprep.subr.mxu0 %v1008
    %1975 = vmatpush1.msra.mxu0 %v1007
    %1976 = vmatprep.subr.mxu0 %v1016
    %1977 = vmatpush1.msra.mxu0 %v1015
    %1978 = vmatprep.subr.mxu0 %v1024
    %1979 = vmatpush1.msra.mxu0 %v1023
    %1980 = vmatprep.subr.mxu0 %v1032
    %1981 = vmatpush1.msra.mxu0 %v1031
    %1982 = vmatprep.subr.mxu0 %v1040
    %1983 = vmatpush1.msra.mxu0 %v1039
    %1984 = vmatprep.subr.mxu0 %v1048
    %1985 = vmatpush1.msra.mxu0 %v1047
    %1986 = vmatprep.subr.mxu0 %v1056
    %1987 = vmatpush1.msra.mxu0 %v1055
    %1988 = vmatprep.subr.mxu0 %v1064
    %1989 = vmatpush1.msra.mxu0 %v1063
    %1990 = vmatprep.subr.mxu0 %v1072
    %1991 = vmatpush1.msra.mxu0 %v1071
    %1992 = vmatprep.subr.mxu0 %v1080
    %1993 = vmatpush1.msra.mxu0 %v1079
    %1994 = vmatprep.subr.mxu0 %v1088
    %1995 = vmatpush1.msra.mxu0 %v1087
    %1996 = vmatprep.subr.mxu0 %v1096
    %1997 = vmatpush1.msra.mxu0 %v1095
    %1998 = vmatprep.subr.mxu0 %v1104
    %1999 = vmatpush1.msra.mxu0 %v1103
    %2000 = vmatprep.subr.mxu0 %v1112
    %2001 = vmatpush1.msra.mxu0 %v1111
    %2002 = vmatprep.mubr.f32.mxu0 %v90
    %2003 = vmatmul.mubr.f32.gmra.mrb[0].mxu0 %v89
    %v2004 = vpop.f32.mrb[0].mxu0
    %v2005 = vadd.f32 %v1934, %v2004
    %v2006 = vpop.f32.mrb[0].mxu0
    %v2007 = vadd.f32 %v1936, %v2006
    %2008 = vdwg.mxu0
    %2009 = vmatprep.subr.mxu0 %v98
    %2010 = vmatpush1.msra.mxu0 %v97
    %2011 = vmatprep.subr.mxu0 %v106
    %2012 = vmatpush1.msra.mxu0 %v105
    %2013 = vmatprep.subr.mxu0 %v114
    %2014 = vmatpush1.msra.mxu0 %v113
    %2015 = vmatprep.subr.mxu0 %v122
    %2016 = vmatpush1.msra.mxu0 %v121
    %2017 = vmatprep.subr.mxu0 %v130
    %2018 = vmatpush1.msra.mxu0 %v129
    %2019 = vmatprep.subr.mxu0 %v138
    %2020 = vmatpush1.msra.mxu0 %v137
    %2021 = vmatprep.subr.mxu0 %v146
    %2022 = vmatpush1.msra.mxu0 %v145
    %2023 = vmatprep.subr.mxu0 %v154
    %2024 = vmatpush1.msra.mxu0 %v153
    %2025 = vmatprep.subr.mxu0 %v162
    %2026 = vmatpush1.msra.mxu0 %v161
    %2027 = vmatprep.subr.mxu0 %v170
    %2028 = vmatpush1.msra.mxu0 %v169
    %2029 = vmatprep.subr.mxu0 %v178
    %2030 = vmatpush1.msra.mxu0 %v177
    %2031 = vmatprep.subr.mxu0 %v186
    %2032 = vmatpush1.msra.mxu0 %v185
    %2033 = vmatprep.subr.mxu0 %v194
    %2034 = vmatpush1.msra.mxu0 %v193
    %2035 = vmatprep.subr.mxu0 %v202
    %2036 = vmatpush1.msra.mxu0 %v201
    %2037 = vmatprep.subr.mxu0 %v210
    %2038 = vmatpush1.msra.mxu0 %v209
    %2039 = vmatprep.subr.mxu0 %v218
    %2040 = vmatpush1.msra.mxu0 %v217
    %2041 = vmatprep.subr.mxu0 %v226
    %2042 = vmatpush1.msra.mxu0 %v225
    %2043 = vmatprep.subr.mxu0 %v234
    %2044 = vmatpush1.msra.mxu0 %v233
    %2045 = vmatprep.subr.mxu0 %v242
    %2046 = vmatpush1.msra.mxu0 %v241
    %2047 = vmatprep.subr.mxu0 %v250
    %2048 = vmatpush1.msra.mxu0 %v249
    %2049 = vmatprep.subr.mxu0 %v258
    %2050 = vmatpush1.msra.mxu0 %v257
    %2051 = vmatprep.subr.mxu0 %v266
    %2052 = vmatpush1.msra.mxu0 %v265
    %2053 = vmatprep.subr.mxu0 %v274
    %2054 = vmatpush1.msra.mxu0 %v273
    %2055 = vmatprep.subr.mxu0 %v282
    %2056 = vmatpush1.msra.mxu0 %v281
    %2057 = vmatprep.subr.mxu0 %v290
    %2058 = vmatpush1.msra.mxu0 %v289
    %2059 = vmatprep.subr.mxu0 %v298
    %2060 = vmatpush1.msra.mxu0 %v297
    %2061 = vmatprep.subr.mxu0 %v306
    %2062 = vmatpush1.msra.mxu0 %v305
    %2063 = vmatprep.subr.mxu0 %v314
    %2064 = vmatpush1.msra.mxu0 %v313
    %2065 = vmatprep.subr.mxu0 %v322
    %2066 = vmatpush1.msra.mxu0 %v321
    %2067 = vmatprep.subr.mxu0 %v330
    %2068 = vmatpush1.msra.mxu0 %v329
    %2069 = vmatprep.subr.mxu0 %v338
    %2070 = vmatpush1.msra.mxu0 %v337
    %2071 = vmatprep.subr.mxu0 %v346
    %2072 = vmatpush1.msra.mxu0 %v345
    %2073 = vmatprep.mubr.f32.mxu0 %v84
    %2074 = vmatmul.mubr.f32.gmra.mrb[0].mxu0 %v83
    %v2075 = vpop.f32.mrb[0].mxu0
    %v2076 = vadd.f32 %v1144, %v2075
    %v2077 = vpop.f32.mrb[0].mxu0
    %v2078 = vadd.f32 %v1148, %v2077
    %2079 = vdwg.mxu0
    %2080 = vmatprep.subr.mxu0 %v354
    %2081 = vmatpush1.msra.mxu0 %v353
    %2082 = vmatprep.subr.mxu0 %v362
    %2083 = vmatpush1.msra.mxu0 %v361
    %2084 = vmatprep.subr.mxu0 %v370
    %2085 = vmatpush1.msra.mxu0 %v369
    %2086 = vmatprep.subr.mxu0 %v378
    %2087 = vmatpush1.msra.mxu0 %v377
    %2088 = vmatprep.subr.mxu0 %v386
    %2089 = vmatpush1.msra.mxu0 %v385
    %2090 = vmatprep.subr.mxu0 %v394
    %2091 = vmatpush1.msra.mxu0 %v393
    %2092 = vmatprep.subr.mxu0 %v402
    %2093 = vmatpush1.msra.mxu0 %v401
    %2094 = vmatprep.subr.mxu0 %v410
    %2095 = vmatpush1.msra.mxu0 %v409
    %2096 = vmatprep.subr.mxu0 %v418
    %2097 = vmatpush1.msra.mxu0 %v417
    %2098 = vmatprep.subr.mxu0 %v426
    %2099 = vmatpush1.msra.mxu0 %v425
    %2100 = vmatprep.subr.mxu0 %v434
    %2101 = vmatpush1.msra.mxu0 %v433
    %2102 = vmatprep.subr.mxu0 %v442
    %2103 = vmatpush1.msra.mxu0 %v441
    %2104 = vmatprep.subr.mxu0 %v450
    %2105 = vmatpush1.msra.mxu0 %v449
    %2106 = vmatprep.subr.mxu0 %v458
    %2107 = vmatpush1.msra.mxu0 %v457
    %2108 = vmatprep.subr.mxu0 %v466
    %2109 = vmatpush1.msra.mxu0 %v465
    %2110 = vmatprep.subr.mxu0 %v474
    %2111 = vmatpush1.msra.mxu0 %v473
    %2112 = vmatprep.subr.mxu0 %v482
    %2113 = vmatpush1.msra.mxu0 %v481
    %2114 = vmatprep.subr.mxu0 %v490
    %2115 = vmatpush1.msra.mxu0 %v489
    %2116 = vmatprep.subr.mxu0 %v498
    %2117 = vmatpush1.msra.mxu0 %v497
    %2118 = vmatprep.subr.mxu0 %v506
    %2119 = vmatpush1.msra.mxu0 %v505
    %2120 = vmatprep.subr.mxu0 %v514
    %2121 = vmatpush1.msra.mxu0 %v513
    %2122 = vmatprep.subr.mxu0 %v522
    %2123 = vmatpush1.msra.mxu0 %v521
    %2124 = vmatprep.subr.mxu0 %v530
    %2125 = vmatpush1.msra.mxu0 %v529
    %2126 = vmatprep.subr.mxu0 %v538
    %2127 = vmatpush1.msra.mxu0 %v537
    %2128 = vmatprep.subr.mxu0 %v546
    %2129 = vmatpush1.msra.mxu0 %v545
    %2130 = vmatprep.subr.mxu0 %v554
    %2131 = vmatpush1.msra.mxu0 %v553
    %2132 = vmatprep.subr.mxu0 %v562
    %2133 = vmatpush1.msra.mxu0 %v561
    %2134 = vmatprep.subr.mxu0 %v570
    %2135 = vmatpush1.msra.mxu0 %v569
    %2136 = vmatprep.subr.mxu0 %v578
    %2137 = vmatpush1.msra.mxu0 %v577
    %2138 = vmatprep.subr.mxu0 %v586
    %2139 = vmatpush1.msra.mxu0 %v585
    %2140 = vmatprep.subr.mxu0 %v594
    %2141 = vmatpush1.msra.mxu0 %v593
    %2142 = vmatprep.subr.mxu0 %v602
    %2143 = vmatpush1.msra.mxu0 %v601
    %2144 = vmatprep.mubr.f32.mxu0 %v86
    %2145 = vmatmul.mubr.f32.gmra.mrb[0].mxu0 %v85
    %v2146 = vpop.f32.mrb[0].mxu0
    %v2147 = vadd.f32 %v2076, %v2146
    %v2148 = vpop.f32.mrb[0].mxu0
    %v2149 = vadd.f32 %v2078, %v2148
    %2150 = vdwg.mxu0
    %2151 = vmatprep.subr.mxu0 %v610
    %2152 = vmatpush1.msra.mxu0 %v609
    %2153 = vmatprep.subr.mxu0 %v618
    %2154 = vmatpush1.msra.mxu0 %v617
    %2155 = vmatprep.subr.mxu0 %v626
    %2156 = vmatpush1.msra.mxu0 %v625
    %2157 = vmatprep.subr.mxu0 %v634
    %2158 = vmatpush1.msra.mxu0 %v633
    %2159 = vmatprep.subr.mxu0 %v642
    %2160 = vmatpush1.msra.mxu0 %v641
    %2161 = vmatprep.subr.mxu0 %v650
    %2162 = vmatpush1.msra.mxu0 %v649
    %2163 = vmatprep.subr.mxu0 %v658
    %2164 = vmatpush1.msra.mxu0 %v657
    %2165 = vmatprep.subr.mxu0 %v666
    %2166 = vmatpush1.msra.mxu0 %v665
    %2167 = vmatprep.subr.mxu0 %v674
    %2168 = vmatpush1.msra.mxu0 %v673
    %2169 = vmatprep.subr.mxu0 %v682
    %2170 = vmatpush1.msra.mxu0 %v681
    %2171 = vmatprep.subr.mxu0 %v690
    %2172 = vmatpush1.msra.mxu0 %v689
    %2173 = vmatprep.subr.mxu0 %v698
    %2174 = vmatpush1.msra.mxu0 %v697
    %2175 = vmatprep.subr.mxu0 %v706
    %2176 = vmatpush1.msra.mxu0 %v705
    %2177 = vmatprep.subr.mxu0 %v714
    %2178 = vmatpush1.msra.mxu0 %v713
    %2179 = vmatprep.subr.mxu0 %v722
    %2180 = vmatpush1.msra.mxu0 %v721
    %2181 = vmatprep.subr.mxu0 %v730
    %2182 = vmatpush1.msra.mxu0 %v729
    %2183 = vmatprep.subr.mxu0 %v738
    %2184 = vmatpush1.msra.mxu0 %v737
    %2185 = vmatprep.subr.mxu0 %v746
    %2186 = vmatpush1.msra.mxu0 %v745
    %2187 = vmatprep.subr.mxu0 %v754
    %2188 = vmatpush1.msra.mxu0 %v753
    %2189 = vmatprep.subr.mxu0 %v762
    %2190 = vmatpush1.msra.mxu0 %v761
    %2191 = vmatprep.subr.mxu0 %v770
    %2192 = vmatpush1.msra.mxu0 %v769
    %2193 = vmatprep.subr.mxu0 %v778
    %2194 = vmatpush1.msra.mxu0 %v777
    %2195 = vmatprep.subr.mxu0 %v786
    %2196 = vmatpush1.msra.mxu0 %v785
    %2197 = vmatprep.subr.mxu0 %v794
    %2198 = vmatpush1.msra.mxu0 %v793
    %2199 = vmatprep.subr.mxu0 %v802
    %2200 = vmatpush1.msra.mxu0 %v801
    %2201 = vmatprep.subr.mxu0 %v810
    %2202 = vmatpush1.msra.mxu0 %v809
    %2203 = vmatprep.subr.mxu0 %v818
    %2204 = vmatpush1.msra.mxu0 %v817
    %2205 = vmatprep.subr.mxu0 %v826
    %2206 = vmatpush1.msra.mxu0 %v825
    %2207 = vmatprep.subr.mxu0 %v834
    %2208 = vmatpush1.msra.mxu0 %v833
    %2209 = vmatprep.subr.mxu0 %v842
    %2210 = vmatpush1.msra.mxu0 %v841
    %2211 = vmatprep.subr.mxu0 %v850
    %2212 = vmatpush1.msra.mxu0 %v849
    %2213 = vmatprep.subr.mxu0 %v858
    %2214 = vmatpush1.msra.mxu0 %v857
    %2215 = vmatprep.mubr.f32.mxu0 %v88
    %2216 = vmatmul.mubr.f32.gmra.mrb[0].mxu0 %v87
    %v2217 = vpop.f32.mrb[0].mxu0
    %v2218 = vadd.f32 %v2147, %v2217
    %v2219 = vpop.f32.mrb[0].mxu0
    %v2220 = vadd.f32 %v2149, %v2219
    %2221 = vdwg.mxu0
    %2222 = vmatprep.subr.mxu0 %v866
    %2223 = vmatpush1.msra.mxu0 %v865
    %2224 = vmatprep.subr.mxu0 %v874
    %2225 = vmatpush1.msra.mxu0 %v873
    %2226 = vmatprep.subr.mxu0 %v882
    %2227 = vmatpush1.msra.mxu0 %v881
    %2228 = vmatprep.subr.mxu0 %v890
    %2229 = vmatpush1.msra.mxu0 %v889
    %2230 = vmatprep.subr.mxu0 %v898
    %2231 = vmatpush1.msra.mxu0 %v897
    %2232 = vmatprep.subr.mxu0 %v906
    %2233 = vmatpush1.msra.mxu0 %v905
    %2234 = vmatprep.subr.mxu0 %v914
    %2235 = vmatpush1.msra.mxu0 %v913
    %2236 = vmatprep.subr.mxu0 %v922
    %2237 = vmatpush1.msra.mxu0 %v921
    %2238 = vmatprep.subr.mxu0 %v930
    %2239 = vmatpush1.msra.mxu0 %v929
    %2240 = vmatprep.subr.mxu0 %v938
    %2241 = vmatpush1.msra.mxu0 %v937
    %2242 = vmatprep.subr.mxu0 %v946
    %2243 = vmatpush1.msra.mxu0 %v945
    %2244 = vmatprep.subr.mxu0 %v954
    %2245 = vmatpush1.msra.mxu0 %v953
    %2246 = vmatprep.subr.mxu0 %v962
    %2247 = vmatpush1.msra.mxu0 %v961
    %2248 = vmatprep.subr.mxu0 %v970
    %2249 = vmatpush1.msra.mxu0 %v969
    %2250 = vmatprep.subr.mxu0 %v978
    %2251 = vmatpush1.msra.mxu0 %v977
    %2252 = vmatprep.subr.mxu0 %v986
    %2253 = vmatpush1.msra.mxu0 %v985
    %2254 = vmatprep.subr.mxu0 %v994
    %2255 = vmatpush1.msra.mxu0 %v993
    %2256 = vmatprep.subr.mxu0 %v1002
    %2257 = vmatpush1.msra.mxu0 %v1001
    %2258 = vmatprep.subr.mxu0 %v1010
    %2259 = vmatpush1.msra.mxu0 %v1009
    %2260 = vmatprep.subr.mxu0 %v1018
    %2261 = vmatpush1.msra.mxu0 %v1017
    %2262 = vmatprep.subr.mxu0 %v1026
    %2263 = vmatpush1.msra.mxu0 %v1025
    %2264 = vmatprep.subr.mxu0 %v1034
    %2265 = vmatpush1.msra.mxu0 %v1033
    %2266 = vmatprep.subr.mxu0 %v1042
    %2267 = vmatpush1.msra.mxu0 %v1041
    %2268 = vmatprep.subr.mxu0 %v1050
    %2269 = vmatpush1.msra.mxu0 %v1049
    %2270 = vmatprep.subr.mxu0 %v1058
    %2271 = vmatpush1.msra.mxu0 %v1057
    %2272 = vmatprep.subr.mxu0 %v1066
    %2273 = vmatpush1.msra.mxu0 %v1065
    %2274 = vmatprep.subr.mxu0 %v1074
    %2275 = vmatpush1.msra.mxu0 %v1073
    %2276 = vmatprep.subr.mxu0 %v1082
    %2277 = vmatpush1.msra.mxu0 %v1081
    %2278 = vmatprep.subr.mxu0 %v1090
    %2279 = vmatpush1.msra.mxu0 %v1089
    %2280 = vmatprep.subr.mxu0 %v1098
    %2281 = vmatpush1.msra.mxu0 %v1097
    %2282 = vmatprep.subr.mxu0 %v1106
    %2283 = vmatpush1.msra.mxu0 %v1105
    %2284 = vmatprep.subr.mxu0 %v1114
    %2285 = vmatpush1.msra.mxu0 %v1113
    %2286 = vmatprep.mubr.f32.mxu0 %v90
    %2287 = vmatmul.mubr.f32.gmra.mrb[0].mxu0 %v89
    %v2288 = vpop.f32.mrb[0].mxu0
    %v2289 = vadd.f32 %v2218, %v2288
    %v2290 = vpop.f32.mrb[0].mxu0
    %v2291 = vadd.f32 %v2220, %v2290
    %2292 = vdwg.mxu0
    %v2293 = vmax.f32 %v1437, 0.0
    %v2294 = vmax.f32 %v1439, 0.0
    %v2295 = vmax.f32 %v1721, 0.0
    %v2296 = vmax.f32 %v1723, 0.0
    %v2297 = vmax.f32 %v2005, 0.0
    %v2298 = vmax.f32 %v2007, 0.0
    %v2299 = vmax.f32 %v2289, 0.0
    %v2300 = vmax.f32 %v2291, 0.0
    %v2301 = vld [vmem:[#allocation8] sm:$0xff]
    %v2302 = vld [vmem:[#allocation8 + $0x8] sm:$0xff]
    %v2303 = vld [vmem:[#allocation8 + $0x10] sm:$0xff]
    %v2304 = vld [vmem:[#allocation8 + $0x18] sm:$0xff]
    %v2305 = vld [vmem:[#allocation8 + $0x20] sm:$0xff]
    %v2306 = vld [vmem:[#allocation8 + $0x28] sm:$0xff]
    %v2307 = vld [vmem:[#allocation8 + $0x30] sm:$0xff]
    %v2308 = vld [vmem:[#allocation8 + $0x38] sm:$0xff]
    %v2309 = vld [vmem:[#allocation8 + $0x40] sm:$0xff]
    %v2310 = vld [vmem:[#allocation8 + $0x48] sm:$0xff]
    %v2311 = vld [vmem:[#allocation8 + $0x50] sm:$0xff]
    %v2312 = vld [vmem:[#allocation8 + $0x58] sm:$0xff]
    %v2313 = vld [vmem:[#allocation8 + $0x60] sm:$0xff]
    %v2314 = vld [vmem:[#allocation8 + $0x68] sm:$0xff]
    %v2315 = vld [vmem:[#allocation8 + $0x70] sm:$0xff]
    %v2316 = vld [vmem:[#allocation8 + $0x78] sm:$0xff]
    %v2317 = vld [vmem:[#allocation8 + $0x80] sm:$0xff]
    %v2318 = vld [vmem:[#allocation8 + $0x88] sm:$0xff]
    %v2319 = vld [vmem:[#allocation8 + $0x90] sm:$0xff]
    %v2320 = vld [vmem:[#allocation8 + $0x98] sm:$0xff]
    %v2321 = vld [vmem:[#allocation8 + $0xa0] sm:$0xff]
    %v2322 = vld [vmem:[#allocation8 + $0xa8] sm:$0xff]
    %v2323 = vld [vmem:[#allocation8 + $0xb0] sm:$0xff]
    %v2324 = vld [vmem:[#allocation8 + $0xb8] sm:$0xff]
    %v2325 = vld [vmem:[#allocation8 + $0xc0] sm:$0xff]
    %v2326 = vld [vmem:[#allocation8 + $0xc8] sm:$0xff]
    %v2327 = vld [vmem:[#allocation8 + $0xd0] sm:$0xff]
    %v2328 = vld [vmem:[#allocation8 + $0xd8] sm:$0xff]
    %v2329 = vld [vmem:[#allocation8 + $0xe0] sm:$0xff]
    %v2330 = vld [vmem:[#allocation8 + $0xe8] sm:$0xff]
    %v2331 = vld [vmem:[#allocation8 + $0xf0] sm:$0xff]
    %v2332 = vld [vmem:[#allocation8 + $0xf8] sm:$0xff]
    %v2333 = vld [vmem:[#allocation8 + $0x100] sm:$0xff]
    %v2334 = vld [vmem:[#allocation8 + $0x108] sm:$0xff]
    %v2335 = vld [vmem:[#allocation8 + $0x110] sm:$0xff]
    %v2336 = vld [vmem:[#allocation8 + $0x118] sm:$0xff]
    %v2337 = vld [vmem:[#allocation8 + $0x120] sm:$0xff]
    %v2338 = vld [vmem:[#allocation8 + $0x128] sm:$0xff]
    %v2339 = vld [vmem:[#allocation8 + $0x130] sm:$0xff]
    %v2340 = vld [vmem:[#allocation8 + $0x138] sm:$0xff]
    %v2341 = vld [vmem:[#allocation8 + $0x140] sm:$0xff]
    %v2342 = vld [vmem:[#allocation8 + $0x148] sm:$0xff]
    %v2343 = vld [vmem:[#allocation8 + $0x150] sm:$0xff]
    %v2344 = vld [vmem:[#allocation8 + $0x158] sm:$0xff]
    %v2345 = vld [vmem:[#allocation8 + $0x160] sm:$0xff]
    %v2346 = vld [vmem:[#allocation8 + $0x168] sm:$0xff]
    %v2347 = vld [vmem:[#allocation8 + $0x170] sm:$0xff]
    %v2348 = vld [vmem:[#allocation8 + $0x178] sm:$0xff]
    %v2349 = vld [vmem:[#allocation8 + $0x180] sm:$0xff]
    %v2350 = vld [vmem:[#allocation8 + $0x188] sm:$0xff]
    %v2351 = vld [vmem:[#allocation8 + $0x190] sm:$0xff]
    %v2352 = vld [vmem:[#allocation8 + $0x198] sm:$0xff]
    %v2353 = vld [vmem:[#allocation8 + $0x1a0] sm:$0xff]
    %v2354 = vld [vmem:[#allocation8 + $0x1a8] sm:$0xff]
    %v2355 = vld [vmem:[#allocation8 + $0x1b0] sm:$0xff]
    %v2356 = vld [vmem:[#allocation8 + $0x1b8] sm:$0xff]
    %v2357 = vld [vmem:[#allocation8 + $0x1c0] sm:$0xff]
    %v2358 = vld [vmem:[#allocation8 + $0x1c8] sm:$0xff]
    %v2359 = vld [vmem:[#allocation8 + $0x1d0] sm:$0xff]
    %v2360 = vld [vmem:[#allocation8 + $0x1d8] sm:$0xff]
    %v2361 = vld [vmem:[#allocation8 + $0x1e0] sm:$0xff]
    %v2362 = vld [vmem:[#allocation8 + $0x1e8] sm:$0xff]
    %v2363 = vld [vmem:[#allocation8 + $0x1f0] sm:$0xff]
    %v2364 = vld [vmem:[#allocation8 + $0x1f8] sm:$0xff]
    %v2365 = vld [vmem:[#allocation8 + $0x200] sm:$0xff]
    %v2366 = vld [vmem:[#allocation8 + $0x208] sm:$0xff]
    %v2367 = vld [vmem:[#allocation8 + $0x210] sm:$0xff]
    %v2368 = vld [vmem:[#allocation8 + $0x218] sm:$0xff]
    %v2369 = vld [vmem:[#allocation8 + $0x220] sm:$0xff]
    %v2370 = vld [vmem:[#allocation8 + $0x228] sm:$0xff]
    %v2371 = vld [vmem:[#allocation8 + $0x230] sm:$0xff]
    %v2372 = vld [vmem:[#allocation8 + $0x238] sm:$0xff]
    %v2373 = vld [vmem:[#allocation8 + $0x240] sm:$0xff]
    %v2374 = vld [vmem:[#allocation8 + $0x248] sm:$0xff]
    %v2375 = vld [vmem:[#allocation8 + $0x250] sm:$0xff]
    %v2376 = vld [vmem:[#allocation8 + $0x258] sm:$0xff]
    %v2377 = vld [vmem:[#allocation8 + $0x260] sm:$0xff]
    %v2378 = vld [vmem:[#allocation8 + $0x268] sm:$0xff]
    %v2379 = vld [vmem:[#allocation8 + $0x270] sm:$0xff]
    %v2380 = vld [vmem:[#allocation8 + $0x278] sm:$0xff]
    %v2381 = vld [vmem:[#allocation8 + $0x280] sm:$0xff]
    %v2382 = vld [vmem:[#allocation8 + $0x288] sm:$0xff]
    %v2383 = vld [vmem:[#allocation8 + $0x290] sm:$0xff]
    %v2384 = vld [vmem:[#allocation8 + $0x298] sm:$0xff]
    %v2385 = vld [vmem:[#allocation8 + $0x2a0] sm:$0xff]
    %v2386 = vld [vmem:[#allocation8 + $0x2a8] sm:$0xff]
    %v2387 = vld [vmem:[#allocation8 + $0x2b0] sm:$0xff]
    %v2388 = vld [vmem:[#allocation8 + $0x2b8] sm:$0xff]
    %v2389 = vld [vmem:[#allocation8 + $0x2c0] sm:$0xff]
    %v2390 = vld [vmem:[#allocation8 + $0x2c8] sm:$0xff]
    %v2391 = vld [vmem:[#allocation8 + $0x2d0] sm:$0xff]
    %v2392 = vld [vmem:[#allocation8 + $0x2d8] sm:$0xff]
    %v2393 = vld [vmem:[#allocation8 + $0x2e0] sm:$0xff]
    %v2394 = vld [vmem:[#allocation8 + $0x2e8] sm:$0xff]
    %v2395 = vld [vmem:[#allocation8 + $0x2f0] sm:$0xff]
    %v2396 = vld [vmem:[#allocation8 + $0x2f8] sm:$0xff]
    %v2397 = vld [vmem:[#allocation8 + $0x300] sm:$0xff]
    %v2398 = vld [vmem:[#allocation8 + $0x308] sm:$0xff]
    %v2399 = vld [vmem:[#allocation8 + $0x310] sm:$0xff]
    %v2400 = vld [vmem:[#allocation8 + $0x318] sm:$0xff]
    %v2401 = vld [vmem:[#allocation8 + $0x320] sm:$0xff]
    %v2402 = vld [vmem:[#allocation8 + $0x328] sm:$0xff]
    %v2403 = vld [vmem:[#allocation8 + $0x330] sm:$0xff]
    %v2404 = vld [vmem:[#allocation8 + $0x338] sm:$0xff]
    %v2405 = vld [vmem:[#allocation8 + $0x340] sm:$0xff]
    %v2406 = vld [vmem:[#allocation8 + $0x348] sm:$0xff]
    %v2407 = vld [vmem:[#allocation8 + $0x350] sm:$0xff]
    %v2408 = vld [vmem:[#allocation8 + $0x358] sm:$0xff]
    %v2409 = vld [vmem:[#allocation8 + $0x360] sm:$0xff]
    %v2410 = vld [vmem:[#allocation8 + $0x368] sm:$0xff]
    %v2411 = vld [vmem:[#allocation8 + $0x370] sm:$0xff]
    %v2412 = vld [vmem:[#allocation8 + $0x378] sm:$0xff]
    %v2413 = vld [vmem:[#allocation8 + $0x380] sm:$0xff]
    %v2414 = vld [vmem:[#allocation8 + $0x388] sm:$0xff]
    %v2415 = vld [vmem:[#allocation8 + $0x390] sm:$0xff]
    %v2416 = vld [vmem:[#allocation8 + $0x398] sm:$0xff]
    %v2417 = vld [vmem:[#allocation8 + $0x3a0] sm:$0xff]
    %v2418 = vld [vmem:[#allocation8 + $0x3a8] sm:$0xff]
    %v2419 = vld [vmem:[#allocation8 + $0x3b0] sm:$0xff]
    %v2420 = vld [vmem:[#allocation8 + $0x3b8] sm:$0xff]
    %v2421 = vld [vmem:[#allocation8 + $0x3c0] sm:$0xff]
    %v2422 = vld [vmem:[#allocation8 + $0x3c8] sm:$0xff]
    %v2423 = vld [vmem:[#allocation8 + $0x3d0] sm:$0xff]
    %v2424 = vld [vmem:[#allocation8 + $0x3d8] sm:$0xff]
    %v2425 = vld [vmem:[#allocation8 + $0x3e0] sm:$0xff]
    %v2426 = vld [vmem:[#allocation8 + $0x3e8] sm:$0xff]
    %v2427 = vld [vmem:[#allocation8 + $0x3f0] sm:$0xff]
    %v2428 = vld [vmem:[#allocation8 + $0x3f8] sm:$0xff]
    %v2429 = vld [vmem:[#allocation10] sm:$0x1]
    %v2431 = vlaneseq
    %v2432 = vshrl.u32 %v2431, 7
    %v2433 = vsub.s32 0, %v2432
    %v2434 = vrot.slane %v2429, %v2433
    %2436 = vmatprep.subr.mxu0 0.0
    %2437 = vmatpush1.msra.mxu0 %v2301
    %2438 = vmatprep.subr.mxu0 0.0
    %2439 = vmatpush1.msra.mxu0 %v2302
    %2440 = vmatprep.subr.mxu0 0.0
    %2441 = vmatpush1.msra.mxu0 %v2303
    %2442 = vmatprep.subr.mxu0 0.0
    %2443 = vmatpush1.msra.mxu0 %v2304
    %2444 = vmatprep.subr.mxu0 0.0
    %2445 = vmatpush1.msra.mxu0 %v2305
    %2446 = vmatprep.subr.mxu0 0.0
    %2447 = vmatpush1.msra.mxu0 %v2306
    %2448 = vmatprep.subr.mxu0 0.0
    %2449 = vmatpush1.msra.mxu0 %v2307
    %2450 = vmatprep.subr.mxu0 0.0
    %2451 = vmatpush1.msra.mxu0 %v2308
    %2452 = vmatprep.subr.mxu0 0.0
    %2453 = vmatpush1.msra.mxu0 %v2309
    %2454 = vmatprep.subr.mxu0 0.0
    %2455 = vmatpush1.msra.mxu0 %v2310
    %2456 = vmatprep.subr.mxu0 0.0
    %2457 = vmatpush1.msra.mxu0 %v2311
    %2458 = vmatprep.subr.mxu0 0.0
    %2459 = vmatpush1.msra.mxu0 %v2312
    %2460 = vmatprep.subr.mxu0 0.0
    %2461 = vmatpush1.msra.mxu0 %v2313
    %2462 = vmatprep.subr.mxu0 0.0
    %2463 = vmatpush1.msra.mxu0 %v2314
    %2464 = vmatprep.subr.mxu0 0.0
    %2465 = vmatpush1.msra.mxu0 %v2315
    %2466 = vmatprep.subr.mxu0 0.0
    %2467 = vmatpush1.msra.mxu0 %v2316
    %2468 = vmatprep.subr.mxu0 0.0
    %2469 = vmatpush1.msra.mxu0 %v2317
    %2470 = vmatprep.subr.mxu0 0.0
    %2471 = vmatpush1.msra.mxu0 %v2318
    %2472 = vmatprep.subr.mxu0 0.0
    %2473 = vmatpush1.msra.mxu0 %v2319
    %2474 = vmatprep.subr.mxu0 0.0
    %2475 = vmatpush1.msra.mxu0 %v2320
    %2476 = vmatprep.subr.mxu0 0.0
    %2477 = vmatpush1.msra.mxu0 %v2321
    %2478 = vmatprep.subr.mxu0 0.0
    %2479 = vmatpush1.msra.mxu0 %v2322
    %2480 = vmatprep.subr.mxu0 0.0
    %2481 = vmatpush1.msra.mxu0 %v2323
    %2482 = vmatprep.subr.mxu0 0.0
    %2483 = vmatpush1.msra.mxu0 %v2324
    %2484 = vmatprep.subr.mxu0 0.0
    %2485 = vmatpush1.msra.mxu0 %v2325
    %2486 = vmatprep.subr.mxu0 0.0
    %2487 = vmatpush1.msra.mxu0 %v2326
    %2488 = vmatprep.subr.mxu0 0.0
    %2489 = vmatpush1.msra.mxu0 %v2327
    %2490 = vmatprep.subr.mxu0 0.0
    %2491 = vmatpush1.msra.mxu0 %v2328
    %2492 = vmatprep.subr.mxu0 0.0
    %2493 = vmatpush1.msra.mxu0 %v2329
    %2494 = vmatprep.subr.mxu0 0.0
    %2495 = vmatpush1.msra.mxu0 %v2330
    %2496 = vmatprep.subr.mxu0 0.0
    %2497 = vmatpush1.msra.mxu0 %v2331
    %2498 = vmatprep.subr.mxu0 0.0
    %2499 = vmatpush1.msra.mxu0 %v2332
    %2500 = vmatprep.mubr.f32.mxu0 %v2294
    %2501 = vmatmul.mubr.f32.gmra.mrb[0].mxu0 %v2293
    %v2502 = vpop.f32.mrb[0].mxu0
    %v2503 = vadd.f32 %v2434, %v2502
    %v2504 = vpop.f32.mrb[0].mxu0
    %2505 = vdwg.mxu0
    %2506 = vmatprep.subr.mxu0 0.0
    %2507 = vmatpush1.msra.mxu0 %v2333
    %2508 = vmatprep.subr.mxu0 0.0
    %2509 = vmatpush1.msra.mxu0 %v2334
    %2510 = vmatprep.subr.mxu0 0.0
    %2511 = vmatpush1.msra.mxu0 %v2335
    %2512 = vmatprep.subr.mxu0 0.0
    %2513 = vmatpush1.msra.mxu0 %v2336
    %2514 = vmatprep.subr.mxu0 0.0
    %2515 = vmatpush1.msra.mxu0 %v2337
    %2516 = vmatprep.subr.mxu0 0.0
    %2517 = vmatpush1.msra.mxu0 %v2338
    %2518 = vmatprep.subr.mxu0 0.0
    %2519 = vmatpush1.msra.mxu0 %v2339
    %2520 = vmatprep.subr.mxu0 0.0
    %2521 = vmatpush1.msra.mxu0 %v2340
    %2522 = vmatprep.subr.mxu0 0.0
    %2523 = vmatpush1.msra.mxu0 %v2341
    %2524 = vmatprep.subr.mxu0 0.0
    %2525 = vmatpush1.msra.mxu0 %v2342
    %2526 = vmatprep.subr.mxu0 0.0
    %2527 = vmatpush1.msra.mxu0 %v2343
    %2528 = vmatprep.subr.mxu0 0.0
    %2529 = vmatpush1.msra.mxu0 %v2344
    %2530 = vmatprep.subr.mxu0 0.0
    %2531 = vmatpush1.msra.mxu0 %v2345
    %2532 = vmatprep.subr.mxu0 0.0
    %2533 = vmatpush1.msra.mxu0 %v2346
    %2534 = vmatprep.subr.mxu0 0.0
    %2535 = vmatpush1.msra.mxu0 %v2347
    %2536 = vmatprep.subr.mxu0 0.0
    %2537 = vmatpush1.msra.mxu0 %v2348
    %2538 = vmatprep.subr.mxu0 0.0
    %2539 = vmatpush1.msra.mxu0 %v2349
    %2540 = vmatprep.subr.mxu0 0.0
    %2541 = vmatpush1.msra.mxu0 %v2350
    %2542 = vmatprep.subr.mxu0 0.0
    %2543 = vmatpush1.msra.mxu0 %v2351
    %2544 = vmatprep.subr.mxu0 0.0
    %2545 = vmatpush1.msra.mxu0 %v2352
    %2546 = vmatprep.subr.mxu0 0.0
    %2547 = vmatpush1.msra.mxu0 %v2353
    %2548 = vmatprep.subr.mxu0 0.0
    %2549 = vmatpush1.msra.mxu0 %v2354
    %2550 = vmatprep.subr.mxu0 0.0
    %2551 = vmatpush1.msra.mxu0 %v2355
    %2552 = vmatprep.subr.mxu0 0.0
    %2553 = vmatpush1.msra.mxu0 %v2356
    %2554 = vmatprep.subr.mxu0 0.0
    %2555 = vmatpush1.msra.mxu0 %v2357
    %2556 = vmatprep.subr.mxu0 0.0
    %2557 = vmatpush1.msra.mxu0 %v2358
    %2558 = vmatprep.subr.mxu0 0.0
    %2559 = vmatpush1.msra.mxu0 %v2359
    %2560 = vmatprep.subr.mxu0 0.0
    %2561 = vmatpush1.msra.mxu0 %v2360
    %2562 = vmatprep.subr.mxu0 0.0
    %2563 = vmatpush1.msra.mxu0 %v2361
    %2564 = vmatprep.subr.mxu0 0.0
    %2565 = vmatpush1.msra.mxu0 %v2362
    %2566 = vmatprep.subr.mxu0 0.0
    %2567 = vmatpush1.msra.mxu0 %v2363
    %2568 = vmatprep.subr.mxu0 0.0
    %2569 = vmatpush1.msra.mxu0 %v2364
    %2570 = vmatprep.mubr.f32.mxu0 %v2296
    %2571 = vmatmul.mubr.f32.gmra.mrb[0].mxu0 %v2295
    %v2572 = vpop.f32.mrb[0].mxu0
    %v2573 = vadd.f32 %v2503, %v2572
    %v2574 = vpop.f32.mrb[0].mxu0
    %2575 = vdwg.mxu0
    %2576 = vmatprep.subr.mxu0 0.0
    %2577 = vmatpush1.msra.mxu0 %v2365
    %2578 = vmatprep.subr.mxu0 0.0
    %2579 = vmatpush1.msra.mxu0 %v2366
    %2580 = vmatprep.subr.mxu0 0.0
    %2581 = vmatpush1.msra.mxu0 %v2367
    %2582 = vmatprep.subr.mxu0 0.0
    %2583 = vmatpush1.msra.mxu0 %v2368
    %2584 = vmatprep.subr.mxu0 0.0
    %2585 = vmatpush1.msra.mxu0 %v2369
    %2586 = vmatprep.subr.mxu0 0.0
    %2587 = vmatpush1.msra.mxu0 %v2370
    %2588 = vmatprep.subr.mxu0 0.0
    %2589 = vmatpush1.msra.mxu0 %v2371
    %2590 = vmatprep.subr.mxu0 0.0
    %2591 = vmatpush1.msra.mxu0 %v2372
    %2592 = vmatprep.subr.mxu0 0.0
    %2593 = vmatpush1.msra.mxu0 %v2373
    %2594 = vmatprep.subr.mxu0 0.0
    %2595 = vmatpush1.msra.mxu0 %v2374
    %2596 = vmatprep.subr.mxu0 0.0
    %2597 = vmatpush1.msra.mxu0 %v2375
    %2598 = vmatprep.subr.mxu0 0.0
    %2599 = vmatpush1.msra.mxu0 %v2376
    %2600 = vmatprep.subr.mxu0 0.0
    %2601 = vmatpush1.msra.mxu0 %v2377
    %2602 = vmatprep.subr.mxu0 0.0
    %2603 = vmatpush1.msra.mxu0 %v2378
    %2604 = vmatprep.subr.mxu0 0.0
    %2605 = vmatpush1.msra.mxu0 %v2379
    %2606 = vmatprep.subr.mxu0 0.0
    %2607 = vmatpush1.msra.mxu0 %v2380
    %2608 = vmatprep.subr.mxu0 0.0
    %2609 = vmatpush1.msra.mxu0 %v2381
    %2610 = vmatprep.subr.mxu0 0.0
    %2611 = vmatpush1.msra.mxu0 %v2382
    %2612 = vmatprep.subr.mxu0 0.0
    %2613 = vmatpush1.msra.mxu0 %v2383
    %2614 = vmatprep.subr.mxu0 0.0
    %2615 = vmatpush1.msra.mxu0 %v2384
    %2616 = vmatprep.subr.mxu0 0.0
    %2617 = vmatpush1.msra.mxu0 %v2385
    %2618 = vmatprep.subr.mxu0 0.0
    %2619 = vmatpush1.msra.mxu0 %v2386
    %2620 = vmatprep.subr.mxu0 0.0
    %2621 = vmatpush1.msra.mxu0 %v2387
    %2622 = vmatprep.subr.mxu0 0.0
    %2623 = vmatpush1.msra.mxu0 %v2388
    %2624 = vmatprep.subr.mxu0 0.0
    %2625 = vmatpush1.msra.mxu0 %v2389
    %2626 = vmatprep.subr.mxu0 0.0
    %2627 = vmatpush1.msra.mxu0 %v2390
    %2628 = vmatprep.subr.mxu0 0.0
    %2629 = vmatpush1.msra.mxu0 %v2391
    %2630 = vmatprep.subr.mxu0 0.0
    %2631 = vmatpush1.msra.mxu0 %v2392
    %2632 = vmatprep.subr.mxu0 0.0
    %2633 = vmatpush1.msra.mxu0 %v2393
    %2634 = vmatprep.subr.mxu0 0.0
    %2635 = vmatpush1.msra.mxu0 %v2394
    %2636 = vmatprep.subr.mxu0 0.0
    %2637 = vmatpush1.msra.mxu0 %v2395
    %2638 = vmatprep.subr.mxu0 0.0
    %2639 = vmatpush1.msra.mxu0 %v2396
    %2640 = vmatprep.mubr.f32.mxu0 %v2298
    %2641 = vmatmul.mubr.f32.gmra.mrb[0].mxu0 %v2297
    %v2642 = vpop.f32.mrb[0].mxu0
    %v2643 = vadd.f32 %v2573, %v2642
    %v2644 = vpop.f32.mrb[0].mxu0
    %2645 = vdwg.mxu0
    %2646 = vmatprep.subr.mxu0 0.0
    %2647 = vmatpush1.msra.mxu0 %v2397
    %2648 = vmatprep.subr.mxu0 0.0
    %2649 = vmatpush1.msra.mxu0 %v2398
    %2650 = vmatprep.subr.mxu0 0.0
    %2651 = vmatpush1.msra.mxu0 %v2399
    %2652 = vmatprep.subr.mxu0 0.0
    %2653 = vmatpush1.msra.mxu0 %v2400
    %2654 = vmatprep.subr.mxu0 0.0
    %2655 = vmatpush1.msra.mxu0 %v2401
    %2656 = vmatprep.subr.mxu0 0.0
    %2657 = vmatpush1.msra.mxu0 %v2402
    %2658 = vmatprep.subr.mxu0 0.0
    %2659 = vmatpush1.msra.mxu0 %v2403
    %2660 = vmatprep.subr.mxu0 0.0
    %2661 = vmatpush1.msra.mxu0 %v2404
    %2662 = vmatprep.subr.mxu0 0.0
    %2663 = vmatpush1.msra.mxu0 %v2405
    %2664 = vmatprep.subr.mxu0 0.0
    %2665 = vmatpush1.msra.mxu0 %v2406
    %2666 = vmatprep.subr.mxu0 0.0
    %2667 = vmatpush1.msra.mxu0 %v2407
    %2668 = vmatprep.subr.mxu0 0.0
    %2669 = vmatpush1.msra.mxu0 %v2408
    %2670 = vmatprep.subr.mxu0 0.0
    %2671 = vmatpush1.msra.mxu0 %v2409
    %2672 = vmatprep.subr.mxu0 0.0
    %2673 = vmatpush1.msra.mxu0 %v2410
    %2674 = vmatprep.subr.mxu0 0.0
    %2675 = vmatpush1.msra.mxu0 %v2411
    %2676 = vmatprep.subr.mxu0 0.0
    %2677 = vmatpush1.msra.mxu0 %v2412
    %2678 = vmatprep.subr.mxu0 0.0
    %2679 = vmatpush1.msra.mxu0 %v2413
    %2680 = vmatprep.subr.mxu0 0.0
    %2681 = vmatpush1.msra.mxu0 %v2414
    %2682 = vmatprep.subr.mxu0 0.0
    %2683 = vmatpush1.msra.mxu0 %v2415
    %2684 = vmatprep.subr.mxu0 0.0
    %2685 = vmatpush1.msra.mxu0 %v2416
    %2686 = vmatprep.subr.mxu0 0.0
    %2687 = vmatpush1.msra.mxu0 %v2417
    %2688 = vmatprep.subr.mxu0 0.0
    %2689 = vmatpush1.msra.mxu0 %v2418
    %2690 = vmatprep.subr.mxu0 0.0
    %2691 = vmatpush1.msra.mxu0 %v2419
    %2692 = vmatprep.subr.mxu0 0.0
    %2693 = vmatpush1.msra.mxu0 %v2420
    %2694 = vmatprep.subr.mxu0 0.0
    %2695 = vmatpush1.msra.mxu0 %v2421
    %2696 = vmatprep.subr.mxu0 0.0
    %2697 = vmatpush1.msra.mxu0 %v2422
    %2698 = vmatprep.subr.mxu0 0.0
    %2699 = vmatpush1.msra.mxu0 %v2423
    %2700 = vmatprep.subr.mxu0 0.0
    %2701 = vmatpush1.msra.mxu0 %v2424
    %2702 = vmatprep.subr.mxu0 0.0
    %2703 = vmatpush1.msra.mxu0 %v2425
    %2704 = vmatprep.subr.mxu0 0.0
    %2705 = vmatpush1.msra.mxu0 %v2426
    %2706 = vmatprep.subr.mxu0 0.0
    %2707 = vmatpush1.msra.mxu0 %v2427
    %2708 = vmatprep.subr.mxu0 0.0
    %2709 = vmatpush1.msra.mxu0 %v2428
    %2710 = vmatprep.mubr.f32.mxu0 %v2300
    %2711 = vmatmul.mubr.f32.gmra.mrb[0].mxu0 %v2299
    %v2712 = vpop.f32.mrb[0].mxu0
    %v2713 = vadd.f32 %v2643, %v2712
    %v2714 = vpop.f32.mrb[0].mxu0
    %2715 = vdwg.mxu0
    %2716 = vst [vmem:[#allocation11] sm:$0xff] %v2713
    // Predicated region
    $region42: #{tpu_custom_call.1} parent=1 // pred_check
      _
    $region43: #{tpu_custom_call.1} parent=1 // pred_check_branch
      %2718 = sbr.rel (0) target = $region45
    $region44: #{tpu_custom_call.1} parent=1 // pred_region
      %s2720 = ssub.s32 128, 128
      %2721 = vsyncadd [#allocation4], %s2720
      %s2723 = sshll.u32 [#allocation11], 4
      %s2724 = int_to_ptr.vmem [resolvable:$true] %s2723
      %2726 = dma.vmem_to_hbm [thread:$0]  %s2724, 128, %s5, [#allocation4]
    $region45: #{tpu_custom_call.1} parent=1 // pred_fallthru
      _
    // Predicated region
    $region46: #{tpu_custom_call.1} parent=1 // pred_check
      _
    $region47: #{tpu_custom_call.1} parent=1 // pred_check_branch
      %2728 = sbr.rel (0) target = $region49
    $region48: #{tpu_custom_call.1} parent=1 // pred_region
      %2729 = dma.done [#allocation4], 128
    $region49: #{tpu_custom_call.1} parent=1 // pred_fallthru
      _
    %2730 = vsyncpa [#allocation3], 1
    %2731 = vsyncpa [#allocation6], 1
    %2732 = vsyncpa [#allocation9], 1
    %2733 = vsyncpa [#allocation4], 1

</llo_original>
